<compile_context>
chip_gen: v7x
topology: tpu7x:2x2x1
jax: 0.10.0
libtpu: 0.0.40
codegen_flags: <defaults>
</compile_context>

<pallas_src>
import jax
import jax.numpy as jnp
from jax.experimental import pallas as pl
from jax.experimental.pallas import tpu as pltpu

# ---- module hyper-parameters (consistent with the PyTorch module) ----
MIN_DEG, MAX_DEG = 0, 4          # min_deg_point / max_deg_point
DEG_VIEW = 2
NETDEPTH = 8
NETWIDTH = 128
NETDEPTH_COND = 1
NETWIDTH_COND = 128
SKIP_LAYER = 4
INPUT_CH = 3
INPUT_CH_VIEW = 3
NUM_RGB = 3
NUM_DENSITY = 1

POS_SIZE = ((MAX_DEG - MIN_DEG) * 2 + 1) * INPUT_CH            # 27
VIEW_POS_SIZE = (DEG_VIEW * 2 + 1) * INPUT_CH_VIEW             # 15
HEAD_WIDTH = NETWIDTH + NUM_DENSITY + 3                        # 132
OUT_PACK = NUM_DENSITY + 3 + NUM_RGB + 1                       # 8 (lane-dense, 1 pad)
NUM_W128 = (NETDEPTH - 1) + NETDEPTH_COND                      # stacked (128,128) mats

assert NETWIDTH == NETWIDTH_COND, "w128 stacking assumes netwidth == netwidth_condition"


def _round_up(n, m):
    return ((n + m - 1) // m) * m


# ------------------------- plain-JAX glue -------------------------
def pos_enc(x, min_deg, max_deg):
    """NeRF positional encoding: [x, sin(2^i x), cos(2^i x)]."""
    scales = jnp.array([2.0 ** i for i in range(min_deg, max_deg)], dtype=x.dtype)
    xb = (x[..., None, :] * scales[:, None]).reshape(x.shape[:-1] + (-1,))
    four_feat = jnp.sin(jnp.concatenate([xb, xb + 0.5 * jnp.pi], axis=-1))
    return jnp.concatenate([x, four_feat], axis=-1)


def init_params(key):
    """Deterministic xavier-uniform weights (in, out) + small uniform biases (1, out)."""
    keys = iter(jax.random.split(key, 64))

    def xavier(fan_in, fan_out):
        limit = (6.0 / (fan_in + fan_out)) ** 0.5
        return jax.random.uniform(next(keys), (fan_in, fan_out), jnp.float32, -limit, limit)

    def bias(fan_in, fan_out):
        bound = 1.0 / (fan_in ** 0.5)
        return jax.random.uniform(next(keys), (1, fan_out), jnp.float32, -bound, bound)

    params = []
    # pts_linears input widths (skip connection feeds layer skip_layer+1)
    pts_in = [POS_SIZE]
    for idx in range(NETDEPTH - 1):
        if idx % SKIP_LAYER == 0 and idx > 0:
            pts_in.append(NETWIDTH + POS_SIZE)
        else:
            pts_in.append(NETWIDTH)
    for d_in in pts_in:
        params.append(xavier(d_in, NETWIDTH))
        params.append(bias(d_in, NETWIDTH))
    # density / grad / bottleneck
    params.append(xavier(NETWIDTH, NUM_DENSITY)); params.append(bias(NETWIDTH, NUM_DENSITY))
    params.append(xavier(NETWIDTH, 3));           params.append(bias(NETWIDTH, 3))
    params.append(xavier(NETWIDTH, NETWIDTH));    params.append(bias(NETWIDTH, NETWIDTH))
    # views_linear
    v_in = [NETWIDTH + VIEW_POS_SIZE] + [NETWIDTH_COND] * (NETDEPTH_COND - 1)
    for d_in in v_in:
        params.append(xavier(d_in, NETWIDTH_COND)); params.append(bias(d_in, NETWIDTH_COND))
    # rgb
    params.append(xavier(NETWIDTH_COND, NUM_RGB)); params.append(bias(NETWIDTH_COND, NUM_RGB))
    return params


def pack_params(params):
    """Re-pack the flat (torch-layout) parameter list into the fused / stacked
    arrays the kernel consumes: bf16 matmul weights, f32 biases."""
    bf16 = jnp.bfloat16
    pts_w = [params[2 * i] for i in range(NETDEPTH)]
    pts_b = [params[2 * i + 1] for i in range(NETDEPTH)]
    off = 2 * NETDEPTH
    wd, bd, wg, bg, wbt, bbt = params[off:off + 6]
    off += 6
    views_w = [params[off + 2 * i] for i in range(NETDEPTH_COND)]
    views_b = [params[off + 2 * i + 1] for i in range(NETDEPTH_COND)]
    off += 2 * NETDEPTH_COND
    wr, br = params[off], params[off + 1]

    skip_w = pts_w[SKIP_LAYER + 1]                       # (NETWIDTH + POS_SIZE, NETWIDTH)
    # stacked K=POS_SIZE weights: [layer0, input-half of the skip layer]
    w27 = jnp.stack([pts_w[0], skip_w[NETWIDTH:]]).astype(bf16)        # (2, 27, 128)

    w128_list = []
    for idx in range(1, NETDEPTH):
        w = pts_w[idx]
        if idx == SKIP_LAYER + 1:
            w = w[:NETWIDTH]                             # h-half of the skip layer
        w128_list.append(w)
    w128_list.append(views_w[0][:NETWIDTH])              # bottleneck-half of view layer 0
    for j in range(1, NETDEPTH_COND):
        w128_list.append(views_w[j])
    w128 = jnp.stack(w128_list).astype(bf16)             # (NUM_W128, 128, 128)

    w_head = jnp.concatenate([wbt, wd, wg], axis=1).astype(bf16)       # (128, 132)
    w_vc = views_w[0][NETWIDTH:].astype(bf16)                          # (15, 128)
    w_rgb = wr.astype(bf16)                                            # (128, 3)

    b_main = jnp.concatenate(pts_b + views_b, axis=0).astype(jnp.float32)   # (9, 128)
    b_head = jnp.concatenate([bbt, bd, bg], axis=1).astype(jnp.float32)     # (1, 132)
    b_rgb = br.astype(jnp.float32)                                          # (1, 3)
    return w27, w128, w_head, w_vc, w_rgb, b_main, b_head, b_rgb


# ------------------------- Pallas kernel -------------------------
def snerf_kernel(x_ref, cond_ref, w27_ref, w128_ref, whead_ref, wvc_ref,
                 wrgb_ref, bmain_ref, bhead_ref, brgb_ref, out_ref):
    f32, bf16 = jnp.float32, jnp.bfloat16

    x_enc = x_ref[...]               # (TM, 27)  bf16
    cond = cond_ref[...]             # (TM, 15)  bf16
    b_main = bmain_ref[...]          # (9, 128)  f32

    # ---- trunk MLP (all elementwise math in f32, matmul operands bf16) ----
    h = jnp.dot(x_enc, w27_ref[0], preferred_element_type=f32) + b_main[0:1, :]
    h = jnp.maximum(h, 0.0)
    for idx in range(1, NETDEPTH):
        acc = jnp.dot(h.astype(bf16), w128_ref[idx - 1], preferred_element_type=f32)
        if idx == SKIP_LAYER + 1:
            # skip connection: concat([h, x_enc]) @ W  ==  h @ W_h + x_enc @ W_in
            acc = acc + jnp.dot(x_enc, w27_ref[1], preferred_element_type=f32)
        h = jnp.maximum(acc + b_main[idx:idx + 1, :], 0.0)

    # ---- fused heads: [bottleneck(128) | density(1) | grad(3)] in one matmul ----
    h_bf = h.astype(bf16)
    head = jnp.dot(h_bf, whead_ref[...], preferred_element_type=f32) + bhead_ref[...]
    bottleneck = head[:, :NETWIDTH]                                    # lane-aligned
    raw_density = head[:, NETWIDTH:NETWIDTH + NUM_DENSITY]
    grad = head[:, NETWIDTH + NUM_DENSITY:NETWIDTH + NUM_DENSITY + 3]

    inv_norm = jax.lax.rsqrt(
        jnp.maximum(jnp.sum(grad * grad, axis=-1, keepdims=True), 1e-10))
    normals_pred = -grad * inv_norm

    # ---- view-conditioned branch ----
    # concat([bottleneck, cond]) @ W  ==  bottleneck @ W_b + cond @ W_c
    hv = (jnp.dot(bottleneck.astype(bf16), w128_ref[NETDEPTH - 1],
                  preferred_element_type=f32)
          + jnp.dot(cond, wvc_ref[...], preferred_element_type=f32)
          + b_main[NETDEPTH:NETDEPTH + 1, :])
    hv = jnp.maximum(hv, 0.0)
    for j in range(1, NETDEPTH_COND):
        hv = jnp.dot(hv.astype(bf16), w128_ref[NETDEPTH - 1 + j],
                     preferred_element_type=f32) + b_main[NETDEPTH + j:NETDEPTH + j + 1, :]
        hv = jnp.maximum(hv, 0.0)

    raw_rgb = jnp.dot(hv.astype(bf16), wrgb_ref[...],
                      preferred_element_type=f32) + brgb_ref[...]

    # ---- activations + single lane-contiguous packed store ----
    density = jnp.maximum(raw_density, 0.0)          # sigma_activation = ReLU
    rgb = jax.nn.sigmoid(raw_rgb)                    # rgb_activation  = Sigmoid
    out_ref[...] = jnp.concatenate(
        [density, normals_pred, rgb, jnp.zeros_like(raw_density)], axis=-1)


# ------------------------- wrapper -------------------------
def snerf_forward(x, condition, params, *, tile_rows=2048):
    B, S, _ = x.shape
    N = B * S

    # tiles stay multiples of 256 (full MXU rows on v6e/v7x, 2x MXU on v5e);
    # cap at the padded problem size so tiny inputs don't over-pad.  2048 rows
    # per step keeps the ~0.35us/grid-step pipeline overhead well under the
    # per-tile compute on large batches while staying a few MiB in VMEM.
    tile_rows = min(_round_up(tile_rows, 256), _round_up(N, 256))
    n_tiles = _round_up(N, tile_rows) // tile_rows
    n_pad = n_tiles * tile_rows

    x_enc = pos_enc(x.astype(jnp.float32), MIN_DEG, MAX_DEG).reshape(N, POS_SIZE)
    cond_tile = jnp.broadcast_to(condition[:, None, :].astype(jnp.float32),
                                 (B, S, VIEW_POS_SIZE)).reshape(N, VIEW_POS_SIZE)
    if n_pad != N:
        x_enc = jnp.pad(x_enc, ((0, n_pad - N), (0, 0)))
        cond_tile = jnp.pad(cond_tile, ((0, n_pad - N), (0, 0)))
    x_enc = x_enc.astype(jnp.bfloat16)
    cond_tile = cond_tile.astype(jnp.bfloat16)

    packed = pack_params(params)
    w27, w128, w_head, w_vc, w_rgb, b_main, b_head, b_rgb = packed

    in_specs = [
        pl.BlockSpec((tile_rows, POS_SIZE), lambda i: (i, 0)),
        pl.BlockSpec((tile_rows, VIEW_POS_SIZE), lambda i: (i, 0)),
        pl.BlockSpec(w27.shape, lambda i: (0, 0, 0)),     # weights: full block, resident
        pl.BlockSpec(w128.shape, lambda i: (0, 0, 0)),
        pl.BlockSpec(w_head.shape, lambda i: (0, 0)),
        pl.BlockSpec(w_vc.shape, lambda i: (0, 0)),
        pl.BlockSpec(w_rgb.shape, lambda i: (0, 0)),
        pl.BlockSpec(b_main.shape, lambda i: (0, 0)),
        pl.BlockSpec(b_head.shape, lambda i: (0, 0)),
        pl.BlockSpec(b_rgb.shape, lambda i: (0, 0)),
    ]
    out_spec = pl.BlockSpec((tile_rows, OUT_PACK), lambda i: (i, 0))
    out_shape = jax.ShapeDtypeStruct((n_pad, OUT_PACK), jnp.float32)

    flops_per_row = 2 * (2 * POS_SIZE * NETWIDTH
                         + (NETDEPTH - 1) * NETWIDTH * NETWIDTH
                         + NETWIDTH * HEAD_WIDTH
                         + NETWIDTH * NETWIDTH_COND
                         + (NETDEPTH_COND - 1) * NETWIDTH_COND * NETWIDTH_COND
                         + VIEW_POS_SIZE * NETWIDTH_COND
                         + NETWIDTH_COND * NUM_RGB)
    weight_bytes = sum(int(a.size) * a.dtype.itemsize for a in packed)
    cost = pl.CostEstimate(
        flops=flops_per_row * n_pad,
        transcendentals=(NUM_RGB + 1) * n_pad,      # sigmoid x3 + rsqrt
        bytes_accessed=(int(x_enc.size) * 2 + int(cond_tile.size) * 2
                        + n_pad * OUT_PACK * 4 + weight_bytes))

    out = pl.pallas_call(
        snerf_kernel,
        grid=(n_tiles,),
        in_specs=in_specs,
        out_specs=out_spec,
        out_shape=out_shape,
        compiler_params=pltpu.CompilerParams(
            dimension_semantics=("parallel",),
            vmem_limit_bytes=48 * 1024 * 1024),      # headroom for 2048-row tiles
        cost_estimate=cost,
    )(x_enc, cond_tile, *packed)

    out = out[:N]
    density = out[:, 0:NUM_DENSITY]
    normals_pred = out[:, NUM_DENSITY:NUM_DENSITY + 3]
    rgb = out[:, NUM_DENSITY + 3:NUM_DENSITY + 3 + NUM_RGB]
    return dict(
        rgb=rgb.reshape(B, S, NUM_RGB),
        density=density.reshape(B, S, NUM_DENSITY),
        normals=jnp.zeros_like(x),                    # inference path: zeros_like(x)
        normals_pred=normals_pred.reshape(B, S, 3),
    )


# ------------------------- pure-JAX reference -------------------------
def snerf_ref(x, condition, params, compute_dtype=jnp.float32):
    """Reference forward.  compute_dtype=bfloat16 mirrors the kernel's
    bf16-operand / f32-accumulate matmul numerics."""
    cd = compute_dtype

    def mm(a, w):
        return jnp.dot(a.astype(cd), w.astype(cd), preferred_element_type=jnp.float32)

    B, S, _ = x.shape
    x_enc = pos_enc(x, MIN_DEG, MAX_DEG).reshape(-1, POS_SIZE)
    inputs = x_enc
    h = x_enc
    for idx in range(NETDEPTH):
        w, b = params[2 * idx], params[2 * idx + 1]
        h = jax.nn.relu(mm(h, w) + b)
        if idx % SKIP_LAYER == 0 and idx > 0:
            h = jnp.concatenate([h, inputs], axis=-1)
    off = 2 * NETDEPTH
    wd, bd, wg, bg, wbt, bbt = params[off:off + 6]
    off += 6
    raw_density = mm(h, wd) + bd
    grad = mm(h, wg) + bg
    normals_pred = -grad / jnp.sqrt(
        jnp.maximum(jnp.sum(grad ** 2, -1, keepdims=True), 1e-10))
    bottleneck = mm(h, wbt) + bbt
    cond_tile = jnp.broadcast_to(
        condition[:, None, :], (B, S, VIEW_POS_SIZE)).reshape(-1, VIEW_POS_SIZE)
    hv = jnp.concatenate([bottleneck, cond_tile], axis=-1)
    for idx in range(NETDEPTH_COND):
        w, b = params[off + 2 * idx], params[off + 2 * idx + 1]
        hv = jax.nn.relu(mm(hv, w) + b)
    off += 2 * NETDEPTH_COND
    wr, br = params[off], params[off + 1]
    rgb = jax.nn.sigmoid(mm(hv, wr) + br)
    return dict(
        rgb=rgb.reshape(B, S, NUM_RGB),
        density=jax.nn.relu(raw_density).reshape(B, S, NUM_DENSITY),
        normals=jnp.zeros_like(x),
        normals_pred=normals_pred.reshape(B, S, 3),
    )


if __name__ == "__main__":
    key = jax.random.PRNGKey(0)
    kx, kc, kp = jax.random.split(key, 3)

    B, S = 2, 64                                   # rays, samples-per-ray
    x = jax.random.normal(kx, (B, S, INPUT_CH), jnp.float32)
    viewdirs = jax.random.normal(kc, (B, INPUT_CH_VIEW), jnp.float32)
    viewdirs = viewdirs / jnp.linalg.norm(viewdirs, axis=-1, keepdims=True)
    condition = pos_enc(viewdirs, 0, DEG_VIEW)     # (B, VIEW_POS_SIZE)

    params = init_params(kp)

    out = snerf_forward(x, condition, params)
    out = jax.tree_util.tree_map(jax.block_until_ready, out)

    # Check 1: against a reference that mirrors the kernel's bf16-operand /
    # f32-accumulate matmuls (tight match, validates the fused/split algebra).
    ref_bf16 = snerf_ref(x, condition, params, compute_dtype=jnp.bfloat16)
    for k in ("rgb", "density", "normals", "normals_pred"):
        assert out[k].shape == ref_bf16[k].shape, (k, out[k].shape, ref_bf16[k].shape)
        assert jnp.allclose(out[k], ref_bf16[k], atol=1e-2, rtol=1e-2), k

    # Check 2: well-conditioned outputs against the full-f32 reference
    # (loosened tolerance because kernel matmuls use bf16 operands).
    ref_f32 = snerf_ref(x, condition, params, compute_dtype=jnp.float32)
    for k in ("rgb", "density"):
        assert jnp.allclose(out[k], ref_f32[k], atol=5e-2, rtol=5e-2), k

    print("KERNEL_OK")
</pallas_src>

<mosaic_0001>
module attributes {stable_mosaic.version = 11 : i64} {
  func.func @snerf_kernel(%arg0: i32, %arg1: memref<256x27xbf16, #tpu.memory_space<vmem>>, %arg2: memref<256x15xbf16, #tpu.memory_space<vmem>>, %arg3: memref<2x27x128xbf16, #tpu.memory_space<vmem>>, %arg4: memref<8x128x128xbf16, #tpu.memory_space<vmem>>, %arg5: memref<128x132xbf16, #tpu.memory_space<vmem>>, %arg6: memref<15x128xbf16, #tpu.memory_space<vmem>>, %arg7: memref<128x3xbf16, #tpu.memory_space<vmem>>, %arg8: memref<9x128xf32, #tpu.memory_space<vmem>>, %arg9: memref<1x132xf32, #tpu.memory_space<vmem>>, %arg10: memref<1x3xf32, #tpu.memory_space<vmem>>, %arg11: memref<256x8xf32, #tpu.memory_space<vmem>>) attributes {dimension_semantics = [#tpu.dimension_semantics<parallel>], iteration_bounds = array<i64: 1>, scalar_prefetch = 0 : i64, scratch_operands = 0 : i64, tpu.core_type = #tpu.core_type<tc>, window_params = [{transform_indices = @transform_0, window_bounds = array<i64: 256, 27>}, {transform_indices = @transform_1, window_bounds = array<i64: 256, 15>}, {pipeline_mode = #tpu.pipeline_mode<synchronous>, transform_indices = @transform_2, window_bounds = array<i64: 2, 27, 128>}, {pipeline_mode = #tpu.pipeline_mode<synchronous>, transform_indices = @transform_3, window_bounds = array<i64: 8, 128, 128>}, {pipeline_mode = #tpu.pipeline_mode<synchronous>, transform_indices = @transform_4, window_bounds = array<i64: 128, 132>}, {pipeline_mode = #tpu.pipeline_mode<synchronous>, transform_indices = @transform_5, window_bounds = array<i64: 15, 128>}, {pipeline_mode = #tpu.pipeline_mode<synchronous>, transform_indices = @transform_6, window_bounds = array<i64: 128, 3>}, {pipeline_mode = #tpu.pipeline_mode<synchronous>, transform_indices = @transform_7, window_bounds = array<i64: 9, 128>}, {pipeline_mode = #tpu.pipeline_mode<synchronous>, transform_indices = @transform_8, window_bounds = array<i64: 1, 132>}, {pipeline_mode = #tpu.pipeline_mode<synchronous>, transform_indices = @transform_9, window_bounds = array<i64: 1, 3>}, {transform_indices = @transform_10, window_bounds = array<i64: 256, 8>}]} {
    %c0 = arith.constant 0 : index
    %c0_0 = arith.constant 0 : index
    %0 = vector.load %arg1[%c0, %c0_0] : memref<256x27xbf16, #tpu.memory_space<vmem>>, vector<256x27xbf16>
    %c0_1 = arith.constant 0 : index
    %c0_2 = arith.constant 0 : index
    %1 = vector.load %arg2[%c0_1, %c0_2] : memref<256x15xbf16, #tpu.memory_space<vmem>>, vector<256x15xbf16>
    %c0_3 = arith.constant 0 : index
    %c0_4 = arith.constant 0 : index
    %2 = vector.load %arg8[%c0_3, %c0_4] : memref<9x128xf32, #tpu.memory_space<vmem>>, vector<9x128xf32>
    %c0_5 = arith.constant 0 : index
    %c0_6 = arith.constant 0 : index
    %c0_7 = arith.constant 0 : index
    %3 = vector.load %arg3[%c0_5, %c0_6, %c0_7] : memref<2x27x128xbf16, #tpu.memory_space<vmem>>, vector<1x27x128xbf16>
    %4 = vector.shape_cast %3 : vector<1x27x128xbf16> to vector<27x128xbf16>
    %cst = arith.constant dense<0.000000e+00> : vector<256x128xf32>
    %5 = tpu.matmul %0, %4, %cst {dimension_numbers = #tpu.dot_dimension_numbers<[1], [0], [0], [1], [0, 0, 1, 1], [], []>} : vector<256x27xbf16>, vector<27x128xbf16>, vector<256x128xf32> -> vector<256x128xf32>
    %6 = vector.extract_strided_slice %2 {offsets = [0, 0], sizes = [1, 128], strides = [1, 1]} : vector<9x128xf32> to vector<1x128xf32>
    %7 = vector.broadcast %6 : vector<1x128xf32> to vector<256x128xf32>
    %8 = arith.addf %5, %7 : vector<256x128xf32>
    %cst_8 = arith.constant 0.000000e+00 : f32
    %9 = vector.broadcast %cst_8 : f32 to vector<256x128xf32>
    %10 = arith.maximumf %8, %9 : vector<256x128xf32>
    %11 = arith.truncf %10 : vector<256x128xf32> to vector<256x128xbf16>
    %c0_9 = arith.constant 0 : index
    %c0_10 = arith.constant 0 : index
    %c0_11 = arith.constant 0 : index
    %12 = vector.load %arg4[%c0_9, %c0_10, %c0_11] : memref<8x128x128xbf16, #tpu.memory_space<vmem>>, vector<1x128x128xbf16>
    %13 = vector.shape_cast %12 : vector<1x128x128xbf16> to vector<128x128xbf16>
    %cst_12 = arith.constant dense<0.000000e+00> : vector<256x128xf32>
    %14 = tpu.matmul %11, %13, %cst_12 {dimension_numbers = #tpu.dot_dimension_numbers<[1], [0], [0], [1], [0, 0, 1, 1], [], []>} : vector<256x128xbf16>, vector<128x128xbf16>, vector<256x128xf32> -> vector<256x128xf32>
    %15 = vector.extract_strided_slice %2 {offsets = [1, 0], sizes = [1, 128], strides = [1, 1]} : vector<9x128xf32> to vector<1x128xf32>
    %16 = vector.broadcast %15 : vector<1x128xf32> to vector<256x128xf32>
    %17 = arith.addf %14, %16 : vector<256x128xf32>
    %cst_13 = arith.constant 0.000000e+00 : f32
    %18 = vector.broadcast %cst_13 : f32 to vector<256x128xf32>
    %19 = arith.maximumf %17, %18 : vector<256x128xf32>
    %20 = arith.truncf %19 : vector<256x128xf32> to vector<256x128xbf16>
    %c1 = arith.constant 1 : index
    %c0_14 = arith.constant 0 : index
    %c0_15 = arith.constant 0 : index
    %21 = vector.load %arg4[%c1, %c0_14, %c0_15] : memref<8x128x128xbf16, #tpu.memory_space<vmem>>, vector<1x128x128xbf16>
    %22 = vector.shape_cast %21 : vector<1x128x128xbf16> to vector<128x128xbf16>
    %cst_16 = arith.constant dense<0.000000e+00> : vector<256x128xf32>
    %23 = tpu.matmul %20, %22, %cst_16 {dimension_numbers = #tpu.dot_dimension_numbers<[1], [0], [0], [1], [0, 0, 1, 1], [], []>} : vector<256x128xbf16>, vector<128x128xbf16>, vector<256x128xf32> -> vector<256x128xf32>
    %24 = vector.extract_strided_slice %2 {offsets = [2, 0], sizes = [1, 128], strides = [1, 1]} : vector<9x128xf32> to vector<1x128xf32>
    %25 = vector.broadcast %24 : vector<1x128xf32> to vector<256x128xf32>
    %26 = arith.addf %23, %25 : vector<256x128xf32>
    %cst_17 = arith.constant 0.000000e+00 : f32
    %27 = vector.broadcast %cst_17 : f32 to vector<256x128xf32>
    %28 = arith.maximumf %26, %27 : vector<256x128xf32>
    %29 = arith.truncf %28 : vector<256x128xf32> to vector<256x128xbf16>
    %c2 = arith.constant 2 : index
    %c0_18 = arith.constant 0 : index
    %c0_19 = arith.constant 0 : index
    %30 = vector.load %arg4[%c2, %c0_18, %c0_19] : memref<8x128x128xbf16, #tpu.memory_space<vmem>>, vector<1x128x128xbf16>
    %31 = vector.shape_cast %30 : vector<1x128x128xbf16> to vector<128x128xbf16>
    %cst_20 = arith.constant dense<0.000000e+00> : vector<256x128xf32>
    %32 = tpu.matmul %29, %31, %cst_20 {dimension_numbers = #tpu.dot_dimension_numbers<[1], [0], [0], [1], [0, 0, 1, 1], [], []>} : vector<256x128xbf16>, vector<128x128xbf16>, vector<256x128xf32> -> vector<256x128xf32>
    %33 = vector.extract_strided_slice %2 {offsets = [3, 0], sizes = [1, 128], strides = [1, 1]} : vector<9x128xf32> to vector<1x128xf32>
    %34 = vector.broadcast %33 : vector<1x128xf32> to vector<256x128xf32>
    %35 = arith.addf %32, %34 : vector<256x128xf32>
    %cst_21 = arith.constant 0.000000e+00 : f32
    %36 = vector.broadcast %cst_21 : f32 to vector<256x128xf32>
    %37 = arith.maximumf %35, %36 : vector<256x128xf32>
    %38 = arith.truncf %37 : vector<256x128xf32> to vector<256x128xbf16>
    %c3 = arith.constant 3 : index
    %c0_22 = arith.constant 0 : index
    %c0_23 = arith.constant 0 : index
    %39 = vector.load %arg4[%c3, %c0_22, %c0_23] : memref<8x128x128xbf16, #tpu.memory_space<vmem>>, vector<1x128x128xbf16>
    %40 = vector.shape_cast %39 : vector<1x128x128xbf16> to vector<128x128xbf16>
    %cst_24 = arith.constant dense<0.000000e+00> : vector<256x128xf32>
    %41 = tpu.matmul %38, %40, %cst_24 {dimension_numbers = #tpu.dot_dimension_numbers<[1], [0], [0], [1], [0, 0, 1, 1], [], []>} : vector<256x128xbf16>, vector<128x128xbf16>, vector<256x128xf32> -> vector<256x128xf32>
    %42 = vector.extract_strided_slice %2 {offsets = [4, 0], sizes = [1, 128], strides = [1, 1]} : vector<9x128xf32> to vector<1x128xf32>
    %43 = vector.broadcast %42 : vector<1x128xf32> to vector<256x128xf32>
    %44 = arith.addf %41, %43 : vector<256x128xf32>
    %cst_25 = arith.constant 0.000000e+00 : f32
    %45 = vector.broadcast %cst_25 : f32 to vector<256x128xf32>
    %46 = arith.maximumf %44, %45 : vector<256x128xf32>
    %47 = arith.truncf %46 : vector<256x128xf32> to vector<256x128xbf16>
    %c4 = arith.constant 4 : index
    %c0_26 = arith.constant 0 : index
    %c0_27 = arith.constant 0 : index
    %48 = vector.load %arg4[%c4, %c0_26, %c0_27] : memref<8x128x128xbf16, #tpu.memory_space<vmem>>, vector<1x128x128xbf16>
    %49 = vector.shape_cast %48 : vector<1x128x128xbf16> to vector<128x128xbf16>
    %cst_28 = arith.constant dense<0.000000e+00> : vector<256x128xf32>
    %50 = tpu.matmul %47, %49, %cst_28 {dimension_numbers = #tpu.dot_dimension_numbers<[1], [0], [0], [1], [0, 0, 1, 1], [], []>} : vector<256x128xbf16>, vector<128x128xbf16>, vector<256x128xf32> -> vector<256x128xf32>
    %c1_29 = arith.constant 1 : index
    %c0_30 = arith.constant 0 : index
    %c0_31 = arith.constant 0 : index
    %51 = vector.load %arg3[%c1_29, %c0_30, %c0_31] : memref<2x27x128xbf16, #tpu.memory_space<vmem>>, vector<1x27x128xbf16>
    %52 = vector.shape_cast %51 : vector<1x27x128xbf16> to vector<27x128xbf16>
    %cst_32 = arith.constant dense<0.000000e+00> : vector<256x128xf32>
    %53 = tpu.matmul %0, %52, %cst_32 {dimension_numbers = #tpu.dot_dimension_numbers<[1], [0], [0], [1], [0, 0, 1, 1], [], []>} : vector<256x27xbf16>, vector<27x128xbf16>, vector<256x128xf32> -> vector<256x128xf32>
    %54 = arith.addf %50, %53 : vector<256x128xf32>
    %55 = vector.extract_strided_slice %2 {offsets = [5, 0], sizes = [1, 128], strides = [1, 1]} : vector<9x128xf32> to vector<1x128xf32>
    %56 = vector.broadcast %55 : vector<1x128xf32> to vector<256x128xf32>
    %57 = arith.addf %54, %56 : vector<256x128xf32>
    %cst_33 = arith.constant 0.000000e+00 : f32
    %58 = vector.broadcast %cst_33 : f32 to vector<256x128xf32>
    %59 = arith.maximumf %57, %58 : vector<256x128xf32>
    %60 = arith.truncf %59 : vector<256x128xf32> to vector<256x128xbf16>
    %c5 = arith.constant 5 : index
    %c0_34 = arith.constant 0 : index
    %c0_35 = arith.constant 0 : index
    %61 = vector.load %arg4[%c5, %c0_34, %c0_35] : memref<8x128x128xbf16, #tpu.memory_space<vmem>>, vector<1x128x128xbf16>
    %62 = vector.shape_cast %61 : vector<1x128x128xbf16> to vector<128x128xbf16>
    %cst_36 = arith.constant dense<0.000000e+00> : vector<256x128xf32>
    %63 = tpu.matmul %60, %62, %cst_36 {dimension_numbers = #tpu.dot_dimension_numbers<[1], [0], [0], [1], [0, 0, 1, 1], [], []>} : vector<256x128xbf16>, vector<128x128xbf16>, vector<256x128xf32> -> vector<256x128xf32>
    %64 = vector.extract_strided_slice %2 {offsets = [6, 0], sizes = [1, 128], strides = [1, 1]} : vector<9x128xf32> to vector<1x128xf32>
    %65 = vector.broadcast %64 : vector<1x128xf32> to vector<256x128xf32>
    %66 = arith.addf %63, %65 : vector<256x128xf32>
    %cst_37 = arith.constant 0.000000e+00 : f32
    %67 = vector.broadcast %cst_37 : f32 to vector<256x128xf32>
    %68 = arith.maximumf %66, %67 : vector<256x128xf32>
    %69 = arith.truncf %68 : vector<256x128xf32> to vector<256x128xbf16>
    %c6 = arith.constant 6 : index
    %c0_38 = arith.constant 0 : index
    %c0_39 = arith.constant 0 : index
    %70 = vector.load %arg4[%c6, %c0_38, %c0_39] : memref<8x128x128xbf16, #tpu.memory_space<vmem>>, vector<1x128x128xbf16>
    %71 = vector.shape_cast %70 : vector<1x128x128xbf16> to vector<128x128xbf16>
    %cst_40 = arith.constant dense<0.000000e+00> : vector<256x128xf32>
    %72 = tpu.matmul %69, %71, %cst_40 {dimension_numbers = #tpu.dot_dimension_numbers<[1], [0], [0], [1], [0, 0, 1, 1], [], []>} : vector<256x128xbf16>, vector<128x128xbf16>, vector<256x128xf32> -> vector<256x128xf32>
    %73 = vector.extract_strided_slice %2 {offsets = [7, 0], sizes = [1, 128], strides = [1, 1]} : vector<9x128xf32> to vector<1x128xf32>
    %74 = vector.broadcast %73 : vector<1x128xf32> to vector<256x128xf32>
    %75 = arith.addf %72, %74 : vector<256x128xf32>
    %cst_41 = arith.constant 0.000000e+00 : f32
    %76 = vector.broadcast %cst_41 : f32 to vector<256x128xf32>
    %77 = arith.maximumf %75, %76 : vector<256x128xf32>
    %78 = arith.truncf %77 : vector<256x128xf32> to vector<256x128xbf16>
    %c0_42 = arith.constant 0 : index
    %c0_43 = arith.constant 0 : index
    %79 = vector.load %arg5[%c0_42, %c0_43] : memref<128x132xbf16, #tpu.memory_space<vmem>>, vector<128x132xbf16>
    %cst_44 = arith.constant dense<0.000000e+00> : vector<256x132xf32>
    %80 = tpu.matmul %78, %79, %cst_44 {dimension_numbers = #tpu.dot_dimension_numbers<[1], [0], [0], [1], [0, 0, 1, 1], [], []>} : vector<256x128xbf16>, vector<128x132xbf16>, vector<256x132xf32> -> vector<256x132xf32>
    %c0_45 = arith.constant 0 : index
    %c0_46 = arith.constant 0 : index
    %81 = vector.load %arg9[%c0_45, %c0_46] : memref<1x132xf32, #tpu.memory_space<vmem>>, vector<1x132xf32>
    %82 = vector.broadcast %81 : vector<1x132xf32> to vector<256x132xf32>
    %83 = arith.addf %80, %82 : vector<256x132xf32>
    %84 = vector.extract_strided_slice %83 {offsets = [0, 0], sizes = [256, 128], strides = [1, 1]} : vector<256x132xf32> to vector<256x128xf32>
    %85 = vector.extract_strided_slice %83 {offsets = [0, 128], sizes = [256, 1], strides = [1, 1]} : vector<256x132xf32> to vector<256x1xf32>
    %86 = vector.extract_strided_slice %83 {offsets = [0, 129], sizes = [256, 3], strides = [1, 1]} : vector<256x132xf32> to vector<256x3xf32>
    %87 = arith.mulf %86, %86 : vector<256x3xf32>
    %cst_47 = arith.constant dense<0.000000e+00> : vector<256xf32>
    %88 = vector.multi_reduction <add>, %87, %cst_47 [1] : vector<256x3xf32> to vector<256xf32>
    %89 = vector.shape_cast %88 : vector<256xf32> to vector<256x1xf32>
    %cst_48 = arith.constant 1.000000e-10 : f32
    %90 = vector.broadcast %cst_48 : f32 to vector<256x1xf32>
    %91 = arith.maximumf %89, %90 : vector<256x1xf32>
    %92 = math.rsqrt %91 : vector<256x1xf32>
    %cst_49 = arith.constant 0.000000e+00 : f32
    %93 = vector.broadcast %cst_49 : f32 to vector<256x3xf32>
    %94 = arith.subf %93, %86 : vector<256x3xf32>
    %95 = vector.broadcast %92 : vector<256x1xf32> to vector<256x3xf32>
    %96 = arith.mulf %94, %95 : vector<256x3xf32>
    %97 = arith.truncf %84 : vector<256x128xf32> to vector<256x128xbf16>
    %c7 = arith.constant 7 : index
    %c0_50 = arith.constant 0 : index
    %c0_51 = arith.constant 0 : index
    %98 = vector.load %arg4[%c7, %c0_50, %c0_51] : memref<8x128x128xbf16, #tpu.memory_space<vmem>>, vector<1x128x128xbf16>
    %99 = vector.shape_cast %98 : vector<1x128x128xbf16> to vector<128x128xbf16>
    %cst_52 = arith.constant dense<0.000000e+00> : vector<256x128xf32>
    %100 = tpu.matmul %97, %99, %cst_52 {dimension_numbers = #tpu.dot_dimension_numbers<[1], [0], [0], [1], [0, 0, 1, 1], [], []>} : vector<256x128xbf16>, vector<128x128xbf16>, vector<256x128xf32> -> vector<256x128xf32>
    %c0_53 = arith.constant 0 : index
    %c0_54 = arith.constant 0 : index
    %101 = vector.load %arg6[%c0_53, %c0_54] : memref<15x128xbf16, #tpu.memory_space<vmem>>, vector<15x128xbf16>
    %cst_55 = arith.constant dense<0.000000e+00> : vector<256x128xf32>
    %102 = tpu.matmul %1, %101, %cst_55 {dimension_numbers = #tpu.dot_dimension_numbers<[1], [0], [0], [1], [0, 0, 1, 1], [], []>} : vector<256x15xbf16>, vector<15x128xbf16>, vector<256x128xf32> -> vector<256x128xf32>
    %103 = arith.addf %100, %102 : vector<256x128xf32>
    %104 = vector.extract_strided_slice %2 {offsets = [8, 0], sizes = [1, 128], strides = [1, 1]} : vector<9x128xf32> to vector<1x128xf32>
    %105 = vector.broadcast %104 : vector<1x128xf32> to vector<256x128xf32>
    %106 = arith.addf %103, %105 : vector<256x128xf32>
    %cst_56 = arith.constant 0.000000e+00 : f32
    %107 = vector.broadcast %cst_56 : f32 to vector<256x128xf32>
    %108 = arith.maximumf %106, %107 : vector<256x128xf32>
    %109 = arith.truncf %108 : vector<256x128xf32> to vector<256x128xbf16>
    %c0_57 = arith.constant 0 : index
    %c0_58 = arith.constant 0 : index
    %110 = vector.load %arg7[%c0_57, %c0_58] : memref<128x3xbf16, #tpu.memory_space<vmem>>, vector<128x3xbf16>
    %cst_59 = arith.constant dense<0.000000e+00> : vector<256x3xf32>
    %111 = tpu.matmul %109, %110, %cst_59 {dimension_numbers = #tpu.dot_dimension_numbers<[1], [0], [0], [1], [0, 0, 1, 1], [], []>} : vector<256x128xbf16>, vector<128x3xbf16>, vector<256x3xf32> -> vector<256x3xf32>
    %c0_60 = arith.constant 0 : index
    %c0_61 = arith.constant 0 : index
    %112 = vector.load %arg10[%c0_60, %c0_61] : memref<1x3xf32, #tpu.memory_space<vmem>>, vector<1x3xf32>
    %113 = vector.broadcast %112 : vector<1x3xf32> to vector<256x3xf32>
    %114 = arith.addf %111, %113 : vector<256x3xf32>
    %cst_62 = arith.constant 0.000000e+00 : f32
    %115 = vector.broadcast %cst_62 : f32 to vector<256x1xf32>
    %116 = arith.maximumf %85, %115 : vector<256x1xf32>
    %117 = arith.negf %114 : vector<256x3xf32>
    %118 = math.exp %117 : vector<256x3xf32>
    %cst_63 = arith.constant 1.000000e+00 : f32
    %119 = vector.broadcast %cst_63 : f32 to vector<256x3xf32>
    %120 = arith.addf %119, %118 : vector<256x3xf32>
    %121 = arith.divf %119, %120 : vector<256x3xf32>
    %cst_64 = arith.constant 0.000000e+00 : f32
    %122 = vector.broadcast %cst_64 : f32 to vector<256x1xf32>
    %123 = tpu.concatenate %116, %96, %121, %122 in 1 : vector<256x1xf32>, vector<256x3xf32>, vector<256x3xf32>, vector<256x1xf32> -> vector<256x8xf32>
    %c0_65 = arith.constant 0 : index
    %c0_66 = arith.constant 0 : index
    %124 = vector.load %arg11[%c0_65, %c0_66] : memref<256x8xf32, #tpu.memory_space<vmem>>, vector<256x8xf32>
    tpu.vector_store %arg11[%c0_65, %c0_66], %123 {strides = array<i32>} : memref<256x8xf32, #tpu.memory_space<vmem>>, vector<256x8xf32>,
    return
  }
  func.func @transform_0(%arg0: i32) -> (i32, i32) {
    %c0_i32 = arith.constant 0 : i32
    %c0_i32_0 = arith.constant 0 : i32
    return %arg0, %c0_i32 : i32, i32
  }
  func.func @transform_1(%arg0: i32) -> (i32, i32) {
    %c0_i32 = arith.constant 0 : i32
    %c0_i32_0 = arith.constant 0 : i32
    return %arg0, %c0_i32 : i32, i32
  }
  func.func @transform_2(%arg0: i32) -> (i32, i32, i32) {
    %c0_i32 = arith.constant 0 : i32
    %c0_i32_0 = arith.constant 0 : i32
    %c0_i32_1 = arith.constant 0 : i32
    %c0_i32_2 = arith.constant 0 : i32
    return %c0_i32, %c0_i32_0, %c0_i32_1 : i32, i32, i32
  }
  func.func @transform_3(%arg0: i32) -> (i32, i32, i32) {
    %c0_i32 = arith.constant 0 : i32
    %c0_i32_0 = arith.constant 0 : i32
    %c0_i32_1 = arith.constant 0 : i32
    %c0_i32_2 = arith.constant 0 : i32
    return %c0_i32, %c0_i32_0, %c0_i32_1 : i32, i32, i32
  }
  func.func @transform_4(%arg0: i32) -> (i32, i32) {
    %c0_i32 = arith.constant 0 : i32
    %c0_i32_0 = arith.constant 0 : i32
    %c0_i32_1 = arith.constant 0 : i32
    return %c0_i32, %c0_i32_0 : i32, i32
  }
  func.func @transform_5(%arg0: i32) -> (i32, i32) {
    %c0_i32 = arith.constant 0 : i32
    %c0_i32_0 = arith.constant 0 : i32
    %c0_i32_1 = arith.constant 0 : i32
    return %c0_i32, %c0_i32_0 : i32, i32
  }
  func.func @transform_6(%arg0: i32) -> (i32, i32) {
    %c0_i32 = arith.constant 0 : i32
    %c0_i32_0 = arith.constant 0 : i32
    %c0_i32_1 = arith.constant 0 : i32
    return %c0_i32, %c0_i32_0 : i32, i32
  }
  func.func @transform_7(%arg0: i32) -> (i32, i32) {
    %c0_i32 = arith.constant 0 : i32
    %c0_i32_0 = arith.constant 0 : i32
    %c0_i32_1 = arith.constant 0 : i32
    return %c0_i32, %c0_i32_0 : i32, i32
  }
  func.func @transform_8(%arg0: i32) -> (i32, i32) {
    %c0_i32 = arith.constant 0 : i32
    %c0_i32_0 = arith.constant 0 : i32
    %c0_i32_1 = arith.constant 0 : i32
    return %c0_i32, %c0_i32_0 : i32, i32
  }
  func.func @transform_9(%arg0: i32) -> (i32, i32) {
    %c0_i32 = arith.constant 0 : i32
    %c0_i32_0 = arith.constant 0 : i32
    %c0_i32_1 = arith.constant 0 : i32
    return %c0_i32, %c0_i32_0 : i32, i32
  }
  func.func @transform_10(%arg0: i32) -> (i32, i32) {
    %c0_i32 = arith.constant 0 : i32
    %c0_i32_0 = arith.constant 0 : i32
    return %arg0, %c0_i32 : i32, i32
  }
}

</mosaic_0001>

<llo_original>
// kernel: tpu_custom_call.1
$region0: #{tpu_custom_call.1}
  #allocation0 [shape = 'u32[]', space=smem, size = 0x4, offset = 0x4, fixed_abs, tag = 'smem constant byte address 0x4 - core index']
  #allocation1 [shape = 'u32[144,128]{1,0:T(1,128)}', space=vmem, size = 0x12000, scoped, tag = 'internal scratch']
  %s0 = inlined_call_operand.vmem [shape: bf16[256,27], index: 0, kind: input, shape index: {}]
  %s1 = inlined_call_operand.vmem [shape: bf16[256,15], index: 1, kind: input, shape index: {}]
  %s2 = inlined_call_operand.vmem [shape: bf16[2,27,128], index: 2, kind: input, shape index: {}]
  %s3 = inlined_call_operand.vmem [shape: bf16[8,128,128], index: 3, kind: input, shape index: {}]
  %s4 = inlined_call_operand.vmem [shape: bf16[128,132], index: 4, kind: input, shape index: {}]
  %s5 = inlined_call_operand.vmem [shape: bf16[15,128], index: 5, kind: input, shape index: {}]
  %s6 = inlined_call_operand.vmem [shape: bf16[128,3], index: 6, kind: input, shape index: {}]
  %s7 = inlined_call_operand.vmem [shape: f32[9,128], index: 7, kind: input, shape index: {}]
  %s8 = inlined_call_operand.vmem [shape: f32[1,132], index: 8, kind: input, shape index: {}]
  %s9 = inlined_call_operand.vmem [shape: f32[1,3], index: 9, kind: input, shape index: {}]
  %s10 = inlined_call_operand.vmem [shape: f32[256,8], index: 10, kind: output, shape index: {}]
  %s11 = sld [smem:[#allocation0]]
  $region50: #{tpu_custom_call.1} parent=0
    _
  %s13 = ssub.s32 1, %s11
  %s14 = scalar_select 0, %s13, %s11
  // Predicated region
  $region2: #{tpu_custom_call.1} parent=0 // pred_check
    _
  $region3: #{tpu_custom_call.1} parent=0 // pred_check_branch
    %16 = sbr.rel (0) target = $region5
  $region4: #{tpu_custom_call.1} parent=0 // pred_region
    _
  $region5: #{tpu_custom_call.1} parent=0 // pred_fallthru
    _
  // Predicated region
  $region6: #{tpu_custom_call.1} parent=0 // pred_check
    _
  $region7: #{tpu_custom_call.1} parent=0 // pred_check_branch
    %18 = sbr.rel (0) target = $region9
  $region8: #{tpu_custom_call.1} parent=0 // pred_region
    _
  $region9: #{tpu_custom_call.1} parent=0 // pred_fallthru
    _
  // Predicated region
  $region10: #{tpu_custom_call.1} parent=0 // pred_check
    _
  $region11: #{tpu_custom_call.1} parent=0 // pred_check_branch
    %20 = sbr.rel (0) target = $region13
  $region12: #{tpu_custom_call.1} parent=0 // pred_region
    _
  $region13: #{tpu_custom_call.1} parent=0 // pred_fallthru
    _
  // Predicated region
  $region14: #{tpu_custom_call.1} parent=0 // pred_check
    _
  $region15: #{tpu_custom_call.1} parent=0 // pred_check_branch
    %22 = sbr.rel (0) target = $region17
  $region16: #{tpu_custom_call.1} parent=0 // pred_region
    _
  $region17: #{tpu_custom_call.1} parent=0 // pred_fallthru
    _
  // Predicated region
  $region18: #{tpu_custom_call.1} parent=0 // pred_check
    _
  $region19: #{tpu_custom_call.1} parent=0 // pred_check_branch
    %24 = sbr.rel (0) target = $region21
  $region20: #{tpu_custom_call.1} parent=0 // pred_region
    _
  $region21: #{tpu_custom_call.1} parent=0 // pred_fallthru
    _
  // Predicated region
  $region22: #{tpu_custom_call.1} parent=0 // pred_check
    _
  $region23: #{tpu_custom_call.1} parent=0 // pred_check_branch
    %26 = sbr.rel (0) target = $region25
  $region24: #{tpu_custom_call.1} parent=0 // pred_region
    _
  $region25: #{tpu_custom_call.1} parent=0 // pred_fallthru
    _
  // Predicated region
  $region26: #{tpu_custom_call.1} parent=0 // pred_check
    _
  $region27: #{tpu_custom_call.1} parent=0 // pred_check_branch
    %28 = sbr.rel (0) target = $region29
  $region28: #{tpu_custom_call.1} parent=0 // pred_region
    _
  $region29: #{tpu_custom_call.1} parent=0 // pred_fallthru
    _
  // Predicated region
  $region30: #{tpu_custom_call.1} parent=0 // pred_check
    _
  $region31: #{tpu_custom_call.1} parent=0 // pred_check_branch
    %30 = sbr.rel (0) target = $region33
  $region32: #{tpu_custom_call.1} parent=0 // pred_region
    _
  $region33: #{tpu_custom_call.1} parent=0 // pred_fallthru
    _
  // Predicated region
  $region34: #{tpu_custom_call.1} parent=0 // pred_check
    _
  $region35: #{tpu_custom_call.1} parent=0 // pred_check_branch
    %32 = sbr.rel (0) target = $region37
  $region36: #{tpu_custom_call.1} parent=0 // pred_region
    _
  $region37: #{tpu_custom_call.1} parent=0 // pred_fallthru
    _
  // Predicated region
  $region38: #{tpu_custom_call.1} parent=0 // pred_check
    _
  $region39: #{tpu_custom_call.1} parent=0 // pred_check_branch
    %34 = sbr.rel (0) target = $region41
  $region40: #{tpu_custom_call.1} parent=0 // pred_region
    _
  $region41: #{tpu_custom_call.1} parent=0 // pred_fallthru
    _
  %v36 = vld [vmem:[%s0] sm:$0xf]
  %v37 = vld [vmem:[%s0 + $0x4] sm:$0xf]
  %v38 = vld [vmem:[%s0 + $0x8] sm:$0xf]
  %v39 = vld [vmem:[%s0 + $0xc] sm:$0xf]
  %v40 = vld [vmem:[%s0 + $0x10] sm:$0xf]
  %v41 = vld [vmem:[%s0 + $0x14] sm:$0xf]
  %v42 = vld [vmem:[%s0 + $0x18] sm:$0xf]
  %v43 = vld [vmem:[%s0 + $0x1c] sm:$0xf]
  %v44 = vld [vmem:[%s0 + $0x20] sm:$0xf]
  %v45 = vld [vmem:[%s0 + $0x24] sm:$0xf]
  %v46 = vld [vmem:[%s0 + $0x28] sm:$0xf]
  %v47 = vld [vmem:[%s0 + $0x2c] sm:$0xf]
  %v48 = vld [vmem:[%s0 + $0x30] sm:$0xf]
  %v49 = vld [vmem:[%s0 + $0x34] sm:$0xf]
  %v50 = vld [vmem:[%s0 + $0x38] sm:$0xf]
  %v51 = vld [vmem:[%s0 + $0x3c] sm:$0xf]
  %v52 = vld [vmem:[%s0 + $0x40] sm:$0xf]
  %v53 = vld [vmem:[%s0 + $0x44] sm:$0xf]
  %v54 = vld [vmem:[%s0 + $0x48] sm:$0xf]
  %v55 = vld [vmem:[%s0 + $0x4c] sm:$0xf]
  %v56 = vld [vmem:[%s0 + $0x50] sm:$0xf]
  %v57 = vld [vmem:[%s0 + $0x54] sm:$0xf]
  %v58 = vld [vmem:[%s0 + $0x58] sm:$0xf]
  %v59 = vld [vmem:[%s0 + $0x5c] sm:$0xf]
  %v60 = vld [vmem:[%s0 + $0x60] sm:$0xf]
  %v61 = vld [vmem:[%s0 + $0x64] sm:$0xf]
  %v62 = vld [vmem:[%s0 + $0x68] sm:$0xf]
  %v63 = vld [vmem:[%s0 + $0x6c] sm:$0xf]
  %v64 = vld [vmem:[%s0 + $0x70] sm:$0xf]
  %v65 = vld [vmem:[%s0 + $0x74] sm:$0xf]
  %v66 = vld [vmem:[%s0 + $0x78] sm:$0xf]
  %v67 = vld [vmem:[%s0 + $0x7c] sm:$0xf]
  %v68 = vld [vmem:[%s1] sm:$0xf]
  %v69 = vld [vmem:[%s1 + $0x4] sm:$0xf]
  %v70 = vld [vmem:[%s1 + $0x8] sm:$0xf]
  %v71 = vld [vmem:[%s1 + $0xc] sm:$0xf]
  %v72 = vld [vmem:[%s1 + $0x10] sm:$0xf]
  %v73 = vld [vmem:[%s1 + $0x14] sm:$0xf]
  %v74 = vld [vmem:[%s1 + $0x18] sm:$0xf]
  %v75 = vld [vmem:[%s1 + $0x1c] sm:$0xf]
  %v76 = vld [vmem:[%s1 + $0x20] sm:$0xf]
  %v77 = vld [vmem:[%s1 + $0x24] sm:$0xf]
  %v78 = vld [vmem:[%s1 + $0x28] sm:$0xf]
  %v79 = vld [vmem:[%s1 + $0x2c] sm:$0xf]
  %v80 = vld [vmem:[%s1 + $0x30] sm:$0xf]
  %v81 = vld [vmem:[%s1 + $0x34] sm:$0xf]
  %v82 = vld [vmem:[%s1 + $0x38] sm:$0xf]
  %v83 = vld [vmem:[%s1 + $0x3c] sm:$0xf]
  %v84 = vld [vmem:[%s1 + $0x40] sm:$0xf]
  %v85 = vld [vmem:[%s1 + $0x44] sm:$0xf]
  %v86 = vld [vmem:[%s1 + $0x48] sm:$0xf]
  %v87 = vld [vmem:[%s1 + $0x4c] sm:$0xf]
  %v88 = vld [vmem:[%s1 + $0x50] sm:$0xf]
  %v89 = vld [vmem:[%s1 + $0x54] sm:$0xf]
  %v90 = vld [vmem:[%s1 + $0x58] sm:$0xf]
  %v91 = vld [vmem:[%s1 + $0x5c] sm:$0xf]
  %v92 = vld [vmem:[%s1 + $0x60] sm:$0xf]
  %v93 = vld [vmem:[%s1 + $0x64] sm:$0xf]
  %v94 = vld [vmem:[%s1 + $0x68] sm:$0xf]
  %v95 = vld [vmem:[%s1 + $0x6c] sm:$0xf]
  %v96 = vld [vmem:[%s1 + $0x70] sm:$0xf]
  %v97 = vld [vmem:[%s1 + $0x74] sm:$0xf]
  %v98 = vld [vmem:[%s1 + $0x78] sm:$0xf]
  %v99 = vld [vmem:[%s1 + $0x7c] sm:$0xf]
  %v100 = vld [vmem:[%s7] sm:$0xff]
  %v101 = vld [vmem:[%s7 + $0x8] sm:$0x1]
  %v102 = vld [vmem:[%s2] sm:$0xf]
  %v103 = vld [vmem:[%s2 + $0x4] sm:$0xf]
  %v104 = vld [vmem:[%s2 + $0x8] sm:$0xf]
  %v105 = vld [vmem:[%s2 + $0xc] sm:$0x3]
  %v106 = vlaneseq
  %v107 = vshrl.u32 %v106, 7
  %v108 = vsub.s32 0, %v107
  %v109 = vrot.slane %v100, %v108
  %v142 = vunpack.c.l.b16 %v36
  %v143 = vunpack.c.l.b16 %v37
  %v144 = vunpack.c.l.b16 %v38
  %v145 = vunpack.c.l.b16 %v39
  %v146 = vunpack.c.l.b16 %v40
  %v147 = vunpack.c.l.b16 %v41
  %v148 = vunpack.c.l.b16 %v42
  %v149 = vunpack.c.l.b16 %v43
  %v150 = vunpack.c.l.b16 %v44
  %v151 = vunpack.c.l.b16 %v45
  %v152 = vunpack.c.l.b16 %v46
  %v153 = vunpack.c.l.b16 %v47
  %v154 = vunpack.c.l.b16 %v48
  %v155 = vunpack.c.l.b16 %v49
  %v156 = vunpack.c.l.b16 %v50
  %v157 = vunpack.c.l.b16 %v51
  %v158 = vunpack.c.l.b16 %v52
  %v159 = vunpack.c.l.b16 %v53
  %v160 = vunpack.c.l.b16 %v54
  %v161 = vunpack.c.l.b16 %v55
  %v162 = vunpack.c.l.b16 %v56
  %v163 = vunpack.c.l.b16 %v57
  %v164 = vunpack.c.l.b16 %v58
  %v165 = vunpack.c.l.b16 %v59
  %v166 = vunpack.c.l.b16 %v60
  %v167 = vunpack.c.l.b16 %v61
  %v168 = vunpack.c.l.b16 %v62
  %v169 = vunpack.c.l.b16 %v63
  %v170 = vunpack.c.l.b16 %v64
  %v171 = vunpack.c.l.b16 %v65
  %v172 = vunpack.c.l.b16 %v66
  %v173 = vunpack.c.l.b16 %v67
  %v174 = vpack.c.b16 %v143, %v142
  %v175 = vpack.c.b16 %v145, %v144
  %v176 = vpack.c.b16 %v147, %v146
  %v177 = vpack.c.b16 %v149, %v148
  %v178 = vpack.c.b16 %v151, %v150
  %v179 = vpack.c.b16 %v153, %v152
  %v180 = vpack.c.b16 %v155, %v154
  %v181 = vpack.c.b16 %v157, %v156
  %v182 = vpack.c.b16 %v159, %v158
  %v183 = vpack.c.b16 %v161, %v160
  %v184 = vpack.c.b16 %v163, %v162
  %v185 = vpack.c.b16 %v165, %v164
  %v186 = vpack.c.b16 %v167, %v166
  %v187 = vpack.c.b16 %v169, %v168
  %v188 = vpack.c.b16 %v171, %v170
  %v189 = vpack.c.b16 %v173, %v172
  %v194 = vunpack.c.l.b16 %v102
  %v195 = vunpack.c.l.b16 %v103
  %v196 = vunpack.c.l.b16 %v104
  %v197 = vunpack.c.l.b16 %v105
  %v198 = vpack.c.b16 %v195, %v194
  %v199 = vpack.c.b16 %v197, %v196
  %vm201 = vcmask 220160
  %v203 = vsel %vm201, %v174, 0
  %v206 = vsel %vm201, %v175, 0
  %v209 = vsel %vm201, %v176, 0
  %v212 = vsel %vm201, %v177, 0
  %v215 = vsel %vm201, %v178, 0
  %v218 = vsel %vm201, %v179, 0
  %v221 = vsel %vm201, %v180, 0
  %v224 = vsel %vm201, %v181, 0
  %v227 = vsel %vm201, %v182, 0
  %v230 = vsel %vm201, %v183, 0
  %v233 = vsel %vm201, %v184, 0
  %v236 = vsel %vm201, %v185, 0
  %v239 = vsel %vm201, %v186, 0
  %v242 = vsel %vm201, %v187, 0
  %v245 = vsel %vm201, %v188, 0
  %v248 = vsel %vm201, %v189, 0
  %vm250 = vcmask 1044480
  %vm251 = vcmask 1045504
  %v252 = vsel %vm250, 4294967295, 65535
  %v253 = vsel %vm251, %v252, 0
  %v255 = vand.u32 %v199, %v253
  %257 = vmatprep.subr.bf16.mxu0 0
  %258 = vmatpush1.bf16.msra.mxu0 %v198
  %259 = vmatprep.subr.bf16.mxu0 0
  %260 = vmatpush1.bf16.msra.mxu0 %v255
  %261 = vmatprep.subr.bf16.mxu0 0
  %262 = vmatpush1.bf16.msra.mxu0 0
  %263 = vmatprep.subr.bf16.mxu0 0
  %264 = vmatpush1.bf16.msra.mxu0 0
  %265 = vmatprep.subr.bf16.mxu0 0
  %266 = vmatpush1.bf16.msra.mxu0 0
  %267 = vmatprep.subr.bf16.mxu0 0
  %268 = vmatpush1.bf16.msra.mxu0 0
  %269 = vmatprep.subr.bf16.mxu0 0
  %270 = vmatpush1.bf16.msra.mxu0 0
  %271 = vmatprep.subr.bf16.mxu0 0
  %272 = vmatpush1.bf16.msra.mxu0 0
  %273 = vmatprep.subr.bf16.mxu0 0
  %274 = vmatpush1.bf16.msra.mxu0 0
  %275 = vmatprep.subr.bf16.mxu0 0
  %276 = vmatpush1.bf16.msra.mxu0 0
  %277 = vmatprep.subr.bf16.mxu0 0
  %278 = vmatpush1.bf16.msra.mxu0 0
  %279 = vmatprep.subr.bf16.mxu0 0
  %280 = vmatpush1.bf16.msra.mxu0 0
  %281 = vmatprep.subr.bf16.mxu0 0
  %282 = vmatpush1.bf16.msra.mxu0 0
  %283 = vmatprep.subr.bf16.mxu0 0
  %284 = vmatpush1.bf16.msra.mxu0 0
  %285 = vmatprep.subr.bf16.mxu0 0
  %286 = vmatpush1.bf16.msra.mxu0 0
  %287 = vmatprep.subr.bf16.mxu0 0
  %288 = vmatpush1.bf16.msra.mxu0 0
  %289 = vmatprep.mubr.bf16.mxu0 0
  %290 = vmatmul.mubr.bf16.gmra.mrb[0].mxu0 %v203
  %v291 = vpop.f32.mrb[0].mxu0
  %v292 = vadd.f32 %v109, %v291
  %v293 = vpop.f32.mrb[0].mxu0
  %v294 = vpop.f32.mrb[0].mxu0
  %v295 = vadd.f32 %v109, %v294
  %v296 = vpop.f32.mrb[0].mxu0
  %297 = vmatprep.mubr.bf16.mxu0 0
  %298 = vmatmul.mubr.bf16.gmra.mrb[0].mxu0 %v206
  %v299 = vpop.f32.mrb[0].mxu0
  %v300 = vadd.f32 %v109, %v299
  %v301 = vpop.f32.mrb[0].mxu0
  %v302 = vpop.f32.mrb[0].mxu0
  %v303 = vadd.f32 %v109, %v302
  %v304 = vpop.f32.mrb[0].mxu0
  %305 = vmatprep.mubr.bf16.mxu0 0
  %306 = vmatmul.mubr.bf16.gmra.mrb[0].mxu0 %v209
  %v307 = vpop.f32.mrb[0].mxu0
  %v308 = vadd.f32 %v109, %v307
  %v309 = vpop.f32.mrb[0].mxu0
  %v310 = vpop.f32.mrb[0].mxu0
  %v311 = vadd.f32 %v109, %v310
  %v312 = vpop.f32.mrb[0].mxu0
  %313 = vmatprep.mubr.bf16.mxu0 0
  %314 = vmatmul.mubr.bf16.gmra.mrb[0].mxu0 %v212
  %v315 = vpop.f32.mrb[0].mxu0
  %v316 = vadd.f32 %v109, %v315
  %v317 = vpop.f32.mrb[0].mxu0
  %v318 = vpop.f32.mrb[0].mxu0
  %v319 = vadd.f32 %v109, %v318
  %v320 = vpop.f32.mrb[0].mxu0
  %321 = vmatprep.mubr.bf16.mxu0 0
  %322 = vmatmul.mubr.bf16.gmra.mrb[0].mxu0 %v215
  %v323 = vpop.f32.mrb[0].mxu0
  %v324 = vadd.f32 %v109, %v323
  %v325 = vpop.f32.mrb[0].mxu0
  %v326 = vpop.f32.mrb[0].mxu0
  %v327 = vadd.f32 %v109, %v326
  %v328 = vpop.f32.mrb[0].mxu0
  %329 = vmatprep.mubr.bf16.mxu0 0
  %330 = vmatmul.mubr.bf16.gmra.mrb[0].mxu0 %v218
  %v331 = vpop.f32.mrb[0].mxu0
  %v332 = vadd.f32 %v109, %v331
  %v333 = vpop.f32.mrb[0].mxu0
  %v334 = vpop.f32.mrb[0].mxu0
  %v335 = vadd.f32 %v109, %v334
  %v336 = vpop.f32.mrb[0].mxu0
  %337 = vmatprep.mubr.bf16.mxu0 0
  %338 = vmatmul.mubr.bf16.gmra.mrb[0].mxu0 %v221
  %v339 = vpop.f32.mrb[0].mxu0
  %v340 = vadd.f32 %v109, %v339
  %v341 = vpop.f32.mrb[0].mxu0
  %v342 = vpop.f32.mrb[0].mxu0
  %v343 = vadd.f32 %v109, %v342
  %v344 = vpop.f32.mrb[0].mxu0
  %345 = vmatprep.mubr.bf16.mxu0 0
  %346 = vmatmul.mubr.bf16.gmra.mrb[0].mxu0 %v224
  %v347 = vpop.f32.mrb[0].mxu0
  %v348 = vadd.f32 %v109, %v347
  %v349 = vpop.f32.mrb[0].mxu0
  %v350 = vpop.f32.mrb[0].mxu0
  %v351 = vadd.f32 %v109, %v350
  %v352 = vpop.f32.mrb[0].mxu0
  %353 = vmatprep.mubr.bf16.mxu0 0
  %354 = vmatmul.mubr.bf16.gmra.mrb[0].mxu0 %v227
  %v355 = vpop.f32.mrb[0].mxu0
  %v356 = vadd.f32 %v109, %v355
  %v357 = vpop.f32.mrb[0].mxu0
  %v358 = vpop.f32.mrb[0].mxu0
  %v359 = vadd.f32 %v109, %v358
  %v360 = vpop.f32.mrb[0].mxu0
  %361 = vmatprep.mubr.bf16.mxu0 0
  %362 = vmatmul.mubr.bf16.gmra.mrb[0].mxu0 %v230
  %v363 = vpop.f32.mrb[0].mxu0
  %v364 = vadd.f32 %v109, %v363
  %v365 = vpop.f32.mrb[0].mxu0
  %v366 = vpop.f32.mrb[0].mxu0
  %v367 = vadd.f32 %v109, %v366
  %v368 = vpop.f32.mrb[0].mxu0
  %369 = vmatprep.mubr.bf16.mxu0 0
  %370 = vmatmul.mubr.bf16.gmra.mrb[0].mxu0 %v233
  %v371 = vpop.f32.mrb[0].mxu0
  %v372 = vadd.f32 %v109, %v371
  %v373 = vpop.f32.mrb[0].mxu0
  %v374 = vpop.f32.mrb[0].mxu0
  %v375 = vadd.f32 %v109, %v374
  %v376 = vpop.f32.mrb[0].mxu0
  %377 = vmatprep.mubr.bf16.mxu0 0
  %378 = vmatmul.mubr.bf16.gmra.mrb[0].mxu0 %v236
  %v379 = vpop.f32.mrb[0].mxu0
  %v380 = vadd.f32 %v109, %v379
  %v381 = vpop.f32.mrb[0].mxu0
  %v382 = vpop.f32.mrb[0].mxu0
  %v383 = vadd.f32 %v109, %v382
  %v384 = vpop.f32.mrb[0].mxu0
  %385 = vmatprep.mubr.bf16.mxu0 0
  %386 = vmatmul.mubr.bf16.gmra.mrb[0].mxu0 %v239
  %v387 = vpop.f32.mrb[0].mxu0
  %v388 = vadd.f32 %v109, %v387
  %v389 = vpop.f32.mrb[0].mxu0
  %v390 = vpop.f32.mrb[0].mxu0
  %v391 = vadd.f32 %v109, %v390
  %v392 = vpop.f32.mrb[0].mxu0
  %393 = vmatprep.mubr.bf16.mxu0 0
  %394 = vmatmul.mubr.bf16.gmra.mrb[0].mxu0 %v242
  %v395 = vpop.f32.mrb[0].mxu0
  %v396 = vadd.f32 %v109, %v395
  %v397 = vpop.f32.mrb[0].mxu0
  %v398 = vpop.f32.mrb[0].mxu0
  %v399 = vadd.f32 %v109, %v398
  %v400 = vpop.f32.mrb[0].mxu0
  %401 = vmatprep.mubr.bf16.mxu0 0
  %402 = vmatmul.mubr.bf16.gmra.mrb[0].mxu0 %v245
  %v403 = vpop.f32.mrb[0].mxu0
  %v404 = vadd.f32 %v109, %v403
  %v405 = vpop.f32.mrb[0].mxu0
  %v406 = vpop.f32.mrb[0].mxu0
  %v407 = vadd.f32 %v109, %v406
  %v408 = vpop.f32.mrb[0].mxu0
  %409 = vmatprep.mubr.bf16.mxu0 0
  %410 = vmatmul.mubr.bf16.gmra.mrb[0].mxu0 %v248
  %v411 = vpop.f32.mrb[0].mxu0
  %v412 = vadd.f32 %v109, %v411
  %v413 = vpop.f32.mrb[0].mxu0
  %v414 = vpop.f32.mrb[0].mxu0
  %v415 = vadd.f32 %v109, %v414
  %v416 = vpop.f32.mrb[0].mxu0
  %417 = vdwg.mxu0
  %v418 = vmax.f32 %v292, 0.0
  %v419 = vmax.f32 %v295, 0.0
  %v420 = vmax.f32 %v300, 0.0
  %v421 = vmax.f32 %v303, 0.0
  %v422 = vmax.f32 %v308, 0.0
  %v423 = vmax.f32 %v311, 0.0
  %v424 = vmax.f32 %v316, 0.0
  %v425 = vmax.f32 %v319, 0.0
  %v426 = vmax.f32 %v324, 0.0
  %v427 = vmax.f32 %v327, 0.0
  %v428 = vmax.f32 %v332, 0.0
  %v429 = vmax.f32 %v335, 0.0
  %v430 = vmax.f32 %v340, 0.0
  %v431 = vmax.f32 %v343, 0.0
  %v432 = vmax.f32 %v348, 0.0
  %v433 = vmax.f32 %v351, 0.0
  %v434 = vmax.f32 %v356, 0.0
  %v435 = vmax.f32 %v359, 0.0
  %v436 = vmax.f32 %v364, 0.0
  %v437 = vmax.f32 %v367, 0.0
  %v438 = vmax.f32 %v372, 0.0
  %v439 = vmax.f32 %v375, 0.0
  %v440 = vmax.f32 %v380, 0.0
  %v441 = vmax.f32 %v383, 0.0
  %v442 = vmax.f32 %v388, 0.0
  %v443 = vmax.f32 %v391, 0.0
  %v444 = vmax.f32 %v396, 0.0
  %v445 = vmax.f32 %v399, 0.0
  %v446 = vmax.f32 %v404, 0.0
  %v447 = vmax.f32 %v407, 0.0
  %v448 = vmax.f32 %v412, 0.0
  %v449 = vmax.f32 %v415, 0.0
  %v450 = vpack.c.bf16 %v419, %v418
  %v451 = vpack.c.bf16 %v421, %v420
  %v452 = vpack.c.bf16 %v423, %v422
  %v453 = vpack.c.bf16 %v425, %v424
  %v454 = vpack.c.bf16 %v427, %v426
  %v455 = vpack.c.bf16 %v429, %v428
  %v456 = vpack.c.bf16 %v431, %v430
  %v457 = vpack.c.bf16 %v433, %v432
  %v458 = vpack.c.bf16 %v435, %v434
  %v459 = vpack.c.bf16 %v437, %v436
  %v460 = vpack.c.bf16 %v439, %v438
  %v461 = vpack.c.bf16 %v441, %v440
  %v462 = vpack.c.bf16 %v443, %v442
  %v463 = vpack.c.bf16 %v445, %v444
  %v464 = vpack.c.bf16 %v447, %v446
  %v465 = vpack.c.bf16 %v449, %v448
  %v466 = vld [vmem:[%s3] sm:$0xf]
  %v467 = vld [vmem:[%s3 + $0x4] sm:$0xf]
  %v468 = vld [vmem:[%s3 + $0x8] sm:$0xf]
  %v469 = vld [vmem:[%s3 + $0xc] sm:$0xf]
  %v470 = vld [vmem:[%s3 + $0x10] sm:$0xf]
  %v471 = vld [vmem:[%s3 + $0x14] sm:$0xf]
  %v472 = vld [vmem:[%s3 + $0x18] sm:$0xf]
  %v473 = vld [vmem:[%s3 + $0x1c] sm:$0xf]
  %v474 = vld [vmem:[%s3 + $0x20] sm:$0xf]
  %v475 = vld [vmem:[%s3 + $0x24] sm:$0xf]
  %v476 = vld [vmem:[%s3 + $0x28] sm:$0xf]
  %v477 = vld [vmem:[%s3 + $0x2c] sm:$0xf]
  %v478 = vld [vmem:[%s3 + $0x30] sm:$0xf]
  %v479 = vld [vmem:[%s3 + $0x34] sm:$0xf]
  %v480 = vld [vmem:[%s3 + $0x38] sm:$0xf]
  %v481 = vld [vmem:[%s3 + $0x3c] sm:$0xf]
  %v482 = vlaneseq
  %v483 = vshrl.u32 %v482, 7
  %v484 = vsub.s32 1, %v483
  %v485 = vrot.slane %v100, %v484
  %v502 = vunpack.c.l.b16 %v466
  %v503 = vunpack.c.l.b16 %v467
  %v504 = vunpack.c.l.b16 %v468
  %v505 = vunpack.c.l.b16 %v469
  %v506 = vunpack.c.l.b16 %v470
  %v507 = vunpack.c.l.b16 %v471
  %v508 = vunpack.c.l.b16 %v472
  %v509 = vunpack.c.l.b16 %v473
  %v510 = vunpack.c.l.b16 %v474
  %v511 = vunpack.c.l.b16 %v475
  %v512 = vunpack.c.l.b16 %v476
  %v513 = vunpack.c.l.b16 %v477
  %v514 = vunpack.c.l.b16 %v478
  %v515 = vunpack.c.l.b16 %v479
  %v516 = vunpack.c.l.b16 %v480
  %v517 = vunpack.c.l.b16 %v481
  %v518 = vpack.c.b16 %v503, %v502
  %v519 = vpack.c.b16 %v505, %v504
  %v520 = vpack.c.b16 %v507, %v506
  %v521 = vpack.c.b16 %v509, %v508
  %v522 = vpack.c.b16 %v511, %v510
  %v523 = vpack.c.b16 %v513, %v512
  %v524 = vpack.c.b16 %v515, %v514
  %v525 = vpack.c.b16 %v517, %v516
  %534 = vmatprep.subr.bf16.mxu0 0
  %535 = vmatpush1.bf16.msra.mxu0 %v518
  %536 = vmatprep.subr.bf16.mxu0 0
  %537 = vmatpush1.bf16.msra.mxu0 %v519
  %538 = vmatprep.subr.bf16.mxu0 0
  %539 = vmatpush1.bf16.msra.mxu0 %v520
  %540 = vmatprep.subr.bf16.mxu0 0
  %541 = vmatpush1.bf16.msra.mxu0 %v521
  %542 = vmatprep.subr.bf16.mxu0 0
  %543 = vmatpush1.bf16.msra.mxu0 %v522
  %544 = vmatprep.subr.bf16.mxu0 0
  %545 = vmatpush1.bf16.msra.mxu0 %v523
  %546 = vmatprep.subr.bf16.mxu0 0
  %547 = vmatpush1.bf16.msra.mxu0 %v524
  %548 = vmatprep.subr.bf16.mxu0 0
  %549 = vmatpush1.bf16.msra.mxu0 %v525
  %550 = vmatprep.subr.bf16.mxu0 0
  %551 = vmatpush1.bf16.msra.mxu0 0
  %552 = vmatprep.subr.bf16.mxu0 0
  %553 = vmatpush1.bf16.msra.mxu0 0
  %554 = vmatprep.subr.bf16.mxu0 0
  %555 = vmatpush1.bf16.msra.mxu0 0
  %556 = vmatprep.subr.bf16.mxu0 0
  %557 = vmatpush1.bf16.msra.mxu0 0
  %558 = vmatprep.subr.bf16.mxu0 0
  %559 = vmatpush1.bf16.msra.mxu0 0
  %560 = vmatprep.subr.bf16.mxu0 0
  %561 = vmatpush1.bf16.msra.mxu0 0
  %562 = vmatprep.subr.bf16.mxu0 0
  %563 = vmatpush1.bf16.msra.mxu0 0
  %564 = vmatprep.subr.bf16.mxu0 0
  %565 = vmatpush1.bf16.msra.mxu0 0
  %566 = vmatprep.mubr.bf16.mxu0 0
  %567 = vmatmul.mubr.bf16.gmra.mrb[0].mxu0 %v450
  %v568 = vpop.f32.mrb[0].mxu0
  %v569 = vadd.f32 %v485, %v568
  %v570 = vpop.f32.mrb[0].mxu0
  %v571 = vpop.f32.mrb[0].mxu0
  %v572 = vadd.f32 %v485, %v571
  %v573 = vpop.f32.mrb[0].mxu0
  %574 = vmatprep.mubr.bf16.mxu0 0
  %575 = vmatmul.mubr.bf16.gmra.mrb[0].mxu0 %v451
  %v576 = vpop.f32.mrb[0].mxu0
  %v577 = vadd.f32 %v485, %v576
  %v578 = vpop.f32.mrb[0].mxu0
  %v579 = vpop.f32.mrb[0].mxu0
  %v580 = vadd.f32 %v485, %v579
  %v581 = vpop.f32.mrb[0].mxu0
  %582 = vmatprep.mubr.bf16.mxu0 0
  %583 = vmatmul.mubr.bf16.gmra.mrb[0].mxu0 %v452
  %v584 = vpop.f32.mrb[0].mxu0
  %v585 = vadd.f32 %v485, %v584
  %v586 = vpop.f32.mrb[0].mxu0
  %v587 = vpop.f32.mrb[0].mxu0
  %v588 = vadd.f32 %v485, %v587
  %v589 = vpop.f32.mrb[0].mxu0
  %590 = vmatprep.mubr.bf16.mxu0 0
  %591 = vmatmul.mubr.bf16.gmra.mrb[0].mxu0 %v453
  %v592 = vpop.f32.mrb[0].mxu0
  %v593 = vadd.f32 %v485, %v592
  %v594 = vpop.f32.mrb[0].mxu0
  %v595 = vpop.f32.mrb[0].mxu0
  %v596 = vadd.f32 %v485, %v595
  %v597 = vpop.f32.mrb[0].mxu0
  %598 = vmatprep.mubr.bf16.mxu0 0
  %599 = vmatmul.mubr.bf16.gmra.mrb[0].mxu0 %v454
  %v600 = vpop.f32.mrb[0].mxu0
  %v601 = vadd.f32 %v485, %v600
  %v602 = vpop.f32.mrb[0].mxu0
  %v603 = vpop.f32.mrb[0].mxu0
  %v604 = vadd.f32 %v485, %v603
  %v605 = vpop.f32.mrb[0].mxu0
  %606 = vmatprep.mubr.bf16.mxu0 0
  %607 = vmatmul.mubr.bf16.gmra.mrb[0].mxu0 %v455
  %v608 = vpop.f32.mrb[0].mxu0
  %v609 = vadd.f32 %v485, %v608
  %v610 = vpop.f32.mrb[0].mxu0
  %v611 = vpop.f32.mrb[0].mxu0
  %v612 = vadd.f32 %v485, %v611
  %v613 = vpop.f32.mrb[0].mxu0
  %614 = vmatprep.mubr.bf16.mxu0 0
  %615 = vmatmul.mubr.bf16.gmra.mrb[0].mxu0 %v456
  %v616 = vpop.f32.mrb[0].mxu0
  %v617 = vadd.f32 %v485, %v616
  %v618 = vpop.f32.mrb[0].mxu0
  %v619 = vpop.f32.mrb[0].mxu0
  %v620 = vadd.f32 %v485, %v619
  %v621 = vpop.f32.mrb[0].mxu0
  %622 = vmatprep.mubr.bf16.mxu0 0
  %623 = vmatmul.mubr.bf16.gmra.mrb[0].mxu0 %v457
  %v624 = vpop.f32.mrb[0].mxu0
  %v625 = vadd.f32 %v485, %v624
  %v626 = vpop.f32.mrb[0].mxu0
  %v627 = vpop.f32.mrb[0].mxu0
  %v628 = vadd.f32 %v485, %v627
  %v629 = vpop.f32.mrb[0].mxu0
  %630 = vmatprep.mubr.bf16.mxu0 0
  %631 = vmatmul.mubr.bf16.gmra.mrb[0].mxu0 %v458
  %v632 = vpop.f32.mrb[0].mxu0
  %v633 = vadd.f32 %v485, %v632
  %v634 = vpop.f32.mrb[0].mxu0
  %v635 = vpop.f32.mrb[0].mxu0
  %v636 = vadd.f32 %v485, %v635
  %v637 = vpop.f32.mrb[0].mxu0
  %638 = vmatprep.mubr.bf16.mxu0 0
  %639 = vmatmul.mubr.bf16.gmra.mrb[0].mxu0 %v459
  %v640 = vpop.f32.mrb[0].mxu0
  %v641 = vadd.f32 %v485, %v640
  %v642 = vpop.f32.mrb[0].mxu0
  %v643 = vpop.f32.mrb[0].mxu0
  %v644 = vadd.f32 %v485, %v643
  %v645 = vpop.f32.mrb[0].mxu0
  %646 = vmatprep.mubr.bf16.mxu0 0
  %647 = vmatmul.mubr.bf16.gmra.mrb[0].mxu0 %v460
  %v648 = vpop.f32.mrb[0].mxu0
  %v649 = vadd.f32 %v485, %v648
  %v650 = vpop.f32.mrb[0].mxu0
  %v651 = vpop.f32.mrb[0].mxu0
  %v652 = vadd.f32 %v485, %v651
  %v653 = vpop.f32.mrb[0].mxu0
  %654 = vmatprep.mubr.bf16.mxu0 0
  %655 = vmatmul.mubr.bf16.gmra.mrb[0].mxu0 %v461
  %v656 = vpop.f32.mrb[0].mxu0
  %v657 = vadd.f32 %v485, %v656
  %v658 = vpop.f32.mrb[0].mxu0
  %v659 = vpop.f32.mrb[0].mxu0
  %v660 = vadd.f32 %v485, %v659
  %v661 = vpop.f32.mrb[0].mxu0
  %662 = vmatprep.mubr.bf16.mxu0 0
  %663 = vmatmul.mubr.bf16.gmra.mrb[0].mxu0 %v462
  %v664 = vpop.f32.mrb[0].mxu0
  %v665 = vadd.f32 %v485, %v664
  %v666 = vpop.f32.mrb[0].mxu0
  %v667 = vpop.f32.mrb[0].mxu0
  %v668 = vadd.f32 %v485, %v667
  %v669 = vpop.f32.mrb[0].mxu0
  %670 = vmatprep.mubr.bf16.mxu0 0
  %671 = vmatmul.mubr.bf16.gmra.mrb[0].mxu0 %v463
  %v672 = vpop.f32.mrb[0].mxu0
  %v673 = vadd.f32 %v485, %v672
  %v674 = vpop.f32.mrb[0].mxu0
  %v675 = vpop.f32.mrb[0].mxu0
  %v676 = vadd.f32 %v485, %v675
  %v677 = vpop.f32.mrb[0].mxu0
  %678 = vmatprep.mubr.bf16.mxu0 0
  %679 = vmatmul.mubr.bf16.gmra.mrb[0].mxu0 %v464
  %v680 = vpop.f32.mrb[0].mxu0
  %v681 = vadd.f32 %v485, %v680
  %v682 = vpop.f32.mrb[0].mxu0
  %v683 = vpop.f32.mrb[0].mxu0
  %v684 = vadd.f32 %v485, %v683
  %v685 = vpop.f32.mrb[0].mxu0
  %686 = vmatprep.mubr.bf16.mxu0 0
  %687 = vmatmul.mubr.bf16.gmra.mrb[0].mxu0 %v465
  %v688 = vpop.f32.mrb[0].mxu0
  %v689 = vadd.f32 %v485, %v688
  %v690 = vpop.f32.mrb[0].mxu0
  %v691 = vpop.f32.mrb[0].mxu0
  %v692 = vadd.f32 %v485, %v691
  %v693 = vpop.f32.mrb[0].mxu0
  %694 = vdwg.mxu0
  %v695 = vmax.f32 %v569, 0.0
  %v696 = vmax.f32 %v572, 0.0
  %v697 = vmax.f32 %v577, 0.0
  %v698 = vmax.f32 %v580, 0.0
  %v699 = vmax.f32 %v585, 0.0
  %v700 = vmax.f32 %v588, 0.0
  %v701 = vmax.f32 %v593, 0.0
  %v702 = vmax.f32 %v596, 0.0
  %v703 = vmax.f32 %v601, 0.0
  %v704 = vmax.f32 %v604, 0.0
  %v705 = vmax.f32 %v609, 0.0
  %v706 = vmax.f32 %v612, 0.0
  %v707 = vmax.f32 %v617, 0.0
  %v708 = vmax.f32 %v620, 0.0
  %v709 = vmax.f32 %v625, 0.0
  %v710 = vmax.f32 %v628, 0.0
  %v711 = vmax.f32 %v633, 0.0
  %v712 = vmax.f32 %v636, 0.0
  %v713 = vmax.f32 %v641, 0.0
  %v714 = vmax.f32 %v644, 0.0
  %v715 = vmax.f32 %v649, 0.0
  %v716 = vmax.f32 %v652, 0.0
  %v717 = vmax.f32 %v657, 0.0
  %v718 = vmax.f32 %v660, 0.0
  %v719 = vmax.f32 %v665, 0.0
  %v720 = vmax.f32 %v668, 0.0
  %v721 = vmax.f32 %v673, 0.0
  %v722 = vmax.f32 %v676, 0.0
  %v723 = vmax.f32 %v681, 0.0
  %v724 = vmax.f32 %v684, 0.0
  %v725 = vmax.f32 %v689, 0.0
  %v726 = vmax.f32 %v692, 0.0
  %v727 = vpack.c.bf16 %v696, %v695
  %v728 = vpack.c.bf16 %v698, %v697
  %v729 = vpack.c.bf16 %v700, %v699
  %v730 = vpack.c.bf16 %v702, %v701
  %v731 = vpack.c.bf16 %v704, %v703
  %v732 = vpack.c.bf16 %v706, %v705
  %v733 = vpack.c.bf16 %v708, %v707
  %v734 = vpack.c.bf16 %v710, %v709
  %v735 = vpack.c.bf16 %v712, %v711
  %v736 = vpack.c.bf16 %v714, %v713
  %v737 = vpack.c.bf16 %v716, %v715
  %v738 = vpack.c.bf16 %v718, %v717
  %v739 = vpack.c.bf16 %v720, %v719
  %v740 = vpack.c.bf16 %v722, %v721
  %v741 = vpack.c.bf16 %v724, %v723
  %v742 = vpack.c.bf16 %v726, %v725
  %s743 = scalar_lea.vmem %s3, 64
  %v744 = vld [vmem:[%s743] sm:$0xf]
  %v745 = vld [vmem:[%s743 + $0x4] sm:$0xf]
  %v746 = vld [vmem:[%s743 + $0x8] sm:$0xf]
  %v747 = vld [vmem:[%s743 + $0xc] sm:$0xf]
  %v748 = vld [vmem:[%s743 + $0x10] sm:$0xf]
  %v749 = vld [vmem:[%s743 + $0x14] sm:$0xf]
  %v750 = vld [vmem:[%s743 + $0x18] sm:$0xf]
  %v751 = vld [vmem:[%s743 + $0x1c] sm:$0xf]
  %v752 = vld [vmem:[%s743 + $0x20] sm:$0xf]
  %v753 = vld [vmem:[%s743 + $0x24] sm:$0xf]
  %v754 = vld [vmem:[%s743 + $0x28] sm:$0xf]
  %v755 = vld [vmem:[%s743 + $0x2c] sm:$0xf]
  %v756 = vld [vmem:[%s743 + $0x30] sm:$0xf]
  %v757 = vld [vmem:[%s743 + $0x34] sm:$0xf]
  %v758 = vld [vmem:[%s743 + $0x38] sm:$0xf]
  %v759 = vld [vmem:[%s743 + $0x3c] sm:$0xf]
  %v760 = vlaneseq
  %v761 = vshrl.u32 %v760, 7
  %v762 = vsub.s32 2, %v761
  %v763 = vrot.slane %v100, %v762
  %v780 = vunpack.c.l.b16 %v744
  %v781 = vunpack.c.l.b16 %v745
  %v782 = vunpack.c.l.b16 %v746
  %v783 = vunpack.c.l.b16 %v747
  %v784 = vunpack.c.l.b16 %v748
  %v785 = vunpack.c.l.b16 %v749
  %v786 = vunpack.c.l.b16 %v750
  %v787 = vunpack.c.l.b16 %v751
  %v788 = vunpack.c.l.b16 %v752
  %v789 = vunpack.c.l.b16 %v753
  %v790 = vunpack.c.l.b16 %v754
  %v791 = vunpack.c.l.b16 %v755
  %v792 = vunpack.c.l.b16 %v756
  %v793 = vunpack.c.l.b16 %v757
  %v794 = vunpack.c.l.b16 %v758
  %v795 = vunpack.c.l.b16 %v759
  %v796 = vpack.c.b16 %v781, %v780
  %v797 = vpack.c.b16 %v783, %v782
  %v798 = vpack.c.b16 %v785, %v784
  %v799 = vpack.c.b16 %v787, %v786
  %v800 = vpack.c.b16 %v789, %v788
  %v801 = vpack.c.b16 %v791, %v790
  %v802 = vpack.c.b16 %v793, %v792
  %v803 = vpack.c.b16 %v795, %v794
  %812 = vmatprep.subr.bf16.mxu0 0
  %813 = vmatpush1.bf16.msra.mxu0 %v796
  %814 = vmatprep.subr.bf16.mxu0 0
  %815 = vmatpush1.bf16.msra.mxu0 %v797
  %816 = vmatprep.subr.bf16.mxu0 0
  %817 = vmatpush1.bf16.msra.mxu0 %v798
  %818 = vmatprep.subr.bf16.mxu0 0
  %819 = vmatpush1.bf16.msra.mxu0 %v799
  %820 = vmatprep.subr.bf16.mxu0 0
  %821 = vmatpush1.bf16.msra.mxu0 %v800
  %822 = vmatprep.subr.bf16.mxu0 0
  %823 = vmatpush1.bf16.msra.mxu0 %v801
  %824 = vmatprep.subr.bf16.mxu0 0
  %825 = vmatpush1.bf16.msra.mxu0 %v802
  %826 = vmatprep.subr.bf16.mxu0 0
  %827 = vmatpush1.bf16.msra.mxu0 %v803
  %828 = vmatprep.subr.bf16.mxu0 0
  %829 = vmatpush1.bf16.msra.mxu0 0
  %830 = vmatprep.subr.bf16.mxu0 0
  %831 = vmatpush1.bf16.msra.mxu0 0
  %832 = vmatprep.subr.bf16.mxu0 0
  %833 = vmatpush1.bf16.msra.mxu0 0
  %834 = vmatprep.subr.bf16.mxu0 0
  %835 = vmatpush1.bf16.msra.mxu0 0
  %836 = vmatprep.subr.bf16.mxu0 0
  %837 = vmatpush1.bf16.msra.mxu0 0
  %838 = vmatprep.subr.bf16.mxu0 0
  %839 = vmatpush1.bf16.msra.mxu0 0
  %840 = vmatprep.subr.bf16.mxu0 0
  %841 = vmatpush1.bf16.msra.mxu0 0
  %842 = vmatprep.subr.bf16.mxu0 0
  %843 = vmatpush1.bf16.msra.mxu0 0
  %844 = vmatprep.mubr.bf16.mxu0 0
  %845 = vmatmul.mubr.bf16.gmra.mrb[0].mxu0 %v727
  %v846 = vpop.f32.mrb[0].mxu0
  %v847 = vadd.f32 %v763, %v846
  %v848 = vpop.f32.mrb[0].mxu0
  %v849 = vpop.f32.mrb[0].mxu0
  %v850 = vadd.f32 %v763, %v849
  %v851 = vpop.f32.mrb[0].mxu0
  %852 = vmatprep.mubr.bf16.mxu0 0
  %853 = vmatmul.mubr.bf16.gmra.mrb[0].mxu0 %v728
  %v854 = vpop.f32.mrb[0].mxu0
  %v855 = vadd.f32 %v763, %v854
  %v856 = vpop.f32.mrb[0].mxu0
  %v857 = vpop.f32.mrb[0].mxu0
  %v858 = vadd.f32 %v763, %v857
  %v859 = vpop.f32.mrb[0].mxu0
  %860 = vmatprep.mubr.bf16.mxu0 0
  %861 = vmatmul.mubr.bf16.gmra.mrb[0].mxu0 %v729
  %v862 = vpop.f32.mrb[0].mxu0
  %v863 = vadd.f32 %v763, %v862
  %v864 = vpop.f32.mrb[0].mxu0
  %v865 = vpop.f32.mrb[0].mxu0
  %v866 = vadd.f32 %v763, %v865
  %v867 = vpop.f32.mrb[0].mxu0
  %868 = vmatprep.mubr.bf16.mxu0 0
  %869 = vmatmul.mubr.bf16.gmra.mrb[0].mxu0 %v730
  %v870 = vpop.f32.mrb[0].mxu0
  %v871 = vadd.f32 %v763, %v870
  %v872 = vpop.f32.mrb[0].mxu0
  %v873 = vpop.f32.mrb[0].mxu0
  %v874 = vadd.f32 %v763, %v873
  %v875 = vpop.f32.mrb[0].mxu0
  %876 = vmatprep.mubr.bf16.mxu0 0
  %877 = vmatmul.mubr.bf16.gmra.mrb[0].mxu0 %v731
  %v878 = vpop.f32.mrb[0].mxu0
  %v879 = vadd.f32 %v763, %v878
  %v880 = vpop.f32.mrb[0].mxu0
  %v881 = vpop.f32.mrb[0].mxu0
  %v882 = vadd.f32 %v763, %v881
  %v883 = vpop.f32.mrb[0].mxu0
  %884 = vmatprep.mubr.bf16.mxu0 0
  %885 = vmatmul.mubr.bf16.gmra.mrb[0].mxu0 %v732
  %v886 = vpop.f32.mrb[0].mxu0
  %v887 = vadd.f32 %v763, %v886
  %v888 = vpop.f32.mrb[0].mxu0
  %v889 = vpop.f32.mrb[0].mxu0
  %v890 = vadd.f32 %v763, %v889
  %v891 = vpop.f32.mrb[0].mxu0
  %892 = vmatprep.mubr.bf16.mxu0 0
  %893 = vmatmul.mubr.bf16.gmra.mrb[0].mxu0 %v733
  %v894 = vpop.f32.mrb[0].mxu0
  %v895 = vadd.f32 %v763, %v894
  %v896 = vpop.f32.mrb[0].mxu0
  %v897 = vpop.f32.mrb[0].mxu0
  %v898 = vadd.f32 %v763, %v897
  %v899 = vpop.f32.mrb[0].mxu0
  %900 = vmatprep.mubr.bf16.mxu0 0
  %901 = vmatmul.mubr.bf16.gmra.mrb[0].mxu0 %v734
  %v902 = vpop.f32.mrb[0].mxu0
  %v903 = vadd.f32 %v763, %v902
  %v904 = vpop.f32.mrb[0].mxu0
  %v905 = vpop.f32.mrb[0].mxu0
  %v906 = vadd.f32 %v763, %v905
  %v907 = vpop.f32.mrb[0].mxu0
  %908 = vmatprep.mubr.bf16.mxu0 0
  %909 = vmatmul.mubr.bf16.gmra.mrb[0].mxu0 %v735
  %v910 = vpop.f32.mrb[0].mxu0
  %v911 = vadd.f32 %v763, %v910
  %v912 = vpop.f32.mrb[0].mxu0
  %v913 = vpop.f32.mrb[0].mxu0
  %v914 = vadd.f32 %v763, %v913
  %v915 = vpop.f32.mrb[0].mxu0
  %916 = vmatprep.mubr.bf16.mxu0 0
  %917 = vmatmul.mubr.bf16.gmra.mrb[0].mxu0 %v736
  %v918 = vpop.f32.mrb[0].mxu0
  %v919 = vadd.f32 %v763, %v918
  %v920 = vpop.f32.mrb[0].mxu0
  %v921 = vpop.f32.mrb[0].mxu0
  %v922 = vadd.f32 %v763, %v921
  %v923 = vpop.f32.mrb[0].mxu0
  %924 = vmatprep.mubr.bf16.mxu0 0
  %925 = vmatmul.mubr.bf16.gmra.mrb[0].mxu0 %v737
  %v926 = vpop.f32.mrb[0].mxu0
  %v927 = vadd.f32 %v763, %v926
  %v928 = vpop.f32.mrb[0].mxu0
  %v929 = vpop.f32.mrb[0].mxu0
  %v930 = vadd.f32 %v763, %v929
  %v931 = vpop.f32.mrb[0].mxu0
  %932 = vmatprep.mubr.bf16.mxu0 0
  %933 = vmatmul.mubr.bf16.gmra.mrb[0].mxu0 %v738
  %v934 = vpop.f32.mrb[0].mxu0
  %v935 = vadd.f32 %v763, %v934
  %v936 = vpop.f32.mrb[0].mxu0
  %v937 = vpop.f32.mrb[0].mxu0
  %v938 = vadd.f32 %v763, %v937
  %v939 = vpop.f32.mrb[0].mxu0
  %940 = vmatprep.mubr.bf16.mxu0 0
  %941 = vmatmul.mubr.bf16.gmra.mrb[0].mxu0 %v739
  %v942 = vpop.f32.mrb[0].mxu0
  %v943 = vadd.f32 %v763, %v942
  %v944 = vpop.f32.mrb[0].mxu0
  %v945 = vpop.f32.mrb[0].mxu0
  %v946 = vadd.f32 %v763, %v945
  %v947 = vpop.f32.mrb[0].mxu0
  %948 = vmatprep.mubr.bf16.mxu0 0
  %949 = vmatmul.mubr.bf16.gmra.mrb[0].mxu0 %v740
  %v950 = vpop.f32.mrb[0].mxu0
  %v951 = vadd.f32 %v763, %v950
  %v952 = vpop.f32.mrb[0].mxu0
  %v953 = vpop.f32.mrb[0].mxu0
  %v954 = vadd.f32 %v763, %v953
  %v955 = vpop.f32.mrb[0].mxu0
  %956 = vmatprep.mubr.bf16.mxu0 0
  %957 = vmatmul.mubr.bf16.gmra.mrb[0].mxu0 %v741
  %v958 = vpop.f32.mrb[0].mxu0
  %v959 = vadd.f32 %v763, %v958
  %v960 = vpop.f32.mrb[0].mxu0
  %v961 = vpop.f32.mrb[0].mxu0
  %v962 = vadd.f32 %v763, %v961
  %v963 = vpop.f32.mrb[0].mxu0
  %964 = vmatprep.mubr.bf16.mxu0 0
  %965 = vmatmul.mubr.bf16.gmra.mrb[0].mxu0 %v742
  %v966 = vpop.f32.mrb[0].mxu0
  %v967 = vadd.f32 %v763, %v966
  %v968 = vpop.f32.mrb[0].mxu0
  %v969 = vpop.f32.mrb[0].mxu0
  %v970 = vadd.f32 %v763, %v969
  %v971 = vpop.f32.mrb[0].mxu0
  %972 = vdwg.mxu0
  %v973 = vmax.f32 %v847, 0.0
  %v974 = vmax.f32 %v850, 0.0
  %v975 = vmax.f32 %v855, 0.0
  %v976 = vmax.f32 %v858, 0.0
  %v977 = vmax.f32 %v863, 0.0
  %v978 = vmax.f32 %v866, 0.0
  %v979 = vmax.f32 %v871, 0.0
  %v980 = vmax.f32 %v874, 0.0
  %v981 = vmax.f32 %v879, 0.0
  %v982 = vmax.f32 %v882, 0.0
  %v983 = vmax.f32 %v887, 0.0
  %v984 = vmax.f32 %v890, 0.0
  %v985 = vmax.f32 %v895, 0.0
  %v986 = vmax.f32 %v898, 0.0
  %v987 = vmax.f32 %v903, 0.0
  %v988 = vmax.f32 %v906, 0.0
  %v989 = vmax.f32 %v911, 0.0
  %v990 = vmax.f32 %v914, 0.0
  %v991 = vmax.f32 %v919, 0.0
  %v992 = vmax.f32 %v922, 0.0
  %v993 = vmax.f32 %v927, 0.0
  %v994 = vmax.f32 %v930, 0.0
  %v995 = vmax.f32 %v935, 0.0
  %v996 = vmax.f32 %v938, 0.0
  %v997 = vmax.f32 %v943, 0.0
  %v998 = vmax.f32 %v946, 0.0
  %v999 = vmax.f32 %v951, 0.0
  %v1000 = vmax.f32 %v954, 0.0
  %v1001 = vmax.f32 %v959, 0.0
  %v1002 = vmax.f32 %v962, 0.0
  %v1003 = vmax.f32 %v967, 0.0
  %v1004 = vmax.f32 %v970, 0.0
  %v1005 = vpack.c.bf16 %v974, %v973
  %v1006 = vpack.c.bf16 %v976, %v975
  %v1007 = vpack.c.bf16 %v978, %v977
  %v1008 = vpack.c.bf16 %v980, %v979
  %v1009 = vpack.c.bf16 %v982, %v981
  %v1010 = vpack.c.bf16 %v984, %v983
  %v1011 = vpack.c.bf16 %v986, %v985
  %v1012 = vpack.c.bf16 %v988, %v987
  %v1013 = vpack.c.bf16 %v990, %v989
  %v1014 = vpack.c.bf16 %v992, %v991
  %v1015 = vpack.c.bf16 %v994, %v993
  %v1016 = vpack.c.bf16 %v996, %v995
  %v1017 = vpack.c.bf16 %v998, %v997
  %v1018 = vpack.c.bf16 %v1000, %v999
  %v1019 = vpack.c.bf16 %v1002, %v1001
  %v1020 = vpack.c.bf16 %v1004, %v1003
  %s1021 = scalar_lea.vmem %s3, 128
  %v1022 = vld [vmem:[%s1021] sm:$0xf]
  %v1023 = vld [vmem:[%s1021 + $0x4] sm:$0xf]
  %v1024 = vld [vmem:[%s1021 + $0x8] sm:$0xf]
  %v1025 = vld [vmem:[%s1021 + $0xc] sm:$0xf]
  %v1026 = vld [vmem:[%s1021 + $0x10] sm:$0xf]
  %v1027 = vld [vmem:[%s1021 + $0x14] sm:$0xf]
  %v1028 = vld [vmem:[%s1021 + $0x18] sm:$0xf]
  %v1029 = vld [vmem:[%s1021 + $0x1c] sm:$0xf]
  %v1030 = vld [vmem:[%s1021 + $0x20] sm:$0xf]
  %v1031 = vld [vmem:[%s1021 + $0x24] sm:$0xf]
  %v1032 = vld [vmem:[%s1021 + $0x28] sm:$0xf]
  %v1033 = vld [vmem:[%s1021 + $0x2c] sm:$0xf]
  %v1034 = vld [vmem:[%s1021 + $0x30] sm:$0xf]
  %v1035 = vld [vmem:[%s1021 + $0x34] sm:$0xf]
  %v1036 = vld [vmem:[%s1021 + $0x38] sm:$0xf]
  %v1037 = vld [vmem:[%s1021 + $0x3c] sm:$0xf]
  %v1038 = vlaneseq
  %v1039 = vshrl.u32 %v1038, 7
  %v1040 = vsub.s32 3, %v1039
  %v1041 = vrot.slane %v100, %v1040
  %v1058 = vunpack.c.l.b16 %v1022
  %v1059 = vunpack.c.l.b16 %v1023
  %v1060 = vunpack.c.l.b16 %v1024
  %v1061 = vunpack.c.l.b16 %v1025
  %v1062 = vunpack.c.l.b16 %v1026
  %v1063 = vunpack.c.l.b16 %v1027
  %v1064 = vunpack.c.l.b16 %v1028
  %v1065 = vunpack.c.l.b16 %v1029
  %v1066 = vunpack.c.l.b16 %v1030
  %v1067 = vunpack.c.l.b16 %v1031
  %v1068 = vunpack.c.l.b16 %v1032
  %v1069 = vunpack.c.l.b16 %v1033
  %v1070 = vunpack.c.l.b16 %v1034
  %v1071 = vunpack.c.l.b16 %v1035
  %v1072 = vunpack.c.l.b16 %v1036
  %v1073 = vunpack.c.l.b16 %v1037
  %v1074 = vpack.c.b16 %v1059, %v1058
  %v1075 = vpack.c.b16 %v1061, %v1060
  %v1076 = vpack.c.b16 %v1063, %v1062
  %v1077 = vpack.c.b16 %v1065, %v1064
  %v1078 = vpack.c.b16 %v1067, %v1066
  %v1079 = vpack.c.b16 %v1069, %v1068
  %v1080 = vpack.c.b16 %v1071, %v1070
  %v1081 = vpack.c.b16 %v1073, %v1072
  %1090 = vmatprep.subr.bf16.mxu0 0
  %1091 = vmatpush1.bf16.msra.mxu0 %v1074
  %1092 = vmatprep.subr.bf16.mxu0 0
  %1093 = vmatpush1.bf16.msra.mxu0 %v1075
  %1094 = vmatprep.subr.bf16.mxu0 0
  %1095 = vmatpush1.bf16.msra.mxu0 %v1076
  %1096 = vmatprep.subr.bf16.mxu0 0
  %1097 = vmatpush1.bf16.msra.mxu0 %v1077
  %1098 = vmatprep.subr.bf16.mxu0 0
  %1099 = vmatpush1.bf16.msra.mxu0 %v1078
  %1100 = vmatprep.subr.bf16.mxu0 0
  %1101 = vmatpush1.bf16.msra.mxu0 %v1079
  %1102 = vmatprep.subr.bf16.mxu0 0
  %1103 = vmatpush1.bf16.msra.mxu0 %v1080
  %1104 = vmatprep.subr.bf16.mxu0 0
  %1105 = vmatpush1.bf16.msra.mxu0 %v1081
  %1106 = vmatprep.subr.bf16.mxu0 0
  %1107 = vmatpush1.bf16.msra.mxu0 0
  %1108 = vmatprep.subr.bf16.mxu0 0
  %1109 = vmatpush1.bf16.msra.mxu0 0
  %1110 = vmatprep.subr.bf16.mxu0 0
  %1111 = vmatpush1.bf16.msra.mxu0 0
  %1112 = vmatprep.subr.bf16.mxu0 0
  %1113 = vmatpush1.bf16.msra.mxu0 0
  %1114 = vmatprep.subr.bf16.mxu0 0
  %1115 = vmatpush1.bf16.msra.mxu0 0
  %1116 = vmatprep.subr.bf16.mxu0 0
  %1117 = vmatpush1.bf16.msra.mxu0 0
  %1118 = vmatprep.subr.bf16.mxu0 0
  %1119 = vmatpush1.bf16.msra.mxu0 0
  %1120 = vmatprep.subr.bf16.mxu0 0
  %1121 = vmatpush1.bf16.msra.mxu0 0
  %1122 = vmatprep.mubr.bf16.mxu0 0
  %1123 = vmatmul.mubr.bf16.gmra.mrb[0].mxu0 %v1005
  %v1124 = vpop.f32.mrb[0].mxu0
  %v1125 = vadd.f32 %v1041, %v1124
  %v1126 = vpop.f32.mrb[0].mxu0
  %v1127 = vpop.f32.mrb[0].mxu0
  %v1128 = vadd.f32 %v1041, %v1127
  %v1129 = vpop.f32.mrb[0].mxu0
  %1130 = vmatprep.mubr.bf16.mxu0 0
  %1131 = vmatmul.mubr.bf16.gmra.mrb[0].mxu0 %v1006
  %v1132 = vpop.f32.mrb[0].mxu0
  %v1133 = vadd.f32 %v1041, %v1132
  %v1134 = vpop.f32.mrb[0].mxu0
  %v1135 = vpop.f32.mrb[0].mxu0
  %v1136 = vadd.f32 %v1041, %v1135
  %v1137 = vpop.f32.mrb[0].mxu0
  %1138 = vmatprep.mubr.bf16.mxu0 0
  %1139 = vmatmul.mubr.bf16.gmra.mrb[0].mxu0 %v1007
  %v1140 = vpop.f32.mrb[0].mxu0
  %v1141 = vadd.f32 %v1041, %v1140
  %v1142 = vpop.f32.mrb[0].mxu0
  %v1143 = vpop.f32.mrb[0].mxu0
  %v1144 = vadd.f32 %v1041, %v1143
  %v1145 = vpop.f32.mrb[0].mxu0
  %1146 = vmatprep.mubr.bf16.mxu0 0
  %1147 = vmatmul.mubr.bf16.gmra.mrb[0].mxu0 %v1008
  %v1148 = vpop.f32.mrb[0].mxu0
  %v1149 = vadd.f32 %v1041, %v1148
  %v1150 = vpop.f32.mrb[0].mxu0
  %v1151 = vpop.f32.mrb[0].mxu0
  %v1152 = vadd.f32 %v1041, %v1151
  %v1153 = vpop.f32.mrb[0].mxu0
  %1154 = vmatprep.mubr.bf16.mxu0 0
  %1155 = vmatmul.mubr.bf16.gmra.mrb[0].mxu0 %v1009
  %v1156 = vpop.f32.mrb[0].mxu0
  %v1157 = vadd.f32 %v1041, %v1156
  %v1158 = vpop.f32.mrb[0].mxu0
  %v1159 = vpop.f32.mrb[0].mxu0
  %v1160 = vadd.f32 %v1041, %v1159
  %v1161 = vpop.f32.mrb[0].mxu0
  %1162 = vmatprep.mubr.bf16.mxu0 0
  %1163 = vmatmul.mubr.bf16.gmra.mrb[0].mxu0 %v1010
  %v1164 = vpop.f32.mrb[0].mxu0
  %v1165 = vadd.f32 %v1041, %v1164
  %v1166 = vpop.f32.mrb[0].mxu0
  %v1167 = vpop.f32.mrb[0].mxu0
  %v1168 = vadd.f32 %v1041, %v1167
  %v1169 = vpop.f32.mrb[0].mxu0
  %1170 = vmatprep.mubr.bf16.mxu0 0
  %1171 = vmatmul.mubr.bf16.gmra.mrb[0].mxu0 %v1011
  %v1172 = vpop.f32.mrb[0].mxu0
  %v1173 = vadd.f32 %v1041, %v1172
  %v1174 = vpop.f32.mrb[0].mxu0
  %v1175 = vpop.f32.mrb[0].mxu0
  %v1176 = vadd.f32 %v1041, %v1175
  %v1177 = vpop.f32.mrb[0].mxu0
  %1178 = vmatprep.mubr.bf16.mxu0 0
  %1179 = vmatmul.mubr.bf16.gmra.mrb[0].mxu0 %v1012
  %v1180 = vpop.f32.mrb[0].mxu0
  %v1181 = vadd.f32 %v1041, %v1180
  %v1182 = vpop.f32.mrb[0].mxu0
  %v1183 = vpop.f32.mrb[0].mxu0
  %v1184 = vadd.f32 %v1041, %v1183
  %v1185 = vpop.f32.mrb[0].mxu0
  %1186 = vmatprep.mubr.bf16.mxu0 0
  %1187 = vmatmul.mubr.bf16.gmra.mrb[0].mxu0 %v1013
  %v1188 = vpop.f32.mrb[0].mxu0
  %v1189 = vadd.f32 %v1041, %v1188
  %v1190 = vpop.f32.mrb[0].mxu0
  %v1191 = vpop.f32.mrb[0].mxu0
  %v1192 = vadd.f32 %v1041, %v1191
  %v1193 = vpop.f32.mrb[0].mxu0
  %1194 = vmatprep.mubr.bf16.mxu0 0
  %1195 = vmatmul.mubr.bf16.gmra.mrb[0].mxu0 %v1014
  %v1196 = vpop.f32.mrb[0].mxu0
  %v1197 = vadd.f32 %v1041, %v1196
  %v1198 = vpop.f32.mrb[0].mxu0
  %v1199 = vpop.f32.mrb[0].mxu0
  %v1200 = vadd.f32 %v1041, %v1199
  %v1201 = vpop.f32.mrb[0].mxu0
  %1202 = vmatprep.mubr.bf16.mxu0 0
  %1203 = vmatmul.mubr.bf16.gmra.mrb[0].mxu0 %v1015
  %v1204 = vpop.f32.mrb[0].mxu0
  %v1205 = vadd.f32 %v1041, %v1204
  %v1206 = vpop.f32.mrb[0].mxu0
  %v1207 = vpop.f32.mrb[0].mxu0
  %v1208 = vadd.f32 %v1041, %v1207
  %v1209 = vpop.f32.mrb[0].mxu0
  %1210 = vmatprep.mubr.bf16.mxu0 0
  %1211 = vmatmul.mubr.bf16.gmra.mrb[0].mxu0 %v1016
  %v1212 = vpop.f32.mrb[0].mxu0
  %v1213 = vadd.f32 %v1041, %v1212
  %v1214 = vpop.f32.mrb[0].mxu0
  %v1215 = vpop.f32.mrb[0].mxu0
  %v1216 = vadd.f32 %v1041, %v1215
  %v1217 = vpop.f32.mrb[0].mxu0
  %1218 = vmatprep.mubr.bf16.mxu0 0
  %1219 = vmatmul.mubr.bf16.gmra.mrb[0].mxu0 %v1017
  %v1220 = vpop.f32.mrb[0].mxu0
  %v1221 = vadd.f32 %v1041, %v1220
  %v1222 = vpop.f32.mrb[0].mxu0
  %v1223 = vpop.f32.mrb[0].mxu0
  %v1224 = vadd.f32 %v1041, %v1223
  %v1225 = vpop.f32.mrb[0].mxu0
  %1226 = vmatprep.mubr.bf16.mxu0 0
  %1227 = vmatmul.mubr.bf16.gmra.mrb[0].mxu0 %v1018
  %v1228 = vpop.f32.mrb[0].mxu0
  %v1229 = vadd.f32 %v1041, %v1228
  %v1230 = vpop.f32.mrb[0].mxu0
  %v1231 = vpop.f32.mrb[0].mxu0
  %v1232 = vadd.f32 %v1041, %v1231
  %v1233 = vpop.f32.mrb[0].mxu0
  %1234 = vmatprep.mubr.bf16.mxu0 0
  %1235 = vmatmul.mubr.bf16.gmra.mrb[0].mxu0 %v1019
  %v1236 = vpop.f32.mrb[0].mxu0
  %v1237 = vadd.f32 %v1041, %v1236
  %v1238 = vpop.f32.mrb[0].mxu0
  %v1239 = vpop.f32.mrb[0].mxu0
  %v1240 = vadd.f32 %v1041, %v1239
  %v1241 = vpop.f32.mrb[0].mxu0
  %1242 = vmatprep.mubr.bf16.mxu0 0
  %1243 = vmatmul.mubr.bf16.gmra.mrb[0].mxu0 %v1020
  %v1244 = vpop.f32.mrb[0].mxu0
  %v1245 = vadd.f32 %v1041, %v1244
  %v1246 = vpop.f32.mrb[0].mxu0
  %v1247 = vpop.f32.mrb[0].mxu0
  %v1248 = vadd.f32 %v1041, %v1247
  %v1249 = vpop.f32.mrb[0].mxu0
  %1250 = vdwg.mxu0
  %v1251 = vmax.f32 %v1125, 0.0
  %v1252 = vmax.f32 %v1128, 0.0
  %v1253 = vmax.f32 %v1133, 0.0
  %v1254 = vmax.f32 %v1136, 0.0
  %v1255 = vmax.f32 %v1141, 0.0
  %v1256 = vmax.f32 %v1144, 0.0
  %v1257 = vmax.f32 %v1149, 0.0
  %v1258 = vmax.f32 %v1152, 0.0
  %v1259 = vmax.f32 %v1157, 0.0
  %v1260 = vmax.f32 %v1160, 0.0
  %v1261 = vmax.f32 %v1165, 0.0
  %v1262 = vmax.f32 %v1168, 0.0
  %v1263 = vmax.f32 %v1173, 0.0
  %v1264 = vmax.f32 %v1176, 0.0
  %v1265 = vmax.f32 %v1181, 0.0
  %v1266 = vmax.f32 %v1184, 0.0
  %v1267 = vmax.f32 %v1189, 0.0
  %v1268 = vmax.f32 %v1192, 0.0
  %v1269 = vmax.f32 %v1197, 0.0
  %v1270 = vmax.f32 %v1200, 0.0
  %v1271 = vmax.f32 %v1205, 0.0
  %v1272 = vmax.f32 %v1208, 0.0
  %v1273 = vmax.f32 %v1213, 0.0
  %v1274 = vmax.f32 %v1216, 0.0
  %v1275 = vmax.f32 %v1221, 0.0
  %v1276 = vmax.f32 %v1224, 0.0
  %v1277 = vmax.f32 %v1229, 0.0
  %v1278 = vmax.f32 %v1232, 0.0
  %v1279 = vmax.f32 %v1237, 0.0
  %v1280 = vmax.f32 %v1240, 0.0
  %v1281 = vmax.f32 %v1245, 0.0
  %v1282 = vmax.f32 %v1248, 0.0
  %v1283 = vpack.c.bf16 %v1252, %v1251
  %v1284 = vpack.c.bf16 %v1254, %v1253
  %v1285 = vpack.c.bf16 %v1256, %v1255
  %v1286 = vpack.c.bf16 %v1258, %v1257
  %v1287 = vpack.c.bf16 %v1260, %v1259
  %v1288 = vpack.c.bf16 %v1262, %v1261
  %v1289 = vpack.c.bf16 %v1264, %v1263
  %v1290 = vpack.c.bf16 %v1266, %v1265
  %v1291 = vpack.c.bf16 %v1268, %v1267
  %v1292 = vpack.c.bf16 %v1270, %v1269
  %v1293 = vpack.c.bf16 %v1272, %v1271
  %v1294 = vpack.c.bf16 %v1274, %v1273
  %v1295 = vpack.c.bf16 %v1276, %v1275
  %v1296 = vpack.c.bf16 %v1278, %v1277
  %v1297 = vpack.c.bf16 %v1280, %v1279
  %v1298 = vpack.c.bf16 %v1282, %v1281
  %s1299 = scalar_lea.vmem %s3, 192
  %v1300 = vld [vmem:[%s1299] sm:$0xf]
  %v1301 = vld [vmem:[%s1299 + $0x4] sm:$0xf]
  %v1302 = vld [vmem:[%s1299 + $0x8] sm:$0xf]
  %v1303 = vld [vmem:[%s1299 + $0xc] sm:$0xf]
  %v1304 = vld [vmem:[%s1299 + $0x10] sm:$0xf]
  %v1305 = vld [vmem:[%s1299 + $0x14] sm:$0xf]
  %v1306 = vld [vmem:[%s1299 + $0x18] sm:$0xf]
  %v1307 = vld [vmem:[%s1299 + $0x1c] sm:$0xf]
  %v1308 = vld [vmem:[%s1299 + $0x20] sm:$0xf]
  %v1309 = vld [vmem:[%s1299 + $0x24] sm:$0xf]
  %v1310 = vld [vmem:[%s1299 + $0x28] sm:$0xf]
  %v1311 = vld [vmem:[%s1299 + $0x2c] sm:$0xf]
  %v1312 = vld [vmem:[%s1299 + $0x30] sm:$0xf]
  %v1313 = vld [vmem:[%s1299 + $0x34] sm:$0xf]
  %v1314 = vld [vmem:[%s1299 + $0x38] sm:$0xf]
  %v1315 = vld [vmem:[%s1299 + $0x3c] sm:$0xf]
  %v1316 = vlaneseq
  %v1317 = vshrl.u32 %v1316, 7
  %v1318 = vsub.s32 4, %v1317
  %v1319 = vrot.slane %v100, %v1318
  %v1336 = vunpack.c.l.b16 %v1300
  %v1337 = vunpack.c.l.b16 %v1301
  %v1338 = vunpack.c.l.b16 %v1302
  %v1339 = vunpack.c.l.b16 %v1303
  %v1340 = vunpack.c.l.b16 %v1304
  %v1341 = vunpack.c.l.b16 %v1305
  %v1342 = vunpack.c.l.b16 %v1306
  %v1343 = vunpack.c.l.b16 %v1307
  %v1344 = vunpack.c.l.b16 %v1308
  %v1345 = vunpack.c.l.b16 %v1309
  %v1346 = vunpack.c.l.b16 %v1310
  %v1347 = vunpack.c.l.b16 %v1311
  %v1348 = vunpack.c.l.b16 %v1312
  %v1349 = vunpack.c.l.b16 %v1313
  %v1350 = vunpack.c.l.b16 %v1314
  %v1351 = vunpack.c.l.b16 %v1315
  %v1352 = vpack.c.b16 %v1337, %v1336
  %v1353 = vpack.c.b16 %v1339, %v1338
  %v1354 = vpack.c.b16 %v1341, %v1340
  %v1355 = vpack.c.b16 %v1343, %v1342
  %v1356 = vpack.c.b16 %v1345, %v1344
  %v1357 = vpack.c.b16 %v1347, %v1346
  %v1358 = vpack.c.b16 %v1349, %v1348
  %v1359 = vpack.c.b16 %v1351, %v1350
  %1368 = vmatprep.subr.bf16.mxu0 0
  %1369 = vmatpush1.bf16.msra.mxu0 %v1352
  %1370 = vmatprep.subr.bf16.mxu0 0
  %1371 = vmatpush1.bf16.msra.mxu0 %v1353
  %1372 = vmatprep.subr.bf16.mxu0 0
  %1373 = vmatpush1.bf16.msra.mxu0 %v1354
  %1374 = vmatprep.subr.bf16.mxu0 0
  %1375 = vmatpush1.bf16.msra.mxu0 %v1355
  %1376 = vmatprep.subr.bf16.mxu0 0
  %1377 = vmatpush1.bf16.msra.mxu0 %v1356
  %1378 = vmatprep.subr.bf16.mxu0 0
  %1379 = vmatpush1.bf16.msra.mxu0 %v1357
  %1380 = vmatprep.subr.bf16.mxu0 0
  %1381 = vmatpush1.bf16.msra.mxu0 %v1358
  %1382 = vmatprep.subr.bf16.mxu0 0
  %1383 = vmatpush1.bf16.msra.mxu0 %v1359
  %1384 = vmatprep.subr.bf16.mxu0 0
  %1385 = vmatpush1.bf16.msra.mxu0 0
  %1386 = vmatprep.subr.bf16.mxu0 0
  %1387 = vmatpush1.bf16.msra.mxu0 0
  %1388 = vmatprep.subr.bf16.mxu0 0
  %1389 = vmatpush1.bf16.msra.mxu0 0
  %1390 = vmatprep.subr.bf16.mxu0 0
  %1391 = vmatpush1.bf16.msra.mxu0 0
  %1392 = vmatprep.subr.bf16.mxu0 0
  %1393 = vmatpush1.bf16.msra.mxu0 0
  %1394 = vmatprep.subr.bf16.mxu0 0
  %1395 = vmatpush1.bf16.msra.mxu0 0
  %1396 = vmatprep.subr.bf16.mxu0 0
  %1397 = vmatpush1.bf16.msra.mxu0 0
  %1398 = vmatprep.subr.bf16.mxu0 0
  %1399 = vmatpush1.bf16.msra.mxu0 0
  %1400 = vmatprep.mubr.bf16.mxu0 0
  %1401 = vmatmul.mubr.bf16.gmra.mrb[0].mxu0 %v1283
  %v1402 = vpop.f32.mrb[0].mxu0
  %v1403 = vadd.f32 %v1319, %v1402
  %v1404 = vpop.f32.mrb[0].mxu0
  %v1405 = vpop.f32.mrb[0].mxu0
  %v1406 = vadd.f32 %v1319, %v1405
  %v1407 = vpop.f32.mrb[0].mxu0
  %1408 = vmatprep.mubr.bf16.mxu0 0
  %1409 = vmatmul.mubr.bf16.gmra.mrb[0].mxu0 %v1284
  %v1410 = vpop.f32.mrb[0].mxu0
  %v1411 = vadd.f32 %v1319, %v1410
  %v1412 = vpop.f32.mrb[0].mxu0
  %v1413 = vpop.f32.mrb[0].mxu0
  %v1414 = vadd.f32 %v1319, %v1413
  %v1415 = vpop.f32.mrb[0].mxu0
  %1416 = vmatprep.mubr.bf16.mxu0 0
  %1417 = vmatmul.mubr.bf16.gmra.mrb[0].mxu0 %v1285
  %v1418 = vpop.f32.mrb[0].mxu0
  %v1419 = vadd.f32 %v1319, %v1418
  %v1420 = vpop.f32.mrb[0].mxu0
  %v1421 = vpop.f32.mrb[0].mxu0
  %v1422 = vadd.f32 %v1319, %v1421
  %v1423 = vpop.f32.mrb[0].mxu0
  %1424 = vmatprep.mubr.bf16.mxu0 0
  %1425 = vmatmul.mubr.bf16.gmra.mrb[0].mxu0 %v1286
  %v1426 = vpop.f32.mrb[0].mxu0
  %v1427 = vadd.f32 %v1319, %v1426
  %v1428 = vpop.f32.mrb[0].mxu0
  %v1429 = vpop.f32.mrb[0].mxu0
  %v1430 = vadd.f32 %v1319, %v1429
  %v1431 = vpop.f32.mrb[0].mxu0
  %1432 = vmatprep.mubr.bf16.mxu0 0
  %1433 = vmatmul.mubr.bf16.gmra.mrb[0].mxu0 %v1287
  %v1434 = vpop.f32.mrb[0].mxu0
  %v1435 = vadd.f32 %v1319, %v1434
  %v1436 = vpop.f32.mrb[0].mxu0
  %v1437 = vpop.f32.mrb[0].mxu0
  %v1438 = vadd.f32 %v1319, %v1437
  %v1439 = vpop.f32.mrb[0].mxu0
  %1440 = vmatprep.mubr.bf16.mxu0 0
  %1441 = vmatmul.mubr.bf16.gmra.mrb[0].mxu0 %v1288
  %v1442 = vpop.f32.mrb[0].mxu0
  %v1443 = vadd.f32 %v1319, %v1442
  %v1444 = vpop.f32.mrb[0].mxu0
  %v1445 = vpop.f32.mrb[0].mxu0
  %v1446 = vadd.f32 %v1319, %v1445
  %v1447 = vpop.f32.mrb[0].mxu0
  %1448 = vmatprep.mubr.bf16.mxu0 0
  %1449 = vmatmul.mubr.bf16.gmra.mrb[0].mxu0 %v1289
  %v1450 = vpop.f32.mrb[0].mxu0
  %v1451 = vadd.f32 %v1319, %v1450
  %v1452 = vpop.f32.mrb[0].mxu0
  %v1453 = vpop.f32.mrb[0].mxu0
  %v1454 = vadd.f32 %v1319, %v1453
  %v1455 = vpop.f32.mrb[0].mxu0
  %1456 = vmatprep.mubr.bf16.mxu0 0
  %1457 = vmatmul.mubr.bf16.gmra.mrb[0].mxu0 %v1290
  %v1458 = vpop.f32.mrb[0].mxu0
  %v1459 = vadd.f32 %v1319, %v1458
  %v1460 = vpop.f32.mrb[0].mxu0
  %v1461 = vpop.f32.mrb[0].mxu0
  %v1462 = vadd.f32 %v1319, %v1461
  %v1463 = vpop.f32.mrb[0].mxu0
  %1464 = vmatprep.mubr.bf16.mxu0 0
  %1465 = vmatmul.mubr.bf16.gmra.mrb[0].mxu0 %v1291
  %v1466 = vpop.f32.mrb[0].mxu0
  %v1467 = vadd.f32 %v1319, %v1466
  %v1468 = vpop.f32.mrb[0].mxu0
  %v1469 = vpop.f32.mrb[0].mxu0
  %v1470 = vadd.f32 %v1319, %v1469
  %v1471 = vpop.f32.mrb[0].mxu0
  %1472 = vmatprep.mubr.bf16.mxu0 0
  %1473 = vmatmul.mubr.bf16.gmra.mrb[0].mxu0 %v1292
  %v1474 = vpop.f32.mrb[0].mxu0
  %v1475 = vadd.f32 %v1319, %v1474
  %v1476 = vpop.f32.mrb[0].mxu0
  %v1477 = vpop.f32.mrb[0].mxu0
  %v1478 = vadd.f32 %v1319, %v1477
  %v1479 = vpop.f32.mrb[0].mxu0
  %1480 = vmatprep.mubr.bf16.mxu0 0
  %1481 = vmatmul.mubr.bf16.gmra.mrb[0].mxu0 %v1293
  %v1482 = vpop.f32.mrb[0].mxu0
  %v1483 = vadd.f32 %v1319, %v1482
  %v1484 = vpop.f32.mrb[0].mxu0
  %v1485 = vpop.f32.mrb[0].mxu0
  %v1486 = vadd.f32 %v1319, %v1485
  %v1487 = vpop.f32.mrb[0].mxu0
  %1488 = vmatprep.mubr.bf16.mxu0 0
  %1489 = vmatmul.mubr.bf16.gmra.mrb[0].mxu0 %v1294
  %v1490 = vpop.f32.mrb[0].mxu0
  %v1491 = vadd.f32 %v1319, %v1490
  %v1492 = vpop.f32.mrb[0].mxu0
  %v1493 = vpop.f32.mrb[0].mxu0
  %v1494 = vadd.f32 %v1319, %v1493
  %v1495 = vpop.f32.mrb[0].mxu0
  %1496 = vmatprep.mubr.bf16.mxu0 0
  %1497 = vmatmul.mubr.bf16.gmra.mrb[0].mxu0 %v1295
  %v1498 = vpop.f32.mrb[0].mxu0
  %v1499 = vadd.f32 %v1319, %v1498
  %v1500 = vpop.f32.mrb[0].mxu0
  %v1501 = vpop.f32.mrb[0].mxu0
  %v1502 = vadd.f32 %v1319, %v1501
  %v1503 = vpop.f32.mrb[0].mxu0
  %1504 = vmatprep.mubr.bf16.mxu0 0
  %1505 = vmatmul.mubr.bf16.gmra.mrb[0].mxu0 %v1296
  %v1506 = vpop.f32.mrb[0].mxu0
  %v1507 = vadd.f32 %v1319, %v1506
  %v1508 = vpop.f32.mrb[0].mxu0
  %v1509 = vpop.f32.mrb[0].mxu0
  %v1510 = vadd.f32 %v1319, %v1509
  %v1511 = vpop.f32.mrb[0].mxu0
  %1512 = vmatprep.mubr.bf16.mxu0 0
  %1513 = vmatmul.mubr.bf16.gmra.mrb[0].mxu0 %v1297
  %v1514 = vpop.f32.mrb[0].mxu0
  %v1515 = vadd.f32 %v1319, %v1514
  %v1516 = vpop.f32.mrb[0].mxu0
  %v1517 = vpop.f32.mrb[0].mxu0
  %v1518 = vadd.f32 %v1319, %v1517
  %v1519 = vpop.f32.mrb[0].mxu0
  %1520 = vmatprep.mubr.bf16.mxu0 0
  %1521 = vmatmul.mubr.bf16.gmra.mrb[0].mxu0 %v1298
  %v1522 = vpop.f32.mrb[0].mxu0
  %v1523 = vadd.f32 %v1319, %v1522
  %v1524 = vpop.f32.mrb[0].mxu0
  %v1525 = vpop.f32.mrb[0].mxu0
  %v1526 = vadd.f32 %v1319, %v1525
  %v1527 = vpop.f32.mrb[0].mxu0
  %1528 = vdwg.mxu0
  %v1529 = vmax.f32 %v1403, 0.0
  %v1530 = vmax.f32 %v1406, 0.0
  %v1531 = vmax.f32 %v1411, 0.0
  %v1532 = vmax.f32 %v1414, 0.0
  %v1533 = vmax.f32 %v1419, 0.0
  %v1534 = vmax.f32 %v1422, 0.0
  %v1535 = vmax.f32 %v1427, 0.0
  %v1536 = vmax.f32 %v1430, 0.0
  %v1537 = vmax.f32 %v1435, 0.0
  %v1538 = vmax.f32 %v1438, 0.0
  %v1539 = vmax.f32 %v1443, 0.0
  %v1540 = vmax.f32 %v1446, 0.0
  %v1541 = vmax.f32 %v1451, 0.0
  %v1542 = vmax.f32 %v1454, 0.0
  %v1543 = vmax.f32 %v1459, 0.0
  %v1544 = vmax.f32 %v1462, 0.0
  %v1545 = vmax.f32 %v1467, 0.0
  %v1546 = vmax.f32 %v1470, 0.0
  %v1547 = vmax.f32 %v1475, 0.0
  %v1548 = vmax.f32 %v1478, 0.0
  %v1549 = vmax.f32 %v1483, 0.0
  %v1550 = vmax.f32 %v1486, 0.0
  %v1551 = vmax.f32 %v1491, 0.0
  %v1552 = vmax.f32 %v1494, 0.0
  %v1553 = vmax.f32 %v1499, 0.0
  %v1554 = vmax.f32 %v1502, 0.0
  %v1555 = vmax.f32 %v1507, 0.0
  %v1556 = vmax.f32 %v1510, 0.0
  %v1557 = vmax.f32 %v1515, 0.0
  %v1558 = vmax.f32 %v1518, 0.0
  %v1559 = vmax.f32 %v1523, 0.0
  %v1560 = vmax.f32 %v1526, 0.0
  %v1561 = vpack.c.bf16 %v1530, %v1529
  %v1562 = vpack.c.bf16 %v1532, %v1531
  %v1563 = vpack.c.bf16 %v1534, %v1533
  %v1564 = vpack.c.bf16 %v1536, %v1535
  %v1565 = vpack.c.bf16 %v1538, %v1537
  %v1566 = vpack.c.bf16 %v1540, %v1539
  %v1567 = vpack.c.bf16 %v1542, %v1541
  %v1568 = vpack.c.bf16 %v1544, %v1543
  %v1569 = vpack.c.bf16 %v1546, %v1545
  %v1570 = vpack.c.bf16 %v1548, %v1547
  %v1571 = vpack.c.bf16 %v1550, %v1549
  %v1572 = vpack.c.bf16 %v1552, %v1551
  %v1573 = vpack.c.bf16 %v1554, %v1553
  %v1574 = vpack.c.bf16 %v1556, %v1555
  %v1575 = vpack.c.bf16 %v1558, %v1557
  %v1576 = vpack.c.bf16 %v1560, %v1559
  %s1577 = scalar_lea.vmem %s3, 256
  %v1578 = vld [vmem:[%s1577] sm:$0xf]
  %v1579 = vld [vmem:[%s1577 + $0x4] sm:$0xf]
  %v1580 = vld [vmem:[%s1577 + $0x8] sm:$0xf]
  %v1581 = vld [vmem:[%s1577 + $0xc] sm:$0xf]
  %v1582 = vld [vmem:[%s1577 + $0x10] sm:$0xf]
  %v1583 = vld [vmem:[%s1577 + $0x14] sm:$0xf]
  %v1584 = vld [vmem:[%s1577 + $0x18] sm:$0xf]
  %v1585 = vld [vmem:[%s1577 + $0x1c] sm:$0xf]
  %v1586 = vld [vmem:[%s1577 + $0x20] sm:$0xf]
  %v1587 = vld [vmem:[%s1577 + $0x24] sm:$0xf]
  %v1588 = vld [vmem:[%s1577 + $0x28] sm:$0xf]
  %v1589 = vld [vmem:[%s1577 + $0x2c] sm:$0xf]
  %v1590 = vld [vmem:[%s1577 + $0x30] sm:$0xf]
  %v1591 = vld [vmem:[%s1577 + $0x34] sm:$0xf]
  %v1592 = vld [vmem:[%s1577 + $0x38] sm:$0xf]
  %v1593 = vld [vmem:[%s1577 + $0x3c] sm:$0xf]
  %s1594 = scalar_lea.vmem %s2, 16
  %v1595 = vld [vmem:[%s1594] sm:$0xf]
  %v1596 = vld [vmem:[%s1594 + $0x4] sm:$0xf]
  %v1597 = vld [vmem:[%s1594 + $0x8] sm:$0xf]
  %v1598 = vld [vmem:[%s1594 + $0xc] sm:$0x3]
  %v1603 = vunpack.c.l.b16 %v1595
  %v1604 = vunpack.c.l.b16 %v1596
  %v1605 = vunpack.c.l.b16 %v1597
  %v1606 = vunpack.c.l.b16 %v1598
  %v1607 = vpack.c.b16 %v1604, %v1603
  %v1608 = vpack.c.b16 %v1606, %v1605
  %v1611 = vand.u32 %v1608, %v253
  %1613 = vmatprep.subr.bf16.mxu0 0
  %1614 = vmatpush1.bf16.msra.mxu0 %v1607
  %1615 = vmatprep.subr.bf16.mxu0 0
  %1616 = vmatpush1.bf16.msra.mxu0 %v1611
  %1617 = vmatprep.subr.bf16.mxu0 0
  %1618 = vmatpush1.bf16.msra.mxu0 0
  %1619 = vmatprep.subr.bf16.mxu0 0
  %1620 = vmatpush1.bf16.msra.mxu0 0
  %1621 = vmatprep.subr.bf16.mxu0 0
  %1622 = vmatpush1.bf16.msra.mxu0 0
  %1623 = vmatprep.subr.bf16.mxu0 0
  %1624 = vmatpush1.bf16.msra.mxu0 0
  %1625 = vmatprep.subr.bf16.mxu0 0
  %1626 = vmatpush1.bf16.msra.mxu0 0
  %1627 = vmatprep.subr.bf16.mxu0 0
  %1628 = vmatpush1.bf16.msra.mxu0 0
  %1629 = vmatprep.subr.bf16.mxu0 0
  %1630 = vmatpush1.bf16.msra.mxu0 0
  %1631 = vmatprep.subr.bf16.mxu0 0
  %1632 = vmatpush1.bf16.msra.mxu0 0
  %1633 = vmatprep.subr.bf16.mxu0 0
  %1634 = vmatpush1.bf16.msra.mxu0 0
  %1635 = vmatprep.subr.bf16.mxu0 0
  %1636 = vmatpush1.bf16.msra.mxu0 0
  %1637 = vmatprep.subr.bf16.mxu0 0
  %1638 = vmatpush1.bf16.msra.mxu0 0
  %1639 = vmatprep.subr.bf16.mxu0 0
  %1640 = vmatpush1.bf16.msra.mxu0 0
  %1641 = vmatprep.subr.bf16.mxu0 0
  %1642 = vmatpush1.bf16.msra.mxu0 0
  %1643 = vmatprep.subr.bf16.mxu0 0
  %1644 = vmatpush1.bf16.msra.mxu0 0
  %1645 = vmatprep.mubr.bf16.mxu0 0
  %1646 = vmatmul.mubr.bf16.gmra.mrb[0].mxu0 %v203
  %v1647 = vpop.f32.mrb[0].mxu0
  %v1648 = vadd.f32 0.0, %v1647
  %v1649 = vpop.f32.mrb[0].mxu0
  %v1650 = vpop.f32.mrb[0].mxu0
  %v1651 = vadd.f32 0.0, %v1650
  %v1652 = vpop.f32.mrb[0].mxu0
  %1653 = vmatprep.mubr.bf16.mxu0 0
  %1654 = vmatmul.mubr.bf16.gmra.mrb[0].mxu0 %v206
  %v1655 = vpop.f32.mrb[0].mxu0
  %v1656 = vadd.f32 0.0, %v1655
  %v1657 = vpop.f32.mrb[0].mxu0
  %v1658 = vpop.f32.mrb[0].mxu0
  %v1659 = vadd.f32 0.0, %v1658
  %v1660 = vpop.f32.mrb[0].mxu0
  %1661 = vmatprep.mubr.bf16.mxu0 0
  %1662 = vmatmul.mubr.bf16.gmra.mrb[0].mxu0 %v209
  %v1663 = vpop.f32.mrb[0].mxu0
  %v1664 = vadd.f32 0.0, %v1663
  %v1665 = vpop.f32.mrb[0].mxu0
  %v1666 = vpop.f32.mrb[0].mxu0
  %v1667 = vadd.f32 0.0, %v1666
  %v1668 = vpop.f32.mrb[0].mxu0
  %1669 = vmatprep.mubr.bf16.mxu0 0
  %1670 = vmatmul.mubr.bf16.gmra.mrb[0].mxu0 %v212
  %v1671 = vpop.f32.mrb[0].mxu0
  %v1672 = vadd.f32 0.0, %v1671
  %v1673 = vpop.f32.mrb[0].mxu0
  %v1674 = vpop.f32.mrb[0].mxu0
  %v1675 = vadd.f32 0.0, %v1674
  %v1676 = vpop.f32.mrb[0].mxu0
  %1677 = vmatprep.mubr.bf16.mxu0 0
  %1678 = vmatmul.mubr.bf16.gmra.mrb[0].mxu0 %v215
  %v1679 = vpop.f32.mrb[0].mxu0
  %v1680 = vadd.f32 0.0, %v1679
  %v1681 = vpop.f32.mrb[0].mxu0
  %v1682 = vpop.f32.mrb[0].mxu0
  %v1683 = vadd.f32 0.0, %v1682
  %v1684 = vpop.f32.mrb[0].mxu0
  %1685 = vmatprep.mubr.bf16.mxu0 0
  %1686 = vmatmul.mubr.bf16.gmra.mrb[0].mxu0 %v218
  %v1687 = vpop.f32.mrb[0].mxu0
  %v1688 = vadd.f32 0.0, %v1687
  %v1689 = vpop.f32.mrb[0].mxu0
  %v1690 = vpop.f32.mrb[0].mxu0
  %v1691 = vadd.f32 0.0, %v1690
  %v1692 = vpop.f32.mrb[0].mxu0
  %1693 = vmatprep.mubr.bf16.mxu0 0
  %1694 = vmatmul.mubr.bf16.gmra.mrb[0].mxu0 %v221
  %v1695 = vpop.f32.mrb[0].mxu0
  %v1696 = vadd.f32 0.0, %v1695
  %v1697 = vpop.f32.mrb[0].mxu0
  %v1698 = vpop.f32.mrb[0].mxu0
  %v1699 = vadd.f32 0.0, %v1698
  %v1700 = vpop.f32.mrb[0].mxu0
  %1701 = vmatprep.mubr.bf16.mxu0 0
  %1702 = vmatmul.mubr.bf16.gmra.mrb[0].mxu0 %v224
  %v1703 = vpop.f32.mrb[0].mxu0
  %v1704 = vadd.f32 0.0, %v1703
  %v1705 = vpop.f32.mrb[0].mxu0
  %v1706 = vpop.f32.mrb[0].mxu0
  %v1707 = vadd.f32 0.0, %v1706
  %v1708 = vpop.f32.mrb[0].mxu0
  %1709 = vmatprep.mubr.bf16.mxu0 0
  %1710 = vmatmul.mubr.bf16.gmra.mrb[0].mxu0 %v227
  %v1711 = vpop.f32.mrb[0].mxu0
  %v1712 = vadd.f32 0.0, %v1711
  %v1713 = vpop.f32.mrb[0].mxu0
  %v1714 = vpop.f32.mrb[0].mxu0
  %v1715 = vadd.f32 0.0, %v1714
  %v1716 = vpop.f32.mrb[0].mxu0
  %1717 = vmatprep.mubr.bf16.mxu0 0
  %1718 = vmatmul.mubr.bf16.gmra.mrb[0].mxu0 %v230
  %v1719 = vpop.f32.mrb[0].mxu0
  %v1720 = vadd.f32 0.0, %v1719
  %v1721 = vpop.f32.mrb[0].mxu0
  %v1722 = vpop.f32.mrb[0].mxu0
  %v1723 = vadd.f32 0.0, %v1722
  %v1724 = vpop.f32.mrb[0].mxu0
  %1725 = vmatprep.mubr.bf16.mxu0 0
  %1726 = vmatmul.mubr.bf16.gmra.mrb[0].mxu0 %v233
  %v1727 = vpop.f32.mrb[0].mxu0
  %v1728 = vadd.f32 0.0, %v1727
  %v1729 = vpop.f32.mrb[0].mxu0
  %v1730 = vpop.f32.mrb[0].mxu0
  %v1731 = vadd.f32 0.0, %v1730
  %v1732 = vpop.f32.mrb[0].mxu0
  %1733 = vmatprep.mubr.bf16.mxu0 0
  %1734 = vmatmul.mubr.bf16.gmra.mrb[0].mxu0 %v236
  %v1735 = vpop.f32.mrb[0].mxu0
  %v1736 = vadd.f32 0.0, %v1735
  %v1737 = vpop.f32.mrb[0].mxu0
  %v1738 = vpop.f32.mrb[0].mxu0
  %v1739 = vadd.f32 0.0, %v1738
  %v1740 = vpop.f32.mrb[0].mxu0
  %1741 = vmatprep.mubr.bf16.mxu0 0
  %1742 = vmatmul.mubr.bf16.gmra.mrb[0].mxu0 %v239
  %v1743 = vpop.f32.mrb[0].mxu0
  %v1744 = vadd.f32 0.0, %v1743
  %v1745 = vpop.f32.mrb[0].mxu0
  %v1746 = vpop.f32.mrb[0].mxu0
  %v1747 = vadd.f32 0.0, %v1746
  %v1748 = vpop.f32.mrb[0].mxu0
  %1749 = vmatprep.mubr.bf16.mxu0 0
  %1750 = vmatmul.mubr.bf16.gmra.mrb[0].mxu0 %v242
  %v1751 = vpop.f32.mrb[0].mxu0
  %v1752 = vadd.f32 0.0, %v1751
  %v1753 = vpop.f32.mrb[0].mxu0
  %v1754 = vpop.f32.mrb[0].mxu0
  %v1755 = vadd.f32 0.0, %v1754
  %v1756 = vpop.f32.mrb[0].mxu0
  %1757 = vmatprep.mubr.bf16.mxu0 0
  %1758 = vmatmul.mubr.bf16.gmra.mrb[0].mxu0 %v245
  %v1759 = vpop.f32.mrb[0].mxu0
  %v1760 = vadd.f32 0.0, %v1759
  %v1761 = vpop.f32.mrb[0].mxu0
  %v1762 = vpop.f32.mrb[0].mxu0
  %v1763 = vadd.f32 0.0, %v1762
  %v1764 = vpop.f32.mrb[0].mxu0
  %1765 = vmatprep.mubr.bf16.mxu0 0
  %1766 = vmatmul.mubr.bf16.gmra.mrb[0].mxu0 %v248
  %v1767 = vpop.f32.mrb[0].mxu0
  %v1768 = vadd.f32 0.0, %v1767
  %v1769 = vpop.f32.mrb[0].mxu0
  %v1770 = vpop.f32.mrb[0].mxu0
  %v1771 = vadd.f32 0.0, %v1770
  %v1772 = vpop.f32.mrb[0].mxu0
  %1773 = vdwg.mxu0
  %v1790 = vunpack.c.l.b16 %v1578
  %v1791 = vunpack.c.l.b16 %v1579
  %v1792 = vunpack.c.l.b16 %v1580
  %v1793 = vunpack.c.l.b16 %v1581
  %v1794 = vunpack.c.l.b16 %v1582
  %v1795 = vunpack.c.l.b16 %v1583
  %v1796 = vunpack.c.l.b16 %v1584
  %v1797 = vunpack.c.l.b16 %v1585
  %v1798 = vunpack.c.l.b16 %v1586
  %v1799 = vunpack.c.l.b16 %v1587
  %v1800 = vunpack.c.l.b16 %v1588
  %v1801 = vunpack.c.l.b16 %v1589
  %v1802 = vunpack.c.l.b16 %v1590
  %v1803 = vunpack.c.l.b16 %v1591
  %v1804 = vunpack.c.l.b16 %v1592
  %v1805 = vunpack.c.l.b16 %v1593
  %v1806 = vpack.c.b16 %v1791, %v1790
  %v1807 = vpack.c.b16 %v1793, %v1792
  %v1808 = vpack.c.b16 %v1795, %v1794
  %v1809 = vpack.c.b16 %v1797, %v1796
  %v1810 = vpack.c.b16 %v1799, %v1798
  %v1811 = vpack.c.b16 %v1801, %v1800
  %v1812 = vpack.c.b16 %v1803, %v1802
  %v1813 = vpack.c.b16 %v1805, %v1804
  %1822 = vmatprep.subr.bf16.mxu0 0
  %1823 = vmatpush1.bf16.msra.mxu0 %v1806
  %1824 = vmatprep.subr.bf16.mxu0 0
  %1825 = vmatpush1.bf16.msra.mxu0 %v1807
  %1826 = vmatprep.subr.bf16.mxu0 0
  %1827 = vmatpush1.bf16.msra.mxu0 %v1808
  %1828 = vmatprep.subr.bf16.mxu0 0
  %1829 = vmatpush1.bf16.msra.mxu0 %v1809
  %1830 = vmatprep.subr.bf16.mxu0 0
  %1831 = vmatpush1.bf16.msra.mxu0 %v1810
  %1832 = vmatprep.subr.bf16.mxu0 0
  %1833 = vmatpush1.bf16.msra.mxu0 %v1811
  %1834 = vmatprep.subr.bf16.mxu0 0
  %1835 = vmatpush1.bf16.msra.mxu0 %v1812
  %1836 = vmatprep.subr.bf16.mxu0 0
  %1837 = vmatpush1.bf16.msra.mxu0 %v1813
  %1838 = vmatprep.subr.bf16.mxu0 0
  %1839 = vmatpush1.bf16.msra.mxu0 0
  %1840 = vmatprep.subr.bf16.mxu0 0
  %1841 = vmatpush1.bf16.msra.mxu0 0
  %1842 = vmatprep.subr.bf16.mxu0 0
  %1843 = vmatpush1.bf16.msra.mxu0 0
  %1844 = vmatprep.subr.bf16.mxu0 0
  %1845 = vmatpush1.bf16.msra.mxu0 0
  %1846 = vmatprep.subr.bf16.mxu0 0
  %1847 = vmatpush1.bf16.msra.mxu0 0
  %1848 = vmatprep.subr.bf16.mxu0 0
  %1849 = vmatpush1.bf16.msra.mxu0 0
  %1850 = vmatprep.subr.bf16.mxu0 0
  %1851 = vmatpush1.bf16.msra.mxu0 0
  %1852 = vmatprep.subr.bf16.mxu0 0
  %1853 = vmatpush1.bf16.msra.mxu0 0
  %1854 = vmatprep.mubr.bf16.mxu0 0
  %1855 = vmatmul.mubr.bf16.gmra.mrb[0].mxu0 %v1561
  %v1856 = vpop.f32.mrb[0].mxu0
  %v1857 = vadd.f32 %v1648, %v1856
  %v1858 = vpop.f32.mrb[0].mxu0
  %v1859 = vpop.f32.mrb[0].mxu0
  %v1860 = vadd.f32 %v1651, %v1859
  %v1861 = vpop.f32.mrb[0].mxu0
  %1862 = vmatprep.mubr.bf16.mxu0 0
  %1863 = vmatmul.mubr.bf16.gmra.mrb[0].mxu0 %v1562
  %v1864 = vpop.f32.mrb[0].mxu0
  %v1865 = vadd.f32 %v1656, %v1864
  %v1866 = vpop.f32.mrb[0].mxu0
  %v1867 = vpop.f32.mrb[0].mxu0
  %v1868 = vadd.f32 %v1659, %v1867
  %v1869 = vpop.f32.mrb[0].mxu0
  %1870 = vmatprep.mubr.bf16.mxu0 0
  %1871 = vmatmul.mubr.bf16.gmra.mrb[0].mxu0 %v1563
  %v1872 = vpop.f32.mrb[0].mxu0
  %v1873 = vadd.f32 %v1664, %v1872
  %v1874 = vpop.f32.mrb[0].mxu0
  %v1875 = vpop.f32.mrb[0].mxu0
  %v1876 = vadd.f32 %v1667, %v1875
  %v1877 = vpop.f32.mrb[0].mxu0
  %1878 = vmatprep.mubr.bf16.mxu0 0
  %1879 = vmatmul.mubr.bf16.gmra.mrb[0].mxu0 %v1564
  %v1880 = vpop.f32.mrb[0].mxu0
  %v1881 = vadd.f32 %v1672, %v1880
  %v1882 = vpop.f32.mrb[0].mxu0
  %v1883 = vpop.f32.mrb[0].mxu0
  %v1884 = vadd.f32 %v1675, %v1883
  %v1885 = vpop.f32.mrb[0].mxu0
  %1886 = vmatprep.mubr.bf16.mxu0 0
  %1887 = vmatmul.mubr.bf16.gmra.mrb[0].mxu0 %v1565
  %v1888 = vpop.f32.mrb[0].mxu0
  %v1889 = vadd.f32 %v1680, %v1888
  %v1890 = vpop.f32.mrb[0].mxu0
  %v1891 = vpop.f32.mrb[0].mxu0
  %v1892 = vadd.f32 %v1683, %v1891
  %v1893 = vpop.f32.mrb[0].mxu0
  %1894 = vmatprep.mubr.bf16.mxu0 0
  %1895 = vmatmul.mubr.bf16.gmra.mrb[0].mxu0 %v1566
  %v1896 = vpop.f32.mrb[0].mxu0
  %v1897 = vadd.f32 %v1688, %v1896
  %v1898 = vpop.f32.mrb[0].mxu0
  %v1899 = vpop.f32.mrb[0].mxu0
  %v1900 = vadd.f32 %v1691, %v1899
  %v1901 = vpop.f32.mrb[0].mxu0
  %1902 = vmatprep.mubr.bf16.mxu0 0
  %1903 = vmatmul.mubr.bf16.gmra.mrb[0].mxu0 %v1567
  %v1904 = vpop.f32.mrb[0].mxu0
  %v1905 = vadd.f32 %v1696, %v1904
  %v1906 = vpop.f32.mrb[0].mxu0
  %v1907 = vpop.f32.mrb[0].mxu0
  %v1908 = vadd.f32 %v1699, %v1907
  %v1909 = vpop.f32.mrb[0].mxu0
  %1910 = vmatprep.mubr.bf16.mxu0 0
  %1911 = vmatmul.mubr.bf16.gmra.mrb[0].mxu0 %v1568
  %v1912 = vpop.f32.mrb[0].mxu0
  %v1913 = vadd.f32 %v1704, %v1912
  %v1914 = vpop.f32.mrb[0].mxu0
  %v1915 = vpop.f32.mrb[0].mxu0
  %v1916 = vadd.f32 %v1707, %v1915
  %v1917 = vpop.f32.mrb[0].mxu0
  %1918 = vmatprep.mubr.bf16.mxu0 0
  %1919 = vmatmul.mubr.bf16.gmra.mrb[0].mxu0 %v1569
  %v1920 = vpop.f32.mrb[0].mxu0
  %v1921 = vadd.f32 %v1712, %v1920
  %v1922 = vpop.f32.mrb[0].mxu0
  %v1923 = vpop.f32.mrb[0].mxu0
  %v1924 = vadd.f32 %v1715, %v1923
  %v1925 = vpop.f32.mrb[0].mxu0
  %1926 = vmatprep.mubr.bf16.mxu0 0
  %1927 = vmatmul.mubr.bf16.gmra.mrb[0].mxu0 %v1570
  %v1928 = vpop.f32.mrb[0].mxu0
  %v1929 = vadd.f32 %v1720, %v1928
  %v1930 = vpop.f32.mrb[0].mxu0
  %v1931 = vpop.f32.mrb[0].mxu0
  %v1932 = vadd.f32 %v1723, %v1931
  %v1933 = vpop.f32.mrb[0].mxu0
  %1934 = vmatprep.mubr.bf16.mxu0 0
  %1935 = vmatmul.mubr.bf16.gmra.mrb[0].mxu0 %v1571
  %v1936 = vpop.f32.mrb[0].mxu0
  %v1937 = vadd.f32 %v1728, %v1936
  %v1938 = vpop.f32.mrb[0].mxu0
  %v1939 = vpop.f32.mrb[0].mxu0
  %v1940 = vadd.f32 %v1731, %v1939
  %v1941 = vpop.f32.mrb[0].mxu0
  %1942 = vmatprep.mubr.bf16.mxu0 0
  %1943 = vmatmul.mubr.bf16.gmra.mrb[0].mxu0 %v1572
  %v1944 = vpop.f32.mrb[0].mxu0
  %v1945 = vadd.f32 %v1736, %v1944
  %v1946 = vpop.f32.mrb[0].mxu0
  %v1947 = vpop.f32.mrb[0].mxu0
  %v1948 = vadd.f32 %v1739, %v1947
  %v1949 = vpop.f32.mrb[0].mxu0
  %1950 = vmatprep.mubr.bf16.mxu0 0
  %1951 = vmatmul.mubr.bf16.gmra.mrb[0].mxu0 %v1573
  %v1952 = vpop.f32.mrb[0].mxu0
  %v1953 = vadd.f32 %v1744, %v1952
  %v1954 = vpop.f32.mrb[0].mxu0
  %v1955 = vpop.f32.mrb[0].mxu0
  %v1956 = vadd.f32 %v1747, %v1955
  %v1957 = vpop.f32.mrb[0].mxu0
  %1958 = vmatprep.mubr.bf16.mxu0 0
  %1959 = vmatmul.mubr.bf16.gmra.mrb[0].mxu0 %v1574
  %v1960 = vpop.f32.mrb[0].mxu0
  %v1961 = vadd.f32 %v1752, %v1960
  %v1962 = vpop.f32.mrb[0].mxu0
  %v1963 = vpop.f32.mrb[0].mxu0
  %v1964 = vadd.f32 %v1755, %v1963
  %v1965 = vpop.f32.mrb[0].mxu0
  %1966 = vmatprep.mubr.bf16.mxu0 0
  %1967 = vmatmul.mubr.bf16.gmra.mrb[0].mxu0 %v1575
  %v1968 = vpop.f32.mrb[0].mxu0
  %v1969 = vadd.f32 %v1760, %v1968
  %v1970 = vpop.f32.mrb[0].mxu0
  %v1971 = vpop.f32.mrb[0].mxu0
  %v1972 = vadd.f32 %v1763, %v1971
  %v1973 = vpop.f32.mrb[0].mxu0
  %1974 = vmatprep.mubr.bf16.mxu0 0
  %1975 = vmatmul.mubr.bf16.gmra.mrb[0].mxu0 %v1576
  %v1976 = vpop.f32.mrb[0].mxu0
  %v1977 = vadd.f32 %v1768, %v1976
  %v1978 = vpop.f32.mrb[0].mxu0
  %v1979 = vpop.f32.mrb[0].mxu0
  %v1980 = vadd.f32 %v1771, %v1979
  %v1981 = vpop.f32.mrb[0].mxu0
  %1982 = vdwg.mxu0
  %v1983 = vlaneseq
  %v1984 = vshrl.u32 %v1983, 7
  %v1985 = vsub.s32 5, %v1984
  %v1986 = vrot.slane %v100, %v1985
  %v1987 = vadd.f32 %v1857, %v1986
  %v1988 = vadd.f32 %v1860, %v1986
  %v1989 = vadd.f32 %v1865, %v1986
  %v1990 = vadd.f32 %v1868, %v1986
  %v1991 = vadd.f32 %v1873, %v1986
  %v1992 = vadd.f32 %v1876, %v1986
  %v1993 = vadd.f32 %v1881, %v1986
  %v1994 = vadd.f32 %v1884, %v1986
  %v1995 = vadd.f32 %v1889, %v1986
  %v1996 = vadd.f32 %v1892, %v1986
  %v1997 = vadd.f32 %v1897, %v1986
  %v1998 = vadd.f32 %v1900, %v1986
  %v1999 = vadd.f32 %v1905, %v1986
  %v2000 = vadd.f32 %v1908, %v1986
  %v2001 = vadd.f32 %v1913, %v1986
  %v2002 = vadd.f32 %v1916, %v1986
  %v2003 = vadd.f32 %v1921, %v1986
  %v2004 = vadd.f32 %v1924, %v1986
  %v2005 = vadd.f32 %v1929, %v1986
  %v2006 = vadd.f32 %v1932, %v1986
  %v2007 = vadd.f32 %v1937, %v1986
  %v2008 = vadd.f32 %v1940, %v1986
  %v2009 = vadd.f32 %v1945, %v1986
  %v2010 = vadd.f32 %v1948, %v1986
  %v2011 = vadd.f32 %v1953, %v1986
  %v2012 = vadd.f32 %v1956, %v1986
  %v2013 = vadd.f32 %v1961, %v1986
  %v2014 = vadd.f32 %v1964, %v1986
  %v2015 = vadd.f32 %v1969, %v1986
  %v2016 = vadd.f32 %v1972, %v1986
  %v2017 = vadd.f32 %v1977, %v1986
  %v2018 = vadd.f32 %v1980, %v1986
  %v2019 = vmax.f32 %v1987, 0.0
  %v2020 = vmax.f32 %v1988, 0.0
  %v2021 = vmax.f32 %v1989, 0.0
  %v2022 = vmax.f32 %v1990, 0.0
  %v2023 = vmax.f32 %v1991, 0.0
  %v2024 = vmax.f32 %v1992, 0.0
  %v2025 = vmax.f32 %v1993, 0.0
  %v2026 = vmax.f32 %v1994, 0.0
  %v2027 = vmax.f32 %v1995, 0.0
  %v2028 = vmax.f32 %v1996, 0.0
  %v2029 = vmax.f32 %v1997, 0.0
  %v2030 = vmax.f32 %v1998, 0.0
  %v2031 = vmax.f32 %v1999, 0.0
  %v2032 = vmax.f32 %v2000, 0.0
  %v2033 = vmax.f32 %v2001, 0.0
  %v2034 = vmax.f32 %v2002, 0.0
  %v2035 = vmax.f32 %v2003, 0.0
  %v2036 = vmax.f32 %v2004, 0.0
  %v2037 = vmax.f32 %v2005, 0.0
  %v2038 = vmax.f32 %v2006, 0.0
  %v2039 = vmax.f32 %v2007, 0.0
  %v2040 = vmax.f32 %v2008, 0.0
  %v2041 = vmax.f32 %v2009, 0.0
  %v2042 = vmax.f32 %v2010, 0.0
  %v2043 = vmax.f32 %v2011, 0.0
  %v2044 = vmax.f32 %v2012, 0.0
  %v2045 = vmax.f32 %v2013, 0.0
  %v2046 = vmax.f32 %v2014, 0.0
  %v2047 = vmax.f32 %v2015, 0.0
  %v2048 = vmax.f32 %v2016, 0.0
  %v2049 = vmax.f32 %v2017, 0.0
  %v2050 = vmax.f32 %v2018, 0.0
  %v2051 = vpack.c.bf16 %v2020, %v2019
  %v2052 = vpack.c.bf16 %v2022, %v2021
  %v2053 = vpack.c.bf16 %v2024, %v2023
  %v2054 = vpack.c.bf16 %v2026, %v2025
  %v2055 = vpack.c.bf16 %v2028, %v2027
  %v2056 = vpack.c.bf16 %v2030, %v2029
  %v2057 = vpack.c.bf16 %v2032, %v2031
  %v2058 = vpack.c.bf16 %v2034, %v2033
  %v2059 = vpack.c.bf16 %v2036, %v2035
  %v2060 = vpack.c.bf16 %v2038, %v2037
  %v2061 = vpack.c.bf16 %v2040, %v2039
  %v2062 = vpack.c.bf16 %v2042, %v2041
  %v2063 = vpack.c.bf16 %v2044, %v2043
  %v2064 = vpack.c.bf16 %v2046, %v2045
  %v2065 = vpack.c.bf16 %v2048, %v2047
  %v2066 = vpack.c.bf16 %v2050, %v2049
  %s2067 = scalar_lea.vmem %s3, 320
  %v2068 = vld [vmem:[%s2067] sm:$0xf]
  %v2069 = vld [vmem:[%s2067 + $0x4] sm:$0xf]
  %v2070 = vld [vmem:[%s2067 + $0x8] sm:$0xf]
  %v2071 = vld [vmem:[%s2067 + $0xc] sm:$0xf]
  %v2072 = vld [vmem:[%s2067 + $0x10] sm:$0xf]
  %v2073 = vld [vmem:[%s2067 + $0x14] sm:$0xf]
  %v2074 = vld [vmem:[%s2067 + $0x18] sm:$0xf]
  %v2075 = vld [vmem:[%s2067 + $0x1c] sm:$0xf]
  %v2076 = vld [vmem:[%s2067 + $0x20] sm:$0xf]
  %v2077 = vld [vmem:[%s2067 + $0x24] sm:$0xf]
  %v2078 = vld [vmem:[%s2067 + $0x28] sm:$0xf]
  %v2079 = vld [vmem:[%s2067 + $0x2c] sm:$0xf]
  %v2080 = vld [vmem:[%s2067 + $0x30] sm:$0xf]
  %v2081 = vld [vmem:[%s2067 + $0x34] sm:$0xf]
  %v2082 = vld [vmem:[%s2067 + $0x38] sm:$0xf]
  %v2083 = vld [vmem:[%s2067 + $0x3c] sm:$0xf]
  %v2084 = vlaneseq
  %v2085 = vshrl.u32 %v2084, 7
  %v2086 = vsub.s32 6, %v2085
  %v2087 = vrot.slane %v100, %v2086
  %v2104 = vunpack.c.l.b16 %v2068
  %v2105 = vunpack.c.l.b16 %v2069
  %v2106 = vunpack.c.l.b16 %v2070
  %v2107 = vunpack.c.l.b16 %v2071
  %v2108 = vunpack.c.l.b16 %v2072
  %v2109 = vunpack.c.l.b16 %v2073
  %v2110 = vunpack.c.l.b16 %v2074
  %v2111 = vunpack.c.l.b16 %v2075
  %v2112 = vunpack.c.l.b16 %v2076
  %v2113 = vunpack.c.l.b16 %v2077
  %v2114 = vunpack.c.l.b16 %v2078
  %v2115 = vunpack.c.l.b16 %v2079
  %v2116 = vunpack.c.l.b16 %v2080
  %v2117 = vunpack.c.l.b16 %v2081
  %v2118 = vunpack.c.l.b16 %v2082
  %v2119 = vunpack.c.l.b16 %v2083
  %v2120 = vpack.c.b16 %v2105, %v2104
  %v2121 = vpack.c.b16 %v2107, %v2106
  %v2122 = vpack.c.b16 %v2109, %v2108
  %v2123 = vpack.c.b16 %v2111, %v2110
  %v2124 = vpack.c.b16 %v2113, %v2112
  %v2125 = vpack.c.b16 %v2115, %v2114
  %v2126 = vpack.c.b16 %v2117, %v2116
  %v2127 = vpack.c.b16 %v2119, %v2118
  %2136 = vmatprep.subr.bf16.mxu0 0
  %2137 = vmatpush1.bf16.msra.mxu0 %v2120
  %2138 = vmatprep.subr.bf16.mxu0 0
  %2139 = vmatpush1.bf16.msra.mxu0 %v2121
  %2140 = vmatprep.subr.bf16.mxu0 0
  %2141 = vmatpush1.bf16.msra.mxu0 %v2122
  %2142 = vmatprep.subr.bf16.mxu0 0
  %2143 = vmatpush1.bf16.msra.mxu0 %v2123
  %2144 = vmatprep.subr.bf16.mxu0 0
  %2145 = vmatpush1.bf16.msra.mxu0 %v2124
  %2146 = vmatprep.subr.bf16.mxu0 0
  %2147 = vmatpush1.bf16.msra.mxu0 %v2125
  %2148 = vmatprep.subr.bf16.mxu0 0
  %2149 = vmatpush1.bf16.msra.mxu0 %v2126
  %2150 = vmatprep.subr.bf16.mxu0 0
  %2151 = vmatpush1.bf16.msra.mxu0 %v2127
  %2152 = vmatprep.subr.bf16.mxu0 0
  %2153 = vmatpush1.bf16.msra.mxu0 0
  %2154 = vmatprep.subr.bf16.mxu0 0
  %2155 = vmatpush1.bf16.msra.mxu0 0
  %2156 = vmatprep.subr.bf16.mxu0 0
  %2157 = vmatpush1.bf16.msra.mxu0 0
  %2158 = vmatprep.subr.bf16.mxu0 0
  %2159 = vmatpush1.bf16.msra.mxu0 0
  %2160 = vmatprep.subr.bf16.mxu0 0
  %2161 = vmatpush1.bf16.msra.mxu0 0
  %2162 = vmatprep.subr.bf16.mxu0 0
  %2163 = vmatpush1.bf16.msra.mxu0 0
  %2164 = vmatprep.subr.bf16.mxu0 0
  %2165 = vmatpush1.bf16.msra.mxu0 0
  %2166 = vmatprep.subr.bf16.mxu0 0
  %2167 = vmatpush1.bf16.msra.mxu0 0
  %2168 = vmatprep.mubr.bf16.mxu0 0
  %2169 = vmatmul.mubr.bf16.gmra.mrb[0].mxu0 %v2051
  %v2170 = vpop.f32.mrb[0].mxu0
  %v2171 = vadd.f32 %v2087, %v2170
  %v2172 = vpop.f32.mrb[0].mxu0
  %v2173 = vpop.f32.mrb[0].mxu0
  %v2174 = vadd.f32 %v2087, %v2173
  %v2175 = vpop.f32.mrb[0].mxu0
  %2176 = vmatprep.mubr.bf16.mxu0 0
  %2177 = vmatmul.mubr.bf16.gmra.mrb[0].mxu0 %v2052
  %v2178 = vpop.f32.mrb[0].mxu0
  %v2179 = vadd.f32 %v2087, %v2178
  %v2180 = vpop.f32.mrb[0].mxu0
  %v2181 = vpop.f32.mrb[0].mxu0
  %v2182 = vadd.f32 %v2087, %v2181
  %v2183 = vpop.f32.mrb[0].mxu0
  %2184 = vmatprep.mubr.bf16.mxu0 0
  %2185 = vmatmul.mubr.bf16.gmra.mrb[0].mxu0 %v2053
  %v2186 = vpop.f32.mrb[0].mxu0
  %v2187 = vadd.f32 %v2087, %v2186
  %v2188 = vpop.f32.mrb[0].mxu0
  %v2189 = vpop.f32.mrb[0].mxu0
  %v2190 = vadd.f32 %v2087, %v2189
  %v2191 = vpop.f32.mrb[0].mxu0
  %2192 = vmatprep.mubr.bf16.mxu0 0
  %2193 = vmatmul.mubr.bf16.gmra.mrb[0].mxu0 %v2054
  %v2194 = vpop.f32.mrb[0].mxu0
  %v2195 = vadd.f32 %v2087, %v2194
  %v2196 = vpop.f32.mrb[0].mxu0
  %v2197 = vpop.f32.mrb[0].mxu0
  %v2198 = vadd.f32 %v2087, %v2197
  %v2199 = vpop.f32.mrb[0].mxu0
  %2200 = vmatprep.mubr.bf16.mxu0 0
  %2201 = vmatmul.mubr.bf16.gmra.mrb[0].mxu0 %v2055
  %v2202 = vpop.f32.mrb[0].mxu0
  %v2203 = vadd.f32 %v2087, %v2202
  %v2204 = vpop.f32.mrb[0].mxu0
  %v2205 = vpop.f32.mrb[0].mxu0
  %v2206 = vadd.f32 %v2087, %v2205
  %v2207 = vpop.f32.mrb[0].mxu0
  %2208 = vmatprep.mubr.bf16.mxu0 0
  %2209 = vmatmul.mubr.bf16.gmra.mrb[0].mxu0 %v2056
  %v2210 = vpop.f32.mrb[0].mxu0
  %v2211 = vadd.f32 %v2087, %v2210
  %v2212 = vpop.f32.mrb[0].mxu0
  %v2213 = vpop.f32.mrb[0].mxu0
  %v2214 = vadd.f32 %v2087, %v2213
  %v2215 = vpop.f32.mrb[0].mxu0
  %2216 = vmatprep.mubr.bf16.mxu0 0
  %2217 = vmatmul.mubr.bf16.gmra.mrb[0].mxu0 %v2057
  %v2218 = vpop.f32.mrb[0].mxu0
  %v2219 = vadd.f32 %v2087, %v2218
  %v2220 = vpop.f32.mrb[0].mxu0
  %v2221 = vpop.f32.mrb[0].mxu0
  %v2222 = vadd.f32 %v2087, %v2221
  %v2223 = vpop.f32.mrb[0].mxu0
  %2224 = vmatprep.mubr.bf16.mxu0 0
  %2225 = vmatmul.mubr.bf16.gmra.mrb[0].mxu0 %v2058
  %v2226 = vpop.f32.mrb[0].mxu0
  %v2227 = vadd.f32 %v2087, %v2226
  %v2228 = vpop.f32.mrb[0].mxu0
  %v2229 = vpop.f32.mrb[0].mxu0
  %v2230 = vadd.f32 %v2087, %v2229
  %v2231 = vpop.f32.mrb[0].mxu0
  %2232 = vmatprep.mubr.bf16.mxu0 0
  %2233 = vmatmul.mubr.bf16.gmra.mrb[0].mxu0 %v2059
  %v2234 = vpop.f32.mrb[0].mxu0
  %v2235 = vadd.f32 %v2087, %v2234
  %v2236 = vpop.f32.mrb[0].mxu0
  %v2237 = vpop.f32.mrb[0].mxu0
  %v2238 = vadd.f32 %v2087, %v2237
  %v2239 = vpop.f32.mrb[0].mxu0
  %2240 = vmatprep.mubr.bf16.mxu0 0
  %2241 = vmatmul.mubr.bf16.gmra.mrb[0].mxu0 %v2060
  %v2242 = vpop.f32.mrb[0].mxu0
  %v2243 = vadd.f32 %v2087, %v2242
  %v2244 = vpop.f32.mrb[0].mxu0
  %v2245 = vpop.f32.mrb[0].mxu0
  %v2246 = vadd.f32 %v2087, %v2245
  %v2247 = vpop.f32.mrb[0].mxu0
  %2248 = vmatprep.mubr.bf16.mxu0 0
  %2249 = vmatmul.mubr.bf16.gmra.mrb[0].mxu0 %v2061
  %v2250 = vpop.f32.mrb[0].mxu0
  %v2251 = vadd.f32 %v2087, %v2250
  %v2252 = vpop.f32.mrb[0].mxu0
  %v2253 = vpop.f32.mrb[0].mxu0
  %v2254 = vadd.f32 %v2087, %v2253
  %v2255 = vpop.f32.mrb[0].mxu0
  %2256 = vmatprep.mubr.bf16.mxu0 0
  %2257 = vmatmul.mubr.bf16.gmra.mrb[0].mxu0 %v2062
  %v2258 = vpop.f32.mrb[0].mxu0
  %v2259 = vadd.f32 %v2087, %v2258
  %v2260 = vpop.f32.mrb[0].mxu0
  %v2261 = vpop.f32.mrb[0].mxu0
  %v2262 = vadd.f32 %v2087, %v2261
  %v2263 = vpop.f32.mrb[0].mxu0
  %2264 = vmatprep.mubr.bf16.mxu0 0
  %2265 = vmatmul.mubr.bf16.gmra.mrb[0].mxu0 %v2063
  %v2266 = vpop.f32.mrb[0].mxu0
  %v2267 = vadd.f32 %v2087, %v2266
  %v2268 = vpop.f32.mrb[0].mxu0
  %v2269 = vpop.f32.mrb[0].mxu0
  %v2270 = vadd.f32 %v2087, %v2269
  %v2271 = vpop.f32.mrb[0].mxu0
  %2272 = vmatprep.mubr.bf16.mxu0 0
  %2273 = vmatmul.mubr.bf16.gmra.mrb[0].mxu0 %v2064
  %v2274 = vpop.f32.mrb[0].mxu0
  %v2275 = vadd.f32 %v2087, %v2274
  %v2276 = vpop.f32.mrb[0].mxu0
  %v2277 = vpop.f32.mrb[0].mxu0
  %v2278 = vadd.f32 %v2087, %v2277
  %v2279 = vpop.f32.mrb[0].mxu0
  %2280 = vmatprep.mubr.bf16.mxu0 0
  %2281 = vmatmul.mubr.bf16.gmra.mrb[0].mxu0 %v2065
  %v2282 = vpop.f32.mrb[0].mxu0
  %v2283 = vadd.f32 %v2087, %v2282
  %v2284 = vpop.f32.mrb[0].mxu0
  %v2285 = vpop.f32.mrb[0].mxu0
  %v2286 = vadd.f32 %v2087, %v2285
  %v2287 = vpop.f32.mrb[0].mxu0
  %2288 = vmatprep.mubr.bf16.mxu0 0
  %2289 = vmatmul.mubr.bf16.gmra.mrb[0].mxu0 %v2066
  %v2290 = vpop.f32.mrb[0].mxu0
  %v2291 = vadd.f32 %v2087, %v2290
  %v2292 = vpop.f32.mrb[0].mxu0
  %v2293 = vpop.f32.mrb[0].mxu0
  %v2294 = vadd.f32 %v2087, %v2293
  %v2295 = vpop.f32.mrb[0].mxu0
  %2296 = vdwg.mxu0
  %v2297 = vmax.f32 %v2171, 0.0
  %v2298 = vmax.f32 %v2174, 0.0
  %v2299 = vmax.f32 %v2179, 0.0
  %v2300 = vmax.f32 %v2182, 0.0
  %v2301 = vmax.f32 %v2187, 0.0
  %v2302 = vmax.f32 %v2190, 0.0
  %v2303 = vmax.f32 %v2195, 0.0
  %v2304 = vmax.f32 %v2198, 0.0
  %v2305 = vmax.f32 %v2203, 0.0
  %v2306 = vmax.f32 %v2206, 0.0
  %v2307 = vmax.f32 %v2211, 0.0
  %v2308 = vmax.f32 %v2214, 0.0
  %v2309 = vmax.f32 %v2219, 0.0
  %v2310 = vmax.f32 %v2222, 0.0
  %v2311 = vmax.f32 %v2227, 0.0
  %v2312 = vmax.f32 %v2230, 0.0
  %v2313 = vmax.f32 %v2235, 0.0
  %v2314 = vmax.f32 %v2238, 0.0
  %v2315 = vmax.f32 %v2243, 0.0
  %v2316 = vmax.f32 %v2246, 0.0
  %v2317 = vmax.f32 %v2251, 0.0
  %v2318 = vmax.f32 %v2254, 0.0
  %v2319 = vmax.f32 %v2259, 0.0
  %v2320 = vmax.f32 %v2262, 0.0
  %v2321 = vmax.f32 %v2267, 0.0
  %v2322 = vmax.f32 %v2270, 0.0
  %v2323 = vmax.f32 %v2275, 0.0
  %v2324 = vmax.f32 %v2278, 0.0
  %v2325 = vmax.f32 %v2283, 0.0
  %v2326 = vmax.f32 %v2286, 0.0
  %v2327 = vmax.f32 %v2291, 0.0
  %v2328 = vmax.f32 %v2294, 0.0
  %v2329 = vpack.c.bf16 %v2298, %v2297
  %v2330 = vpack.c.bf16 %v2300, %v2299
  %v2331 = vpack.c.bf16 %v2302, %v2301
  %v2332 = vpack.c.bf16 %v2304, %v2303
  %v2333 = vpack.c.bf16 %v2306, %v2305
  %v2334 = vpack.c.bf16 %v2308, %v2307
  %v2335 = vpack.c.bf16 %v2310, %v2309
  %v2336 = vpack.c.bf16 %v2312, %v2311
  %v2337 = vpack.c.bf16 %v2314, %v2313
  %v2338 = vpack.c.bf16 %v2316, %v2315
  %v2339 = vpack.c.bf16 %v2318, %v2317
  %v2340 = vpack.c.bf16 %v2320, %v2319
  %v2341 = vpack.c.bf16 %v2322, %v2321
  %v2342 = vpack.c.bf16 %v2324, %v2323
  %v2343 = vpack.c.bf16 %v2326, %v2325
  %v2344 = vpack.c.bf16 %v2328, %v2327
  %s2345 = scalar_lea.vmem %s3, 384
  %v2346 = vld [vmem:[%s2345] sm:$0xf]
  %v2347 = vld [vmem:[%s2345 + $0x4] sm:$0xf]
  %v2348 = vld [vmem:[%s2345 + $0x8] sm:$0xf]
  %v2349 = vld [vmem:[%s2345 + $0xc] sm:$0xf]
  %v2350 = vld [vmem:[%s2345 + $0x10] sm:$0xf]
  %v2351 = vld [vmem:[%s2345 + $0x14] sm:$0xf]
  %v2352 = vld [vmem:[%s2345 + $0x18] sm:$0xf]
  %v2353 = vld [vmem:[%s2345 + $0x1c] sm:$0xf]
  %v2354 = vld [vmem:[%s2345 + $0x20] sm:$0xf]
  %v2355 = vld [vmem:[%s2345 + $0x24] sm:$0xf]
  %v2356 = vld [vmem:[%s2345 + $0x28] sm:$0xf]
  %v2357 = vld [vmem:[%s2345 + $0x2c] sm:$0xf]
  %v2358 = vld [vmem:[%s2345 + $0x30] sm:$0xf]
  %v2359 = vld [vmem:[%s2345 + $0x34] sm:$0xf]
  %v2360 = vld [vmem:[%s2345 + $0x38] sm:$0xf]
  %v2361 = vld [vmem:[%s2345 + $0x3c] sm:$0xf]
  %v2362 = vlaneseq
  %v2363 = vshrl.u32 %v2362, 7
  %v2364 = vsub.s32 7, %v2363
  %v2365 = vrot.slane %v100, %v2364
  %v2382 = vunpack.c.l.b16 %v2346
  %v2383 = vunpack.c.l.b16 %v2347
  %v2384 = vunpack.c.l.b16 %v2348
  %v2385 = vunpack.c.l.b16 %v2349
  %v2386 = vunpack.c.l.b16 %v2350
  %v2387 = vunpack.c.l.b16 %v2351
  %v2388 = vunpack.c.l.b16 %v2352
  %v2389 = vunpack.c.l.b16 %v2353
  %v2390 = vunpack.c.l.b16 %v2354
  %v2391 = vunpack.c.l.b16 %v2355
  %v2392 = vunpack.c.l.b16 %v2356
  %v2393 = vunpack.c.l.b16 %v2357
  %v2394 = vunpack.c.l.b16 %v2358
  %v2395 = vunpack.c.l.b16 %v2359
  %v2396 = vunpack.c.l.b16 %v2360
  %v2397 = vunpack.c.l.b16 %v2361
  %v2398 = vpack.c.b16 %v2383, %v2382
  %v2399 = vpack.c.b16 %v2385, %v2384
  %v2400 = vpack.c.b16 %v2387, %v2386
  %v2401 = vpack.c.b16 %v2389, %v2388
  %v2402 = vpack.c.b16 %v2391, %v2390
  %v2403 = vpack.c.b16 %v2393, %v2392
  %v2404 = vpack.c.b16 %v2395, %v2394
  %v2405 = vpack.c.b16 %v2397, %v2396
  %2414 = vmatprep.subr.bf16.mxu0 0
  %2415 = vmatpush1.bf16.msra.mxu0 %v2398
  %2416 = vmatprep.subr.bf16.mxu0 0
  %2417 = vmatpush1.bf16.msra.mxu0 %v2399
  %2418 = vmatprep.subr.bf16.mxu0 0
  %2419 = vmatpush1.bf16.msra.mxu0 %v2400
  %2420 = vmatprep.subr.bf16.mxu0 0
  %2421 = vmatpush1.bf16.msra.mxu0 %v2401
  %2422 = vmatprep.subr.bf16.mxu0 0
  %2423 = vmatpush1.bf16.msra.mxu0 %v2402
  %2424 = vmatprep.subr.bf16.mxu0 0
  %2425 = vmatpush1.bf16.msra.mxu0 %v2403
  %2426 = vmatprep.subr.bf16.mxu0 0
  %2427 = vmatpush1.bf16.msra.mxu0 %v2404
  %2428 = vmatprep.subr.bf16.mxu0 0
  %2429 = vmatpush1.bf16.msra.mxu0 %v2405
  %2430 = vmatprep.subr.bf16.mxu0 0
  %2431 = vmatpush1.bf16.msra.mxu0 0
  %2432 = vmatprep.subr.bf16.mxu0 0
  %2433 = vmatpush1.bf16.msra.mxu0 0
  %2434 = vmatprep.subr.bf16.mxu0 0
  %2435 = vmatpush1.bf16.msra.mxu0 0
  %2436 = vmatprep.subr.bf16.mxu0 0
  %2437 = vmatpush1.bf16.msra.mxu0 0
  %2438 = vmatprep.subr.bf16.mxu0 0
  %2439 = vmatpush1.bf16.msra.mxu0 0
  %2440 = vmatprep.subr.bf16.mxu0 0
  %2441 = vmatpush1.bf16.msra.mxu0 0
  %2442 = vmatprep.subr.bf16.mxu0 0
  %2443 = vmatpush1.bf16.msra.mxu0 0
  %2444 = vmatprep.subr.bf16.mxu0 0
  %2445 = vmatpush1.bf16.msra.mxu0 0
  %2446 = vmatprep.mubr.bf16.mxu0 0
  %2447 = vmatmul.mubr.bf16.gmra.mrb[0].mxu0 %v2329
  %v2448 = vpop.f32.mrb[0].mxu0
  %v2449 = vadd.f32 %v2365, %v2448
  %v2450 = vpop.f32.mrb[0].mxu0
  %v2451 = vpop.f32.mrb[0].mxu0
  %v2452 = vadd.f32 %v2365, %v2451
  %v2453 = vpop.f32.mrb[0].mxu0
  %2454 = vmatprep.mubr.bf16.mxu0 0
  %2455 = vmatmul.mubr.bf16.gmra.mrb[0].mxu0 %v2330
  %v2456 = vpop.f32.mrb[0].mxu0
  %v2457 = vadd.f32 %v2365, %v2456
  %v2458 = vpop.f32.mrb[0].mxu0
  %v2459 = vpop.f32.mrb[0].mxu0
  %v2460 = vadd.f32 %v2365, %v2459
  %v2461 = vpop.f32.mrb[0].mxu0
  %2462 = vmatprep.mubr.bf16.mxu0 0
  %2463 = vmatmul.mubr.bf16.gmra.mrb[0].mxu0 %v2331
  %v2464 = vpop.f32.mrb[0].mxu0
  %v2465 = vadd.f32 %v2365, %v2464
  %v2466 = vpop.f32.mrb[0].mxu0
  %v2467 = vpop.f32.mrb[0].mxu0
  %v2468 = vadd.f32 %v2365, %v2467
  %v2469 = vpop.f32.mrb[0].mxu0
  %2470 = vmatprep.mubr.bf16.mxu0 0
  %2471 = vmatmul.mubr.bf16.gmra.mrb[0].mxu0 %v2332
  %v2472 = vpop.f32.mrb[0].mxu0
  %v2473 = vadd.f32 %v2365, %v2472
  %v2474 = vpop.f32.mrb[0].mxu0
  %v2475 = vpop.f32.mrb[0].mxu0
  %v2476 = vadd.f32 %v2365, %v2475
  %v2477 = vpop.f32.mrb[0].mxu0
  %2478 = vmatprep.mubr.bf16.mxu0 0
  %2479 = vmatmul.mubr.bf16.gmra.mrb[0].mxu0 %v2333
  %v2480 = vpop.f32.mrb[0].mxu0
  %v2481 = vadd.f32 %v2365, %v2480
  %v2482 = vpop.f32.mrb[0].mxu0
  %v2483 = vpop.f32.mrb[0].mxu0
  %v2484 = vadd.f32 %v2365, %v2483
  %v2485 = vpop.f32.mrb[0].mxu0
  %2486 = vmatprep.mubr.bf16.mxu0 0
  %2487 = vmatmul.mubr.bf16.gmra.mrb[0].mxu0 %v2334
  %v2488 = vpop.f32.mrb[0].mxu0
  %v2489 = vadd.f32 %v2365, %v2488
  %v2490 = vpop.f32.mrb[0].mxu0
  %v2491 = vpop.f32.mrb[0].mxu0
  %v2492 = vadd.f32 %v2365, %v2491
  %v2493 = vpop.f32.mrb[0].mxu0
  %2494 = vmatprep.mubr.bf16.mxu0 0
  %2495 = vmatmul.mubr.bf16.gmra.mrb[0].mxu0 %v2335
  %v2496 = vpop.f32.mrb[0].mxu0
  %v2497 = vadd.f32 %v2365, %v2496
  %v2498 = vpop.f32.mrb[0].mxu0
  %v2499 = vpop.f32.mrb[0].mxu0
  %v2500 = vadd.f32 %v2365, %v2499
  %v2501 = vpop.f32.mrb[0].mxu0
  %2502 = vmatprep.mubr.bf16.mxu0 0
  %2503 = vmatmul.mubr.bf16.gmra.mrb[0].mxu0 %v2336
  %v2504 = vpop.f32.mrb[0].mxu0
  %v2505 = vadd.f32 %v2365, %v2504
  %v2506 = vpop.f32.mrb[0].mxu0
  %v2507 = vpop.f32.mrb[0].mxu0
  %v2508 = vadd.f32 %v2365, %v2507
  %v2509 = vpop.f32.mrb[0].mxu0
  %2510 = vmatprep.mubr.bf16.mxu0 0
  %2511 = vmatmul.mubr.bf16.gmra.mrb[0].mxu0 %v2337
  %v2512 = vpop.f32.mrb[0].mxu0
  %v2513 = vadd.f32 %v2365, %v2512
  %v2514 = vpop.f32.mrb[0].mxu0
  %v2515 = vpop.f32.mrb[0].mxu0
  %v2516 = vadd.f32 %v2365, %v2515
  %v2517 = vpop.f32.mrb[0].mxu0
  %2518 = vmatprep.mubr.bf16.mxu0 0
  %2519 = vmatmul.mubr.bf16.gmra.mrb[0].mxu0 %v2338
  %v2520 = vpop.f32.mrb[0].mxu0
  %v2521 = vadd.f32 %v2365, %v2520
  %v2522 = vpop.f32.mrb[0].mxu0
  %v2523 = vpop.f32.mrb[0].mxu0
  %v2524 = vadd.f32 %v2365, %v2523
  %v2525 = vpop.f32.mrb[0].mxu0
  %2526 = vmatprep.mubr.bf16.mxu0 0
  %2527 = vmatmul.mubr.bf16.gmra.mrb[0].mxu0 %v2339
  %v2528 = vpop.f32.mrb[0].mxu0
  %v2529 = vadd.f32 %v2365, %v2528
  %v2530 = vpop.f32.mrb[0].mxu0
  %v2531 = vpop.f32.mrb[0].mxu0
  %v2532 = vadd.f32 %v2365, %v2531
  %v2533 = vpop.f32.mrb[0].mxu0
  %2534 = vmatprep.mubr.bf16.mxu0 0
  %2535 = vmatmul.mubr.bf16.gmra.mrb[0].mxu0 %v2340
  %v2536 = vpop.f32.mrb[0].mxu0
  %v2537 = vadd.f32 %v2365, %v2536
  %v2538 = vpop.f32.mrb[0].mxu0
  %v2539 = vpop.f32.mrb[0].mxu0
  %v2540 = vadd.f32 %v2365, %v2539
  %v2541 = vpop.f32.mrb[0].mxu0
  %2542 = vmatprep.mubr.bf16.mxu0 0
  %2543 = vmatmul.mubr.bf16.gmra.mrb[0].mxu0 %v2341
  %v2544 = vpop.f32.mrb[0].mxu0
  %v2545 = vadd.f32 %v2365, %v2544
  %v2546 = vpop.f32.mrb[0].mxu0
  %v2547 = vpop.f32.mrb[0].mxu0
  %v2548 = vadd.f32 %v2365, %v2547
  %v2549 = vpop.f32.mrb[0].mxu0
  %2550 = vmatprep.mubr.bf16.mxu0 0
  %2551 = vmatmul.mubr.bf16.gmra.mrb[0].mxu0 %v2342
  %v2552 = vpop.f32.mrb[0].mxu0
  %v2553 = vadd.f32 %v2365, %v2552
  %v2554 = vpop.f32.mrb[0].mxu0
  %v2555 = vpop.f32.mrb[0].mxu0
  %v2556 = vadd.f32 %v2365, %v2555
  %v2557 = vpop.f32.mrb[0].mxu0
  %2558 = vmatprep.mubr.bf16.mxu0 0
  %2559 = vmatmul.mubr.bf16.gmra.mrb[0].mxu0 %v2343
  %v2560 = vpop.f32.mrb[0].mxu0
  %v2561 = vadd.f32 %v2365, %v2560
  %v2562 = vpop.f32.mrb[0].mxu0
  %v2563 = vpop.f32.mrb[0].mxu0
  %v2564 = vadd.f32 %v2365, %v2563
  %v2565 = vpop.f32.mrb[0].mxu0
  %2566 = vmatprep.mubr.bf16.mxu0 0
  %2567 = vmatmul.mubr.bf16.gmra.mrb[0].mxu0 %v2344
  %v2568 = vpop.f32.mrb[0].mxu0
  %v2569 = vadd.f32 %v2365, %v2568
  %v2570 = vpop.f32.mrb[0].mxu0
  %v2571 = vpop.f32.mrb[0].mxu0
  %v2572 = vadd.f32 %v2365, %v2571
  %v2573 = vpop.f32.mrb[0].mxu0
  %2574 = vdwg.mxu0
  %v2575 = vmax.f32 %v2449, 0.0
  %v2576 = vmax.f32 %v2452, 0.0
  %v2577 = vmax.f32 %v2457, 0.0
  %v2578 = vmax.f32 %v2460, 0.0
  %v2579 = vmax.f32 %v2465, 0.0
  %v2580 = vmax.f32 %v2468, 0.0
  %v2581 = vmax.f32 %v2473, 0.0
  %v2582 = vmax.f32 %v2476, 0.0
  %v2583 = vmax.f32 %v2481, 0.0
  %v2584 = vmax.f32 %v2484, 0.0
  %v2585 = vmax.f32 %v2489, 0.0
  %v2586 = vmax.f32 %v2492, 0.0
  %v2587 = vmax.f32 %v2497, 0.0
  %v2588 = vmax.f32 %v2500, 0.0
  %v2589 = vmax.f32 %v2505, 0.0
  %v2590 = vmax.f32 %v2508, 0.0
  %v2591 = vmax.f32 %v2513, 0.0
  %v2592 = vmax.f32 %v2516, 0.0
  %v2593 = vmax.f32 %v2521, 0.0
  %v2594 = vmax.f32 %v2524, 0.0
  %v2595 = vmax.f32 %v2529, 0.0
  %v2596 = vmax.f32 %v2532, 0.0
  %v2597 = vmax.f32 %v2537, 0.0
  %v2598 = vmax.f32 %v2540, 0.0
  %v2599 = vmax.f32 %v2545, 0.0
  %v2600 = vmax.f32 %v2548, 0.0
  %v2601 = vmax.f32 %v2553, 0.0
  %v2602 = vmax.f32 %v2556, 0.0
  %v2603 = vmax.f32 %v2561, 0.0
  %v2604 = vmax.f32 %v2564, 0.0
  %v2605 = vmax.f32 %v2569, 0.0
  %v2606 = vmax.f32 %v2572, 0.0
  %v2607 = vpack.c.bf16 %v2576, %v2575
  %v2608 = vpack.c.bf16 %v2578, %v2577
  %v2609 = vpack.c.bf16 %v2580, %v2579
  %v2610 = vpack.c.bf16 %v2582, %v2581
  %v2611 = vpack.c.bf16 %v2584, %v2583
  %v2612 = vpack.c.bf16 %v2586, %v2585
  %v2613 = vpack.c.bf16 %v2588, %v2587
  %v2614 = vpack.c.bf16 %v2590, %v2589
  %v2615 = vpack.c.bf16 %v2592, %v2591
  %v2616 = vpack.c.bf16 %v2594, %v2593
  %v2617 = vpack.c.bf16 %v2596, %v2595
  %v2618 = vpack.c.bf16 %v2598, %v2597
  %v2619 = vpack.c.bf16 %v2600, %v2599
  %v2620 = vpack.c.bf16 %v2602, %v2601
  %v2621 = vpack.c.bf16 %v2604, %v2603
  %v2622 = vpack.c.bf16 %v2606, %v2605
  %v2623 = vld [vmem:[%s4] sm:$0xff]
  %v2624 = vld [vmem:[%s4 + $0x8] sm:$0xff]
  %v2625 = vld [vmem:[%s4 + $0x10] sm:$0xff]
  %v2626 = vld [vmem:[%s4 + $0x18] sm:$0xff]
  %v2627 = vld [vmem:[%s4 + $0x20] sm:$0xff]
  %v2628 = vld [vmem:[%s4 + $0x28] sm:$0xff]
  %v2629 = vld [vmem:[%s4 + $0x30] sm:$0xff]
  %v2630 = vld [vmem:[%s4 + $0x38] sm:$0xff]
  %v2631 = vld [vmem:[%s4 + $0x40] sm:$0xff]
  %v2632 = vld [vmem:[%s4 + $0x48] sm:$0xff]
  %v2633 = vld [vmem:[%s4 + $0x50] sm:$0xff]
  %v2634 = vld [vmem:[%s4 + $0x58] sm:$0xff]
  %v2635 = vld [vmem:[%s4 + $0x60] sm:$0xff]
  %v2636 = vld [vmem:[%s4 + $0x68] sm:$0xff]
  %v2637 = vld [vmem:[%s4 + $0x70] sm:$0xff]
  %v2638 = vld [vmem:[%s4 + $0x78] sm:$0xff]
  %v2639 = vld [vmem:[%s8] sm:$0x3]
  %v2641 = vlaneseq
  %v2642 = vshrl.u32 %v2641, 7
  %v2643 = vsub.s32 0, %v2642
  %v2644 = vrot.slane %v2639, %v2643
  %v2645 = vlaneseq
  %v2646 = vshrl.u32 %v2645, 7
  %v2647 = vsub.s32 1, %v2646
  %v2648 = vrot.slane %v2639, %v2647
  %v2667 = vunpack.c.l.b16 %v2623
  %v2668 = vunpack.c.h.b16 %v2623
  %v2669 = vunpack.c.l.b16 %v2624
  %v2670 = vunpack.c.h.b16 %v2624
  %v2671 = vunpack.c.l.b16 %v2625
  %v2672 = vunpack.c.h.b16 %v2625
  %v2673 = vunpack.c.l.b16 %v2626
  %v2674 = vunpack.c.h.b16 %v2626
  %v2675 = vunpack.c.l.b16 %v2627
  %v2676 = vunpack.c.h.b16 %v2627
  %v2677 = vunpack.c.l.b16 %v2628
  %v2678 = vunpack.c.h.b16 %v2628
  %v2679 = vunpack.c.l.b16 %v2629
  %v2680 = vunpack.c.h.b16 %v2629
  %v2681 = vunpack.c.l.b16 %v2630
  %v2682 = vunpack.c.h.b16 %v2630
  %v2683 = vunpack.c.l.b16 %v2631
  %v2684 = vunpack.c.h.b16 %v2631
  %v2685 = vunpack.c.l.b16 %v2632
  %v2686 = vunpack.c.h.b16 %v2632
  %v2687 = vunpack.c.l.b16 %v2633
  %v2688 = vunpack.c.h.b16 %v2633
  %v2689 = vunpack.c.l.b16 %v2634
  %v2690 = vunpack.c.h.b16 %v2634
  %v2691 = vunpack.c.l.b16 %v2635
  %v2692 = vunpack.c.h.b16 %v2635
  %v2693 = vunpack.c.l.b16 %v2636
  %v2694 = vunpack.c.h.b16 %v2636
  %v2695 = vunpack.c.l.b16 %v2637
  %v2696 = vunpack.c.h.b16 %v2637
  %v2697 = vunpack.c.l.b16 %v2638
  %v2698 = vunpack.c.h.b16 %v2638
  %v2699 = vpack.c.b16 %v2669, %v2667
  %v2700 = vpack.c.b16 %v2670, %v2668
  %v2701 = vpack.c.b16 %v2673, %v2671
  %v2702 = vpack.c.b16 %v2674, %v2672
  %v2703 = vpack.c.b16 %v2677, %v2675
  %v2704 = vpack.c.b16 %v2678, %v2676
  %v2705 = vpack.c.b16 %v2681, %v2679
  %v2706 = vpack.c.b16 %v2682, %v2680
  %v2707 = vpack.c.b16 %v2685, %v2683
  %v2708 = vpack.c.b16 %v2686, %v2684
  %v2709 = vpack.c.b16 %v2689, %v2687
  %v2710 = vpack.c.b16 %v2690, %v2688
  %v2711 = vpack.c.b16 %v2693, %v2691
  %v2712 = vpack.c.b16 %v2694, %v2692
  %v2713 = vpack.c.b16 %v2697, %v2695
  %v2714 = vpack.c.b16 %v2698, %v2696
  %2731 = vmatprep.subr.bf16.mxu0 %v2700
  %2732 = vmatpush1.bf16.msra.mxu0 %v2699
  %2733 = vmatprep.subr.bf16.mxu0 %v2702
  %2734 = vmatpush1.bf16.msra.mxu0 %v2701
  %2735 = vmatprep.subr.bf16.mxu0 %v2704
  %2736 = vmatpush1.bf16.msra.mxu0 %v2703
  %2737 = vmatprep.subr.bf16.mxu0 %v2706
  %2738 = vmatpush1.bf16.msra.mxu0 %v2705
  %2739 = vmatprep.subr.bf16.mxu0 %v2708
  %2740 = vmatpush1.bf16.msra.mxu0 %v2707
  %2741 = vmatprep.subr.bf16.mxu0 %v2710
  %2742 = vmatpush1.bf16.msra.mxu0 %v2709
  %2743 = vmatprep.subr.bf16.mxu0 %v2712
  %2744 = vmatpush1.bf16.msra.mxu0 %v2711
  %2745 = vmatprep.subr.bf16.mxu0 %v2714
  %2746 = vmatpush1.bf16.msra.mxu0 %v2713
  %2747 = vmatprep.subr.bf16.mxu0 0
  %2748 = vmatpush1.bf16.msra.mxu0 0
  %2749 = vmatprep.subr.bf16.mxu0 0
  %2750 = vmatpush1.bf16.msra.mxu0 0
  %2751 = vmatprep.subr.bf16.mxu0 0
  %2752 = vmatpush1.bf16.msra.mxu0 0
  %2753 = vmatprep.subr.bf16.mxu0 0
  %2754 = vmatpush1.bf16.msra.mxu0 0
  %2755 = vmatprep.subr.bf16.mxu0 0
  %2756 = vmatpush1.bf16.msra.mxu0 0
  %2757 = vmatprep.subr.bf16.mxu0 0
  %2758 = vmatpush1.bf16.msra.mxu0 0
  %2759 = vmatprep.subr.bf16.mxu0 0
  %2760 = vmatpush1.bf16.msra.mxu0 0
  %2761 = vmatprep.subr.bf16.mxu0 0
  %2762 = vmatpush1.bf16.msra.mxu0 0
  %2763 = vmatprep.mubr.bf16.mxu0 0
  %2764 = vmatmul.mubr.bf16.gmra.mrb[0].mxu0 %v2607
  %v2765 = vpop.f32.mrb[0].mxu0
  %v2766 = vadd.f32 %v2644, %v2765
  %v2767 = vpop.f32.mrb[0].mxu0
  %v2768 = vadd.f32 %v2648, %v2767
  %v2769 = vpop.f32.mrb[0].mxu0
  %v2770 = vadd.f32 %v2644, %v2769
  %v2771 = vpop.f32.mrb[0].mxu0
  %v2772 = vadd.f32 %v2648, %v2771
  %2773 = vmatprep.mubr.bf16.mxu0 0
  %2774 = vmatmul.mubr.bf16.gmra.mrb[0].mxu0 %v2608
  %v2775 = vpop.f32.mrb[0].mxu0
  %v2776 = vadd.f32 %v2644, %v2775
  %v2777 = vpop.f32.mrb[0].mxu0
  %v2778 = vadd.f32 %v2648, %v2777
  %v2779 = vpop.f32.mrb[0].mxu0
  %v2780 = vadd.f32 %v2644, %v2779
  %v2781 = vpop.f32.mrb[0].mxu0
  %v2782 = vadd.f32 %v2648, %v2781
  %2783 = vmatprep.mubr.bf16.mxu0 0
  %2784 = vmatmul.mubr.bf16.gmra.mrb[0].mxu0 %v2609
  %v2785 = vpop.f32.mrb[0].mxu0
  %v2786 = vadd.f32 %v2644, %v2785
  %v2787 = vpop.f32.mrb[0].mxu0
  %v2788 = vadd.f32 %v2648, %v2787
  %v2789 = vpop.f32.mrb[0].mxu0
  %v2790 = vadd.f32 %v2644, %v2789
  %v2791 = vpop.f32.mrb[0].mxu0
  %v2792 = vadd.f32 %v2648, %v2791
  %2793 = vmatprep.mubr.bf16.mxu0 0
  %2794 = vmatmul.mubr.bf16.gmra.mrb[0].mxu0 %v2610
  %v2795 = vpop.f32.mrb[0].mxu0
  %v2796 = vadd.f32 %v2644, %v2795
  %v2797 = vpop.f32.mrb[0].mxu0
  %v2798 = vadd.f32 %v2648, %v2797
  %v2799 = vpop.f32.mrb[0].mxu0
  %v2800 = vadd.f32 %v2644, %v2799
  %v2801 = vpop.f32.mrb[0].mxu0
  %v2802 = vadd.f32 %v2648, %v2801
  %2803 = vmatprep.mubr.bf16.mxu0 0
  %2804 = vmatmul.mubr.bf16.gmra.mrb[0].mxu0 %v2611
  %v2805 = vpop.f32.mrb[0].mxu0
  %v2806 = vadd.f32 %v2644, %v2805
  %v2807 = vpop.f32.mrb[0].mxu0
  %v2808 = vadd.f32 %v2648, %v2807
  %v2809 = vpop.f32.mrb[0].mxu0
  %v2810 = vadd.f32 %v2644, %v2809
  %v2811 = vpop.f32.mrb[0].mxu0
  %v2812 = vadd.f32 %v2648, %v2811
  %2813 = vmatprep.mubr.bf16.mxu0 0
  %2814 = vmatmul.mubr.bf16.gmra.mrb[0].mxu0 %v2612
  %v2815 = vpop.f32.mrb[0].mxu0
  %v2816 = vadd.f32 %v2644, %v2815
  %v2817 = vpop.f32.mrb[0].mxu0
  %v2818 = vadd.f32 %v2648, %v2817
  %v2819 = vpop.f32.mrb[0].mxu0
  %v2820 = vadd.f32 %v2644, %v2819
  %v2821 = vpop.f32.mrb[0].mxu0
  %v2822 = vadd.f32 %v2648, %v2821
  %2823 = vmatprep.mubr.bf16.mxu0 0
  %2824 = vmatmul.mubr.bf16.gmra.mrb[0].mxu0 %v2613
  %v2825 = vpop.f32.mrb[0].mxu0
  %v2826 = vadd.f32 %v2644, %v2825
  %v2827 = vpop.f32.mrb[0].mxu0
  %v2828 = vadd.f32 %v2648, %v2827
  %v2829 = vpop.f32.mrb[0].mxu0
  %v2830 = vadd.f32 %v2644, %v2829
  %v2831 = vpop.f32.mrb[0].mxu0
  %v2832 = vadd.f32 %v2648, %v2831
  %2833 = vmatprep.mubr.bf16.mxu0 0
  %2834 = vmatmul.mubr.bf16.gmra.mrb[0].mxu0 %v2614
  %v2835 = vpop.f32.mrb[0].mxu0
  %v2836 = vadd.f32 %v2644, %v2835
  %v2837 = vpop.f32.mrb[0].mxu0
  %v2838 = vadd.f32 %v2648, %v2837
  %v2839 = vpop.f32.mrb[0].mxu0
  %v2840 = vadd.f32 %v2644, %v2839
  %v2841 = vpop.f32.mrb[0].mxu0
  %v2842 = vadd.f32 %v2648, %v2841
  %2843 = vmatprep.mubr.bf16.mxu0 0
  %2844 = vmatmul.mubr.bf16.gmra.mrb[0].mxu0 %v2615
  %v2845 = vpop.f32.mrb[0].mxu0
  %v2846 = vadd.f32 %v2644, %v2845
  %v2847 = vpop.f32.mrb[0].mxu0
  %v2848 = vadd.f32 %v2648, %v2847
  %v2849 = vpop.f32.mrb[0].mxu0
  %v2850 = vadd.f32 %v2644, %v2849
  %v2851 = vpop.f32.mrb[0].mxu0
  %v2852 = vadd.f32 %v2648, %v2851
  %2853 = vmatprep.mubr.bf16.mxu0 0
  %2854 = vmatmul.mubr.bf16.gmra.mrb[0].mxu0 %v2616
  %v2855 = vpop.f32.mrb[0].mxu0
  %v2856 = vadd.f32 %v2644, %v2855
  %v2857 = vpop.f32.mrb[0].mxu0
  %v2858 = vadd.f32 %v2648, %v2857
  %v2859 = vpop.f32.mrb[0].mxu0
  %v2860 = vadd.f32 %v2644, %v2859
  %v2861 = vpop.f32.mrb[0].mxu0
  %v2862 = vadd.f32 %v2648, %v2861
  %2863 = vmatprep.mubr.bf16.mxu0 0
  %2864 = vmatmul.mubr.bf16.gmra.mrb[0].mxu0 %v2617
  %v2865 = vpop.f32.mrb[0].mxu0
  %v2866 = vadd.f32 %v2644, %v2865
  %v2867 = vpop.f32.mrb[0].mxu0
  %v2868 = vadd.f32 %v2648, %v2867
  %v2869 = vpop.f32.mrb[0].mxu0
  %v2870 = vadd.f32 %v2644, %v2869
  %v2871 = vpop.f32.mrb[0].mxu0
  %v2872 = vadd.f32 %v2648, %v2871
  %2873 = vmatprep.mubr.bf16.mxu0 0
  %2874 = vmatmul.mubr.bf16.gmra.mrb[0].mxu0 %v2618
  %v2875 = vpop.f32.mrb[0].mxu0
  %v2876 = vadd.f32 %v2644, %v2875
  %v2877 = vpop.f32.mrb[0].mxu0
  %v2878 = vadd.f32 %v2648, %v2877
  %v2879 = vpop.f32.mrb[0].mxu0
  %v2880 = vadd.f32 %v2644, %v2879
  %v2881 = vpop.f32.mrb[0].mxu0
  %v2882 = vadd.f32 %v2648, %v2881
  %2883 = vmatprep.mubr.bf16.mxu0 0
  %2884 = vmatmul.mubr.bf16.gmra.mrb[0].mxu0 %v2619
  %v2885 = vpop.f32.mrb[0].mxu0
  %v2886 = vadd.f32 %v2644, %v2885
  %v2887 = vpop.f32.mrb[0].mxu0
  %v2888 = vadd.f32 %v2648, %v2887
  %v2889 = vpop.f32.mrb[0].mxu0
  %v2890 = vadd.f32 %v2644, %v2889
  %v2891 = vpop.f32.mrb[0].mxu0
  %v2892 = vadd.f32 %v2648, %v2891
  %2893 = vmatprep.mubr.bf16.mxu0 0
  %2894 = vmatmul.mubr.bf16.gmra.mrb[0].mxu0 %v2620
  %v2895 = vpop.f32.mrb[0].mxu0
  %v2896 = vadd.f32 %v2644, %v2895
  %v2897 = vpop.f32.mrb[0].mxu0
  %v2898 = vadd.f32 %v2648, %v2897
  %v2899 = vpop.f32.mrb[0].mxu0
  %v2900 = vadd.f32 %v2644, %v2899
  %v2901 = vpop.f32.mrb[0].mxu0
  %v2902 = vadd.f32 %v2648, %v2901
  %2903 = vmatprep.mubr.bf16.mxu0 0
  %2904 = vmatmul.mubr.bf16.gmra.mrb[0].mxu0 %v2621
  %v2905 = vpop.f32.mrb[0].mxu0
  %v2906 = vadd.f32 %v2644, %v2905
  %v2907 = vpop.f32.mrb[0].mxu0
  %v2908 = vadd.f32 %v2648, %v2907
  %v2909 = vpop.f32.mrb[0].mxu0
  %v2910 = vadd.f32 %v2644, %v2909
  %v2911 = vpop.f32.mrb[0].mxu0
  %v2912 = vadd.f32 %v2648, %v2911
  %2913 = vmatprep.mubr.bf16.mxu0 0
  %2914 = vmatmul.mubr.bf16.gmra.mrb[0].mxu0 %v2622
  %v2915 = vpop.f32.mrb[0].mxu0
  %v2916 = vadd.f32 %v2644, %v2915
  %v2917 = vpop.f32.mrb[0].mxu0
  %v2918 = vadd.f32 %v2648, %v2917
  %v2919 = vpop.f32.mrb[0].mxu0
  %v2920 = vadd.f32 %v2644, %v2919
  %v2921 = vpop.f32.mrb[0].mxu0
  %v2922 = vadd.f32 %v2648, %v2921
  %2923 = vdwg.mxu0
  %v2924 = vmul.f32 %v2768, %v2768
  %v2925 = vmul.f32 %v2772, %v2772
  %v2926 = vmul.f32 %v2778, %v2778
  %v2927 = vmul.f32 %v2782, %v2782
  %v2928 = vmul.f32 %v2788, %v2788
  %v2929 = vmul.f32 %v2792, %v2792
  %v2930 = vmul.f32 %v2798, %v2798
  %v2931 = vmul.f32 %v2802, %v2802
  %v2932 = vmul.f32 %v2808, %v2808
  %v2933 = vmul.f32 %v2812, %v2812
  %v2934 = vmul.f32 %v2818, %v2818
  %v2935 = vmul.f32 %v2822, %v2822
  %v2936 = vmul.f32 %v2828, %v2828
  %v2937 = vmul.f32 %v2832, %v2832
  %v2938 = vmul.f32 %v2838, %v2838
  %v2939 = vmul.f32 %v2842, %v2842
  %v2940 = vmul.f32 %v2848, %v2848
  %v2941 = vmul.f32 %v2852, %v2852
  %v2942 = vmul.f32 %v2858, %v2858
  %v2943 = vmul.f32 %v2862, %v2862
  %v2944 = vmul.f32 %v2868, %v2868
  %v2945 = vmul.f32 %v2872, %v2872
  %v2946 = vmul.f32 %v2878, %v2878
  %v2947 = vmul.f32 %v2882, %v2882
  %v2948 = vmul.f32 %v2888, %v2888
  %v2949 = vmul.f32 %v2892, %v2892
  %v2950 = vmul.f32 %v2898, %v2898
  %v2951 = vmul.f32 %v2902, %v2902
  %v2952 = vmul.f32 %v2908, %v2908
  %v2953 = vmul.f32 %v2912, %v2912
  %v2954 = vmul.f32 %v2918, %v2918
  %v2955 = vmul.f32 %v2922, %v2922
  %2988 = vrot.lane.b32.xlu0 %v2924, 127
  %v2989 = vpop.permute.xlu0 %2988
  %2990 = vrot.lane.b32.xlu0 %v2925, 127
  %v2991 = vpop.permute.xlu0 %2990
  %2992 = vrot.lane.b32.xlu0 %v2926, 127
  %v2993 = vpop.permute.xlu0 %2992
  %2994 = vrot.lane.b32.xlu0 %v2927, 127
  %v2995 = vpop.permute.xlu0 %2994
  %2996 = vrot.lane.b32.xlu0 %v2928, 127
  %v2997 = vpop.permute.xlu0 %2996
  %2998 = vrot.lane.b32.xlu0 %v2929, 127
  %v2999 = vpop.permute.xlu0 %2998
  %3000 = vrot.lane.b32.xlu0 %v2930, 127
  %v3001 = vpop.permute.xlu0 %3000
  %3002 = vrot.lane.b32.xlu0 %v2931, 127
  %v3003 = vpop.permute.xlu0 %3002
  %3004 = vrot.lane.b32.xlu0 %v2932, 127
  %v3005 = vpop.permute.xlu0 %3004
  %3006 = vrot.lane.b32.xlu0 %v2933, 127
  %v3007 = vpop.permute.xlu0 %3006
  %3008 = vrot.lane.b32.xlu0 %v2934, 127
  %v3009 = vpop.permute.xlu0 %3008
  %3010 = vrot.lane.b32.xlu0 %v2935, 127
  %v3011 = vpop.permute.xlu0 %3010
  %3012 = vrot.lane.b32.xlu0 %v2936, 127
  %v3013 = vpop.permute.xlu0 %3012
  %3014 = vrot.lane.b32.xlu0 %v2937, 127
  %v3015 = vpop.permute.xlu0 %3014
  %3016 = vrot.lane.b32.xlu0 %v2938, 127
  %v3017 = vpop.permute.xlu0 %3016
  %3018 = vrot.lane.b32.xlu0 %v2939, 127
  %v3019 = vpop.permute.xlu0 %3018
  %3020 = vrot.lane.b32.xlu0 %v2940, 127
  %v3021 = vpop.permute.xlu0 %3020
  %3022 = vrot.lane.b32.xlu0 %v2941, 127
  %v3023 = vpop.permute.xlu0 %3022
  %3024 = vrot.lane.b32.xlu0 %v2942, 127
  %v3025 = vpop.permute.xlu0 %3024
  %3026 = vrot.lane.b32.xlu0 %v2943, 127
  %v3027 = vpop.permute.xlu0 %3026
  %3028 = vrot.lane.b32.xlu0 %v2944, 127
  %v3029 = vpop.permute.xlu0 %3028
  %3030 = vrot.lane.b32.xlu0 %v2945, 127
  %v3031 = vpop.permute.xlu0 %3030
  %3032 = vrot.lane.b32.xlu0 %v2946, 127
  %v3033 = vpop.permute.xlu0 %3032
  %3034 = vrot.lane.b32.xlu0 %v2947, 127
  %v3035 = vpop.permute.xlu0 %3034
  %3036 = vrot.lane.b32.xlu0 %v2948, 127
  %v3037 = vpop.permute.xlu0 %3036
  %3038 = vrot.lane.b32.xlu0 %v2949, 127
  %v3039 = vpop.permute.xlu0 %3038
  %3040 = vrot.lane.b32.xlu0 %v2950, 127
  %v3041 = vpop.permute.xlu0 %3040
  %3042 = vrot.lane.b32.xlu0 %v2951, 127
  %v3043 = vpop.permute.xlu0 %3042
  %3044 = vrot.lane.b32.xlu0 %v2952, 127
  %v3045 = vpop.permute.xlu0 %3044
  %3046 = vrot.lane.b32.xlu0 %v2953, 127
  %v3047 = vpop.permute.xlu0 %3046
  %3048 = vrot.lane.b32.xlu0 %v2954, 127
  %v3049 = vpop.permute.xlu0 %3048
  %3050 = vrot.lane.b32.xlu0 %v2955, 127
  %v3051 = vpop.permute.xlu0 %3050
  %vm3084 = vcmask 23552
  %v3085 = vsel %vm3084, %v2989, 0.0
  %3086 = vadd.xlane.f32.xlu0 %v3085
  %v3087 = vpop.xlane.xlu0 %3086
  %v3088 = vsel %vm3084, %v2991, 0.0
  %3089 = vadd.xlane.f32.xlu0 %v3088
  %v3090 = vpop.xlane.xlu0 %3089
  %v3091 = vsel %vm3084, %v2993, 0.0
  %3092 = vadd.xlane.f32.xlu0 %v3091
  %v3093 = vpop.xlane.xlu0 %3092
  %v3094 = vsel %vm3084, %v2995, 0.0
  %3095 = vadd.xlane.f32.xlu0 %v3094
  %v3096 = vpop.xlane.xlu0 %3095
  %v3097 = vsel %vm3084, %v2997, 0.0
  %3098 = vadd.xlane.f32.xlu0 %v3097
  %v3099 = vpop.xlane.xlu0 %3098
  %v3100 = vsel %vm3084, %v2999, 0.0
  %3101 = vadd.xlane.f32.xlu0 %v3100
  %v3102 = vpop.xlane.xlu0 %3101
  %v3103 = vsel %vm3084, %v3001, 0.0
  %3104 = vadd.xlane.f32.xlu0 %v3103
  %v3105 = vpop.xlane.xlu0 %3104
  %v3106 = vsel %vm3084, %v3003, 0.0
  %3107 = vadd.xlane.f32.xlu0 %v3106
  %v3108 = vpop.xlane.xlu0 %3107
  %v3109 = vsel %vm3084, %v3005, 0.0
  %3110 = vadd.xlane.f32.xlu0 %v3109
  %v3111 = vpop.xlane.xlu0 %3110
  %v3112 = vsel %vm3084, %v3007, 0.0
  %3113 = vadd.xlane.f32.xlu0 %v3112
  %v3114 = vpop.xlane.xlu0 %3113
  %v3115 = vsel %vm3084, %v3009, 0.0
  %3116 = vadd.xlane.f32.xlu0 %v3115
  %v3117 = vpop.xlane.xlu0 %3116
  %v3118 = vsel %vm3084, %v3011, 0.0
  %3119 = vadd.xlane.f32.xlu0 %v3118
  %v3120 = vpop.xlane.xlu0 %3119
  %v3121 = vsel %vm3084, %v3013, 0.0
  %3122 = vadd.xlane.f32.xlu0 %v3121
  %v3123 = vpop.xlane.xlu0 %3122
  %v3124 = vsel %vm3084, %v3015, 0.0
  %3125 = vadd.xlane.f32.xlu0 %v3124
  %v3126 = vpop.xlane.xlu0 %3125
  %v3127 = vsel %vm3084, %v3017, 0.0
  %3128 = vadd.xlane.f32.xlu0 %v3127
  %v3129 = vpop.xlane.xlu0 %3128
  %v3130 = vsel %vm3084, %v3019, 0.0
  %3131 = vadd.xlane.f32.xlu0 %v3130
  %v3132 = vpop.xlane.xlu0 %3131
  %v3133 = vsel %vm3084, %v3021, 0.0
  %3134 = vadd.xlane.f32.xlu0 %v3133
  %v3135 = vpop.xlane.xlu0 %3134
  %v3136 = vsel %vm3084, %v3023, 0.0
  %3137 = vadd.xlane.f32.xlu0 %v3136
  %v3138 = vpop.xlane.xlu0 %3137
  %v3139 = vsel %vm3084, %v3025, 0.0
  %3140 = vadd.xlane.f32.xlu0 %v3139
  %v3141 = vpop.xlane.xlu0 %3140
  %v3142 = vsel %vm3084, %v3027, 0.0
  %3143 = vadd.xlane.f32.xlu0 %v3142
  %v3144 = vpop.xlane.xlu0 %3143
  %v3145 = vsel %vm3084, %v3029, 0.0
  %3146 = vadd.xlane.f32.xlu0 %v3145
  %v3147 = vpop.xlane.xlu0 %3146
  %v3148 = vsel %vm3084, %v3031, 0.0
  %3149 = vadd.xlane.f32.xlu0 %v3148
  %v3150 = vpop.xlane.xlu0 %3149
  %v3151 = vsel %vm3084, %v3033, 0.0
  %3152 = vadd.xlane.f32.xlu0 %v3151
  %v3153 = vpop.xlane.xlu0 %3152
  %v3154 = vsel %vm3084, %v3035, 0.0
  %3155 = vadd.xlane.f32.xlu0 %v3154
  %v3156 = vpop.xlane.xlu0 %3155
  %v3157 = vsel %vm3084, %v3037, 0.0
  %3158 = vadd.xlane.f32.xlu0 %v3157
  %v3159 = vpop.xlane.xlu0 %3158
  %v3160 = vsel %vm3084, %v3039, 0.0
  %3161 = vadd.xlane.f32.xlu0 %v3160
  %v3162 = vpop.xlane.xlu0 %3161
  %v3163 = vsel %vm3084, %v3041, 0.0
  %3164 = vadd.xlane.f32.xlu0 %v3163
  %v3165 = vpop.xlane.xlu0 %3164
  %v3166 = vsel %vm3084, %v3043, 0.0
  %3167 = vadd.xlane.f32.xlu0 %v3166
  %v3168 = vpop.xlane.xlu0 %3167
  %v3169 = vsel %vm3084, %v3045, 0.0
  %3170 = vadd.xlane.f32.xlu0 %v3169
  %v3171 = vpop.xlane.xlu0 %3170
  %v3172 = vsel %vm3084, %v3047, 0.0
  %3173 = vadd.xlane.f32.xlu0 %v3172
  %v3174 = vpop.xlane.xlu0 %3173
  %v3175 = vsel %vm3084, %v3049, 0.0
  %3176 = vadd.xlane.f32.xlu0 %v3175
  %v3177 = vpop.xlane.xlu0 %3176
  %v3178 = vsel %vm3084, %v3051, 0.0
  %3179 = vadd.xlane.f32.xlu0 %v3178
  %v3180 = vpop.xlane.xlu0 %3179
  %v3181 = vmax.f32 %v3087, 1e-10
  %v3182 = vmax.f32 %v3090, 1e-10
  %v3183 = vmax.f32 %v3093, 1e-10
  %v3184 = vmax.f32 %v3096, 1e-10
  %v3185 = vmax.f32 %v3099, 1e-10
  %v3186 = vmax.f32 %v3102, 1e-10
  %v3187 = vmax.f32 %v3105, 1e-10
  %v3188 = vmax.f32 %v3108, 1e-10
  %v3189 = vmax.f32 %v3111, 1e-10
  %v3190 = vmax.f32 %v3114, 1e-10
  %v3191 = vmax.f32 %v3117, 1e-10
  %v3192 = vmax.f32 %v3120, 1e-10
  %v3193 = vmax.f32 %v3123, 1e-10
  %v3194 = vmax.f32 %v3126, 1e-10
  %v3195 = vmax.f32 %v3129, 1e-10
  %v3196 = vmax.f32 %v3132, 1e-10
  %v3197 = vmax.f32 %v3135, 1e-10
  %v3198 = vmax.f32 %v3138, 1e-10
  %v3199 = vmax.f32 %v3141, 1e-10
  %v3200 = vmax.f32 %v3144, 1e-10
  %v3201 = vmax.f32 %v3147, 1e-10
  %v3202 = vmax.f32 %v3150, 1e-10
  %v3203 = vmax.f32 %v3153, 1e-10
  %v3204 = vmax.f32 %v3156, 1e-10
  %v3205 = vmax.f32 %v3159, 1e-10
  %v3206 = vmax.f32 %v3162, 1e-10
  %v3207 = vmax.f32 %v3165, 1e-10
  %v3208 = vmax.f32 %v3168, 1e-10
  %v3209 = vmax.f32 %v3171, 1e-10
  %v3210 = vmax.f32 %v3174, 1e-10
  %v3211 = vmax.f32 %v3177, 1e-10
  %v3212 = vmax.f32 %v3180, 1e-10
  %v3213 = vrsqrt.pop %v3181
  %v3214 = vrsqrt.pop %v3182
  %v3215 = vrsqrt.pop %v3183
  %v3216 = vrsqrt.pop %v3184
  %v3217 = vrsqrt.pop %v3185
  %v3218 = vrsqrt.pop %v3186
  %v3219 = vrsqrt.pop %v3187
  %v3220 = vrsqrt.pop %v3188
  %v3221 = vrsqrt.pop %v3189
  %v3222 = vrsqrt.pop %v3190
  %v3223 = vrsqrt.pop %v3191
  %v3224 = vrsqrt.pop %v3192
  %v3225 = vrsqrt.pop %v3193
  %v3226 = vrsqrt.pop %v3194
  %v3227 = vrsqrt.pop %v3195
  %v3228 = vrsqrt.pop %v3196
  %v3229 = vrsqrt.pop %v3197
  %v3230 = vrsqrt.pop %v3198
  %v3231 = vrsqrt.pop %v3199
  %v3232 = vrsqrt.pop %v3200
  %v3233 = vrsqrt.pop %v3201
  %v3234 = vrsqrt.pop %v3202
  %v3235 = vrsqrt.pop %v3203
  %v3236 = vrsqrt.pop %v3204
  %v3237 = vrsqrt.pop %v3205
  %v3238 = vrsqrt.pop %v3206
  %v3239 = vrsqrt.pop %v3207
  %v3240 = vrsqrt.pop %v3208
  %v3241 = vrsqrt.pop %v3209
  %v3242 = vrsqrt.pop %v3210
  %v3243 = vrsqrt.pop %v3211
  %v3244 = vrsqrt.pop %v3212
  %v3245 = vsub.f32 0.0, %v2768
  %v3246 = vsub.f32 0.0, %v2772
  %v3247 = vsub.f32 0.0, %v2778
  %v3248 = vsub.f32 0.0, %v2782
  %v3249 = vsub.f32 0.0, %v2788
  %v3250 = vsub.f32 0.0, %v2792
  %v3251 = vsub.f32 0.0, %v2798
  %v3252 = vsub.f32 0.0, %v2802
  %v3253 = vsub.f32 0.0, %v2808
  %v3254 = vsub.f32 0.0, %v2812
  %v3255 = vsub.f32 0.0, %v2818
  %v3256 = vsub.f32 0.0, %v2822
  %v3257 = vsub.f32 0.0, %v2828
  %v3258 = vsub.f32 0.0, %v2832
  %v3259 = vsub.f32 0.0, %v2838
  %v3260 = vsub.f32 0.0, %v2842
  %v3261 = vsub.f32 0.0, %v2848
  %v3262 = vsub.f32 0.0, %v2852
  %v3263 = vsub.f32 0.0, %v2858
  %v3264 = vsub.f32 0.0, %v2862
  %v3265 = vsub.f32 0.0, %v2868
  %v3266 = vsub.f32 0.0, %v2872
  %v3267 = vsub.f32 0.0, %v2878
  %v3268 = vsub.f32 0.0, %v2882
  %v3269 = vsub.f32 0.0, %v2888
  %v3270 = vsub.f32 0.0, %v2892
  %v3271 = vsub.f32 0.0, %v2898
  %v3272 = vsub.f32 0.0, %v2902
  %v3273 = vsub.f32 0.0, %v2908
  %v3274 = vsub.f32 0.0, %v2912
  %v3275 = vsub.f32 0.0, %v2918
  %v3276 = vsub.f32 0.0, %v2922
  %v3277 = vmul.f32 %v3245, %v3213
  %v3278 = vmul.f32 %v3246, %v3214
  %v3279 = vmul.f32 %v3247, %v3215
  %v3280 = vmul.f32 %v3248, %v3216
  %v3281 = vmul.f32 %v3249, %v3217
  %v3282 = vmul.f32 %v3250, %v3218
  %v3283 = vmul.f32 %v3251, %v3219
  %v3284 = vmul.f32 %v3252, %v3220
  %v3285 = vmul.f32 %v3253, %v3221
  %v3286 = vmul.f32 %v3254, %v3222
  %v3287 = vmul.f32 %v3255, %v3223
  %v3288 = vmul.f32 %v3256, %v3224
  %v3289 = vmul.f32 %v3257, %v3225
  %v3290 = vmul.f32 %v3258, %v3226
  %v3291 = vmul.f32 %v3259, %v3227
  %v3292 = vmul.f32 %v3260, %v3228
  %v3293 = vmul.f32 %v3261, %v3229
  %v3294 = vmul.f32 %v3262, %v3230
  %v3295 = vmul.f32 %v3263, %v3231
  %v3296 = vmul.f32 %v3264, %v3232
  %v3297 = vmul.f32 %v3265, %v3233
  %v3298 = vmul.f32 %v3266, %v3234
  %v3299 = vmul.f32 %v3267, %v3235
  %v3300 = vmul.f32 %v3268, %v3236
  %v3301 = vmul.f32 %v3269, %v3237
  %v3302 = vmul.f32 %v3270, %v3238
  %v3303 = vmul.f32 %v3271, %v3239
  %v3304 = vmul.f32 %v3272, %v3240
  %v3305 = vmul.f32 %v3273, %v3241
  %v3306 = vmul.f32 %v3274, %v3242
  %v3307 = vmul.f32 %v3275, %v3243
  %v3308 = vmul.f32 %v3276, %v3244
  %v3309 = vpack.c.bf16 %v2770, %v2766
  %v3310 = vpack.c.bf16 %v2780, %v2776
  %v3311 = vpack.c.bf16 %v2790, %v2786
  %v3312 = vpack.c.bf16 %v2800, %v2796
  %v3313 = vpack.c.bf16 %v2810, %v2806
  %v3314 = vpack.c.bf16 %v2820, %v2816
  %v3315 = vpack.c.bf16 %v2830, %v2826
  %v3316 = vpack.c.bf16 %v2840, %v2836
  %v3317 = vpack.c.bf16 %v2850, %v2846
  %v3318 = vpack.c.bf16 %v2860, %v2856
  %v3319 = vpack.c.bf16 %v2870, %v2866
  %v3320 = vpack.c.bf16 %v2880, %v2876
  %v3321 = vpack.c.bf16 %v2890, %v2886
  %v3322 = vpack.c.bf16 %v2900, %v2896
  %v3323 = vpack.c.bf16 %v2910, %v2906
  %v3324 = vpack.c.bf16 %v2920, %v2916
  %s3325 = scalar_lea.vmem %s3, 448
  %v3326 = vld [vmem:[%s3325] sm:$0xf]
  %v3327 = vld [vmem:[%s3325 + $0x4] sm:$0xf]
  %v3328 = vld [vmem:[%s3325 + $0x8] sm:$0xf]
  %v3329 = vld [vmem:[%s3325 + $0xc] sm:$0xf]
  %v3330 = vld [vmem:[%s3325 + $0x10] sm:$0xf]
  %v3331 = vld [vmem:[%s3325 + $0x14] sm:$0xf]
  %v3332 = vld [vmem:[%s3325 + $0x18] sm:$0xf]
  %v3333 = vld [vmem:[%s3325 + $0x1c] sm:$0xf]
  %v3334 = vld [vmem:[%s3325 + $0x20] sm:$0xf]
  %v3335 = vld [vmem:[%s3325 + $0x24] sm:$0xf]
  %v3336 = vld [vmem:[%s3325 + $0x28] sm:$0xf]
  %v3337 = vld [vmem:[%s3325 + $0x2c] sm:$0xf]
  %v3338 = vld [vmem:[%s3325 + $0x30] sm:$0xf]
  %v3339 = vld [vmem:[%s3325 + $0x34] sm:$0xf]
  %v3340 = vld [vmem:[%s3325 + $0x38] sm:$0xf]
  %v3341 = vld [vmem:[%s3325 + $0x3c] sm:$0xf]
  %v3342 = vld [vmem:[%s5] sm:$0xf]
  %v3343 = vld [vmem:[%s5 + $0x4] sm:$0xf]
  %v3376 = vunpack.c.l.b16 %v68
  %v3377 = vunpack.c.l.b16 %v69
  %v3378 = vunpack.c.l.b16 %v70
  %v3379 = vunpack.c.l.b16 %v71
  %v3380 = vunpack.c.l.b16 %v72
  %v3381 = vunpack.c.l.b16 %v73
  %v3382 = vunpack.c.l.b16 %v74
  %v3383 = vunpack.c.l.b16 %v75
  %v3384 = vunpack.c.l.b16 %v76
  %v3385 = vunpack.c.l.b16 %v77
  %v3386 = vunpack.c.l.b16 %v78
  %v3387 = vunpack.c.l.b16 %v79
  %v3388 = vunpack.c.l.b16 %v80
  %v3389 = vunpack.c.l.b16 %v81
  %v3390 = vunpack.c.l.b16 %v82
  %v3391 = vunpack.c.l.b16 %v83
  %v3392 = vunpack.c.l.b16 %v84
  %v3393 = vunpack.c.l.b16 %v85
  %v3394 = vunpack.c.l.b16 %v86
  %v3395 = vunpack.c.l.b16 %v87
  %v3396 = vunpack.c.l.b16 %v88
  %v3397 = vunpack.c.l.b16 %v89
  %v3398 = vunpack.c.l.b16 %v90
  %v3399 = vunpack.c.l.b16 %v91
  %v3400 = vunpack.c.l.b16 %v92
  %v3401 = vunpack.c.l.b16 %v93
  %v3402 = vunpack.c.l.b16 %v94
  %v3403 = vunpack.c.l.b16 %v95
  %v3404 = vunpack.c.l.b16 %v96
  %v3405 = vunpack.c.l.b16 %v97
  %v3406 = vunpack.c.l.b16 %v98
  %v3407 = vunpack.c.l.b16 %v99
  %v3408 = vpack.c.b16 %v3377, %v3376
  %v3409 = vpack.c.b16 %v3379, %v3378
  %v3410 = vpack.c.b16 %v3381, %v3380
  %v3411 = vpack.c.b16 %v3383, %v3382
  %v3412 = vpack.c.b16 %v3385, %v3384
  %v3413 = vpack.c.b16 %v3387, %v3386
  %v3414 = vpack.c.b16 %v3389, %v3388
  %v3415 = vpack.c.b16 %v3391, %v3390
  %v3416 = vpack.c.b16 %v3393, %v3392
  %v3417 = vpack.c.b16 %v3395, %v3394
  %v3418 = vpack.c.b16 %v3397, %v3396
  %v3419 = vpack.c.b16 %v3399, %v3398
  %v3420 = vpack.c.b16 %v3401, %v3400
  %v3421 = vpack.c.b16 %v3403, %v3402
  %v3422 = vpack.c.b16 %v3405, %v3404
  %v3423 = vpack.c.b16 %v3407, %v3406
  %v3426 = vunpack.c.l.b16 %v3342
  %v3427 = vunpack.c.l.b16 %v3343
  %v3428 = vpack.c.b16 %v3427, %v3426
  %vm3429 = vcmask 121856
  %v3431 = vsel %vm3429, %v3408, 0
  %v3434 = vsel %vm3429, %v3409, 0
  %v3437 = vsel %vm3429, %v3410, 0
  %v3440 = vsel %vm3429, %v3411, 0
  %v3443 = vsel %vm3429, %v3412, 0
  %v3446 = vsel %vm3429, %v3413, 0
  %v3449 = vsel %vm3429, %v3414, 0
  %v3452 = vsel %vm3429, %v3415, 0
  %v3455 = vsel %vm3429, %v3416, 0
  %v3458 = vsel %vm3429, %v3417, 0
  %v3461 = vsel %vm3429, %v3418, 0
  %v3464 = vsel %vm3429, %v3419, 0
  %v3467 = vsel %vm3429, %v3420, 0
  %v3470 = vsel %vm3429, %v3421, 0
  %v3473 = vsel %vm3429, %v3422, 0
  %v3476 = vsel %vm3429, %v3423, 0
  %vm3478 = vcmask 1046528
  %vm3479 = vcmask 1047552
  %v3480 = vsel %vm3478, 4294967295, 65535
  %v3481 = vsel %vm3479, %v3480, 0
  %v3483 = vand.u32 %v3428, %v3481
  %3485 = vmatprep.subr.bf16.mxu0 0
  %3486 = vmatpush1.bf16.msra.mxu0 %v3483
  %3487 = vmatprep.subr.bf16.mxu0 0
  %3488 = vmatpush1.bf16.msra.mxu0 0
  %3489 = vmatprep.subr.bf16.mxu0 0
  %3490 = vmatpush1.bf16.msra.mxu0 0
  %3491 = vmatprep.subr.bf16.mxu0 0
  %3492 = vmatpush1.bf16.msra.mxu0 0
  %3493 = vmatprep.subr.bf16.mxu0 0
  %3494 = vmatpush1.bf16.msra.mxu0 0
  %3495 = vmatprep.subr.bf16.mxu0 0
  %3496 = vmatpush1.bf16.msra.mxu0 0
  %3497 = vmatprep.subr.bf16.mxu0 0
  %3498 = vmatpush1.bf16.msra.mxu0 0
  %3499 = vmatprep.subr.bf16.mxu0 0
  %3500 = vmatpush1.bf16.msra.mxu0 0
  %3501 = vmatprep.subr.bf16.mxu0 0
  %3502 = vmatpush1.bf16.msra.mxu0 0
  %3503 = vmatprep.subr.bf16.mxu0 0
  %3504 = vmatpush1.bf16.msra.mxu0 0
  %3505 = vmatprep.subr.bf16.mxu0 0
  %3506 = vmatpush1.bf16.msra.mxu0 0
  %3507 = vmatprep.subr.bf16.mxu0 0
  %3508 = vmatpush1.bf16.msra.mxu0 0
  %3509 = vmatprep.subr.bf16.mxu0 0
  %3510 = vmatpush1.bf16.msra.mxu0 0
  %3511 = vmatprep.subr.bf16.mxu0 0
  %3512 = vmatpush1.bf16.msra.mxu0 0
  %3513 = vmatprep.subr.bf16.mxu0 0
  %3514 = vmatpush1.bf16.msra.mxu0 0
  %3515 = vmatprep.subr.bf16.mxu0 0
  %3516 = vmatpush1.bf16.msra.mxu0 0
  %3517 = vmatprep.mubr.bf16.mxu0 0
  %3518 = vmatmul.mubr.bf16.gmra.mrb[0].mxu0 %v3431
  %v3519 = vpop.f32.mrb[0].mxu0
  %v3520 = vadd.f32 0.0, %v3519
  %v3521 = vpop.f32.mrb[0].mxu0
  %v3522 = vpop.f32.mrb[0].mxu0
  %v3523 = vadd.f32 0.0, %v3522
  %v3524 = vpop.f32.mrb[0].mxu0
  %3525 = vmatprep.mubr.bf16.mxu0 0
  %3526 = vmatmul.mubr.bf16.gmra.mrb[0].mxu0 %v3434
  %v3527 = vpop.f32.mrb[0].mxu0
  %v3528 = vadd.f32 0.0, %v3527
  %v3529 = vpop.f32.mrb[0].mxu0
  %v3530 = vpop.f32.mrb[0].mxu0
  %v3531 = vadd.f32 0.0, %v3530
  %v3532 = vpop.f32.mrb[0].mxu0
  %3533 = vmatprep.mubr.bf16.mxu0 0
  %3534 = vmatmul.mubr.bf16.gmra.mrb[0].mxu0 %v3437
  %v3535 = vpop.f32.mrb[0].mxu0
  %v3536 = vadd.f32 0.0, %v3535
  %v3537 = vpop.f32.mrb[0].mxu0
  %v3538 = vpop.f32.mrb[0].mxu0
  %v3539 = vadd.f32 0.0, %v3538
  %v3540 = vpop.f32.mrb[0].mxu0
  %3541 = vmatprep.mubr.bf16.mxu0 0
  %3542 = vmatmul.mubr.bf16.gmra.mrb[0].mxu0 %v3440
  %v3543 = vpop.f32.mrb[0].mxu0
  %v3544 = vadd.f32 0.0, %v3543
  %v3545 = vpop.f32.mrb[0].mxu0
  %v3546 = vpop.f32.mrb[0].mxu0
  %v3547 = vadd.f32 0.0, %v3546
  %v3548 = vpop.f32.mrb[0].mxu0
  %3549 = vmatprep.mubr.bf16.mxu0 0
  %3550 = vmatmul.mubr.bf16.gmra.mrb[0].mxu0 %v3443
  %v3551 = vpop.f32.mrb[0].mxu0
  %v3552 = vadd.f32 0.0, %v3551
  %v3553 = vpop.f32.mrb[0].mxu0
  %v3554 = vpop.f32.mrb[0].mxu0
  %v3555 = vadd.f32 0.0, %v3554
  %v3556 = vpop.f32.mrb[0].mxu0
  %3557 = vmatprep.mubr.bf16.mxu0 0
  %3558 = vmatmul.mubr.bf16.gmra.mrb[0].mxu0 %v3446
  %v3559 = vpop.f32.mrb[0].mxu0
  %v3560 = vadd.f32 0.0, %v3559
  %v3561 = vpop.f32.mrb[0].mxu0
  %v3562 = vpop.f32.mrb[0].mxu0
  %v3563 = vadd.f32 0.0, %v3562
  %v3564 = vpop.f32.mrb[0].mxu0
  %3565 = vmatprep.mubr.bf16.mxu0 0
  %3566 = vmatmul.mubr.bf16.gmra.mrb[0].mxu0 %v3449
  %v3567 = vpop.f32.mrb[0].mxu0
  %v3568 = vadd.f32 0.0, %v3567
  %v3569 = vpop.f32.mrb[0].mxu0
  %v3570 = vpop.f32.mrb[0].mxu0
  %v3571 = vadd.f32 0.0, %v3570
  %v3572 = vpop.f32.mrb[0].mxu0
  %3573 = vmatprep.mubr.bf16.mxu0 0
  %3574 = vmatmul.mubr.bf16.gmra.mrb[0].mxu0 %v3452
  %v3575 = vpop.f32.mrb[0].mxu0
  %v3576 = vadd.f32 0.0, %v3575
  %v3577 = vpop.f32.mrb[0].mxu0
  %v3578 = vpop.f32.mrb[0].mxu0
  %v3579 = vadd.f32 0.0, %v3578
  %v3580 = vpop.f32.mrb[0].mxu0
  %3581 = vmatprep.mubr.bf16.mxu0 0
  %3582 = vmatmul.mubr.bf16.gmra.mrb[0].mxu0 %v3455
  %v3583 = vpop.f32.mrb[0].mxu0
  %v3584 = vadd.f32 0.0, %v3583
  %v3585 = vpop.f32.mrb[0].mxu0
  %v3586 = vpop.f32.mrb[0].mxu0
  %v3587 = vadd.f32 0.0, %v3586
  %v3588 = vpop.f32.mrb[0].mxu0
  %3589 = vmatprep.mubr.bf16.mxu0 0
  %3590 = vmatmul.mubr.bf16.gmra.mrb[0].mxu0 %v3458
  %v3591 = vpop.f32.mrb[0].mxu0
  %v3592 = vadd.f32 0.0, %v3591
  %v3593 = vpop.f32.mrb[0].mxu0
  %v3594 = vpop.f32.mrb[0].mxu0
  %v3595 = vadd.f32 0.0, %v3594
  %v3596 = vpop.f32.mrb[0].mxu0
  %3597 = vmatprep.mubr.bf16.mxu0 0
  %3598 = vmatmul.mubr.bf16.gmra.mrb[0].mxu0 %v3461
  %v3599 = vpop.f32.mrb[0].mxu0
  %v3600 = vadd.f32 0.0, %v3599
  %v3601 = vpop.f32.mrb[0].mxu0
  %v3602 = vpop.f32.mrb[0].mxu0
  %v3603 = vadd.f32 0.0, %v3602
  %v3604 = vpop.f32.mrb[0].mxu0
  %3605 = vmatprep.mubr.bf16.mxu0 0
  %3606 = vmatmul.mubr.bf16.gmra.mrb[0].mxu0 %v3464
  %v3607 = vpop.f32.mrb[0].mxu0
  %v3608 = vadd.f32 0.0, %v3607
  %v3609 = vpop.f32.mrb[0].mxu0
  %v3610 = vpop.f32.mrb[0].mxu0
  %v3611 = vadd.f32 0.0, %v3610
  %v3612 = vpop.f32.mrb[0].mxu0
  %3613 = vmatprep.mubr.bf16.mxu0 0
  %3614 = vmatmul.mubr.bf16.gmra.mrb[0].mxu0 %v3467
  %v3615 = vpop.f32.mrb[0].mxu0
  %v3616 = vadd.f32 0.0, %v3615
  %v3617 = vpop.f32.mrb[0].mxu0
  %v3618 = vpop.f32.mrb[0].mxu0
  %v3619 = vadd.f32 0.0, %v3618
  %v3620 = vpop.f32.mrb[0].mxu0
  %3621 = vmatprep.mubr.bf16.mxu0 0
  %3622 = vmatmul.mubr.bf16.gmra.mrb[0].mxu0 %v3470
  %v3623 = vpop.f32.mrb[0].mxu0
  %v3624 = vadd.f32 0.0, %v3623
  %v3625 = vpop.f32.mrb[0].mxu0
  %v3626 = vpop.f32.mrb[0].mxu0
  %v3627 = vadd.f32 0.0, %v3626
  %v3628 = vpop.f32.mrb[0].mxu0
  %3629 = vmatprep.mubr.bf16.mxu0 0
  %3630 = vmatmul.mubr.bf16.gmra.mrb[0].mxu0 %v3473
  %v3631 = vpop.f32.mrb[0].mxu0
  %v3632 = vadd.f32 0.0, %v3631
  %v3633 = vpop.f32.mrb[0].mxu0
  %v3634 = vpop.f32.mrb[0].mxu0
  %v3635 = vadd.f32 0.0, %v3634
  %v3636 = vpop.f32.mrb[0].mxu0
  %3637 = vmatprep.mubr.bf16.mxu0 0
  %3638 = vmatmul.mubr.bf16.gmra.mrb[0].mxu0 %v3476
  %v3639 = vpop.f32.mrb[0].mxu0
  %v3640 = vadd.f32 0.0, %v3639
  %v3641 = vpop.f32.mrb[0].mxu0
  %v3642 = vpop.f32.mrb[0].mxu0
  %v3643 = vadd.f32 0.0, %v3642
  %v3644 = vpop.f32.mrb[0].mxu0
  %3645 = vdwg.mxu0
  %v3662 = vunpack.c.l.b16 %v3326
  %v3663 = vunpack.c.l.b16 %v3327
  %v3664 = vunpack.c.l.b16 %v3328
  %v3665 = vunpack.c.l.b16 %v3329
  %v3666 = vunpack.c.l.b16 %v3330
  %v3667 = vunpack.c.l.b16 %v3331
  %v3668 = vunpack.c.l.b16 %v3332
  %v3669 = vunpack.c.l.b16 %v3333
  %v3670 = vunpack.c.l.b16 %v3334
  %v3671 = vunpack.c.l.b16 %v3335
  %v3672 = vunpack.c.l.b16 %v3336
  %v3673 = vunpack.c.l.b16 %v3337
  %v3674 = vunpack.c.l.b16 %v3338
  %v3675 = vunpack.c.l.b16 %v3339
  %v3676 = vunpack.c.l.b16 %v3340
  %v3677 = vunpack.c.l.b16 %v3341
  %v3678 = vpack.c.b16 %v3663, %v3662
  %v3679 = vpack.c.b16 %v3665, %v3664
  %v3680 = vpack.c.b16 %v3667, %v3666
  %v3681 = vpack.c.b16 %v3669, %v3668
  %v3682 = vpack.c.b16 %v3671, %v3670
  %v3683 = vpack.c.b16 %v3673, %v3672
  %v3684 = vpack.c.b16 %v3675, %v3674
  %v3685 = vpack.c.b16 %v3677, %v3676
  %3694 = vmatprep.subr.bf16.mxu0 0
  %3695 = vmatpush1.bf16.msra.mxu0 %v3678
  %3696 = vmatprep.subr.bf16.mxu0 0
  %3697 = vmatpush1.bf16.msra.mxu0 %v3679
  %3698 = vmatprep.subr.bf16.mxu0 0
  %3699 = vmatpush1.bf16.msra.mxu0 %v3680
  %3700 = vmatprep.subr.bf16.mxu0 0
  %3701 = vmatpush1.bf16.msra.mxu0 %v3681
  %3702 = vmatprep.subr.bf16.mxu0 0
  %3703 = vmatpush1.bf16.msra.mxu0 %v3682
  %3704 = vmatprep.subr.bf16.mxu0 0
  %3705 = vmatpush1.bf16.msra.mxu0 %v3683
  %3706 = vmatprep.subr.bf16.mxu0 0
  %3707 = vmatpush1.bf16.msra.mxu0 %v3684
  %3708 = vmatprep.subr.bf16.mxu0 0
  %3709 = vmatpush1.bf16.msra.mxu0 %v3685
  %3710 = vmatprep.subr.bf16.mxu0 0
  %3711 = vmatpush1.bf16.msra.mxu0 0
  %3712 = vmatprep.subr.bf16.mxu0 0
  %3713 = vmatpush1.bf16.msra.mxu0 0
  %3714 = vmatprep.subr.bf16.mxu0 0
  %3715 = vmatpush1.bf16.msra.mxu0 0
  %3716 = vmatprep.subr.bf16.mxu0 0
  %3717 = vmatpush1.bf16.msra.mxu0 0
  %3718 = vmatprep.subr.bf16.mxu0 0
  %3719 = vmatpush1.bf16.msra.mxu0 0
  %3720 = vmatprep.subr.bf16.mxu0 0
  %3721 = vmatpush1.bf16.msra.mxu0 0
  %3722 = vmatprep.subr.bf16.mxu0 0
  %3723 = vmatpush1.bf16.msra.mxu0 0
  %3724 = vmatprep.subr.bf16.mxu0 0
  %3725 = vmatpush1.bf16.msra.mxu0 0
  %3726 = vmatprep.mubr.bf16.mxu0 0
  %3727 = vmatmul.mubr.bf16.gmra.mrb[0].mxu0 %v3309
  %v3728 = vpop.f32.mrb[0].mxu0
  %v3729 = vadd.f32 %v3520, %v3728
  %v3730 = vpop.f32.mrb[0].mxu0
  %v3731 = vpop.f32.mrb[0].mxu0
  %v3732 = vadd.f32 %v3523, %v3731
  %v3733 = vpop.f32.mrb[0].mxu0
  %3734 = vmatprep.mubr.bf16.mxu0 0
  %3735 = vmatmul.mubr.bf16.gmra.mrb[0].mxu0 %v3310
  %v3736 = vpop.f32.mrb[0].mxu0
  %v3737 = vadd.f32 %v3528, %v3736
  %v3738 = vpop.f32.mrb[0].mxu0
  %v3739 = vpop.f32.mrb[0].mxu0
  %v3740 = vadd.f32 %v3531, %v3739
  %v3741 = vpop.f32.mrb[0].mxu0
  %3742 = vmatprep.mubr.bf16.mxu0 0
  %3743 = vmatmul.mubr.bf16.gmra.mrb[0].mxu0 %v3311
  %v3744 = vpop.f32.mrb[0].mxu0
  %v3745 = vadd.f32 %v3536, %v3744
  %v3746 = vpop.f32.mrb[0].mxu0
  %v3747 = vpop.f32.mrb[0].mxu0
  %v3748 = vadd.f32 %v3539, %v3747
  %v3749 = vpop.f32.mrb[0].mxu0
  %3750 = vmatprep.mubr.bf16.mxu0 0
  %3751 = vmatmul.mubr.bf16.gmra.mrb[0].mxu0 %v3312
  %v3752 = vpop.f32.mrb[0].mxu0
  %v3753 = vadd.f32 %v3544, %v3752
  %v3754 = vpop.f32.mrb[0].mxu0
  %v3755 = vpop.f32.mrb[0].mxu0
  %v3756 = vadd.f32 %v3547, %v3755
  %v3757 = vpop.f32.mrb[0].mxu0
  %3758 = vmatprep.mubr.bf16.mxu0 0
  %3759 = vmatmul.mubr.bf16.gmra.mrb[0].mxu0 %v3313
  %v3760 = vpop.f32.mrb[0].mxu0
  %v3761 = vadd.f32 %v3552, %v3760
  %v3762 = vpop.f32.mrb[0].mxu0
  %v3763 = vpop.f32.mrb[0].mxu0
  %v3764 = vadd.f32 %v3555, %v3763
  %v3765 = vpop.f32.mrb[0].mxu0
  %3766 = vmatprep.mubr.bf16.mxu0 0
  %3767 = vmatmul.mubr.bf16.gmra.mrb[0].mxu0 %v3314
  %v3768 = vpop.f32.mrb[0].mxu0
  %v3769 = vadd.f32 %v3560, %v3768
  %v3770 = vpop.f32.mrb[0].mxu0
  %v3771 = vpop.f32.mrb[0].mxu0
  %v3772 = vadd.f32 %v3563, %v3771
  %v3773 = vpop.f32.mrb[0].mxu0
  %3774 = vmatprep.mubr.bf16.mxu0 0
  %3775 = vmatmul.mubr.bf16.gmra.mrb[0].mxu0 %v3315
  %v3776 = vpop.f32.mrb[0].mxu0
  %v3777 = vadd.f32 %v3568, %v3776
  %v3778 = vpop.f32.mrb[0].mxu0
  %v3779 = vpop.f32.mrb[0].mxu0
  %v3780 = vadd.f32 %v3571, %v3779
  %v3781 = vpop.f32.mrb[0].mxu0
  %3782 = vmatprep.mubr.bf16.mxu0 0
  %3783 = vmatmul.mubr.bf16.gmra.mrb[0].mxu0 %v3316
  %v3784 = vpop.f32.mrb[0].mxu0
  %v3785 = vadd.f32 %v3576, %v3784
  %v3786 = vpop.f32.mrb[0].mxu0
  %v3787 = vpop.f32.mrb[0].mxu0
  %v3788 = vadd.f32 %v3579, %v3787
  %v3789 = vpop.f32.mrb[0].mxu0
  %3790 = vmatprep.mubr.bf16.mxu0 0
  %3791 = vmatmul.mubr.bf16.gmra.mrb[0].mxu0 %v3317
  %v3792 = vpop.f32.mrb[0].mxu0
  %v3793 = vadd.f32 %v3584, %v3792
  %v3794 = vpop.f32.mrb[0].mxu0
  %v3795 = vpop.f32.mrb[0].mxu0
  %v3796 = vadd.f32 %v3587, %v3795
  %v3797 = vpop.f32.mrb[0].mxu0
  %3798 = vmatprep.mubr.bf16.mxu0 0
  %3799 = vmatmul.mubr.bf16.gmra.mrb[0].mxu0 %v3318
  %v3800 = vpop.f32.mrb[0].mxu0
  %v3801 = vadd.f32 %v3592, %v3800
  %v3802 = vpop.f32.mrb[0].mxu0
  %v3803 = vpop.f32.mrb[0].mxu0
  %v3804 = vadd.f32 %v3595, %v3803
  %v3805 = vpop.f32.mrb[0].mxu0
  %3806 = vmatprep.mubr.bf16.mxu0 0
  %3807 = vmatmul.mubr.bf16.gmra.mrb[0].mxu0 %v3319
  %v3808 = vpop.f32.mrb[0].mxu0
  %v3809 = vadd.f32 %v3600, %v3808
  %v3810 = vpop.f32.mrb[0].mxu0
  %v3811 = vpop.f32.mrb[0].mxu0
  %v3812 = vadd.f32 %v3603, %v3811
  %v3813 = vpop.f32.mrb[0].mxu0
  %3814 = vmatprep.mubr.bf16.mxu0 0
  %3815 = vmatmul.mubr.bf16.gmra.mrb[0].mxu0 %v3320
  %v3816 = vpop.f32.mrb[0].mxu0
  %v3817 = vadd.f32 %v3608, %v3816
  %v3818 = vpop.f32.mrb[0].mxu0
  %v3819 = vpop.f32.mrb[0].mxu0
  %v3820 = vadd.f32 %v3611, %v3819
  %v3821 = vpop.f32.mrb[0].mxu0
  %3822 = vmatprep.mubr.bf16.mxu0 0
  %3823 = vmatmul.mubr.bf16.gmra.mrb[0].mxu0 %v3321
  %v3824 = vpop.f32.mrb[0].mxu0
  %v3825 = vadd.f32 %v3616, %v3824
  %v3826 = vpop.f32.mrb[0].mxu0
  %v3827 = vpop.f32.mrb[0].mxu0
  %v3828 = vadd.f32 %v3619, %v3827
  %v3829 = vpop.f32.mrb[0].mxu0
  %3830 = vmatprep.mubr.bf16.mxu0 0
  %3831 = vmatmul.mubr.bf16.gmra.mrb[0].mxu0 %v3322
  %v3832 = vpop.f32.mrb[0].mxu0
  %v3833 = vadd.f32 %v3624, %v3832
  %v3834 = vpop.f32.mrb[0].mxu0
  %v3835 = vpop.f32.mrb[0].mxu0
  %v3836 = vadd.f32 %v3627, %v3835
  %v3837 = vpop.f32.mrb[0].mxu0
  %3838 = vmatprep.mubr.bf16.mxu0 0
  %3839 = vmatmul.mubr.bf16.gmra.mrb[0].mxu0 %v3323
  %v3840 = vpop.f32.mrb[0].mxu0
  %v3841 = vadd.f32 %v3632, %v3840
  %v3842 = vpop.f32.mrb[0].mxu0
  %v3843 = vpop.f32.mrb[0].mxu0
  %v3844 = vadd.f32 %v3635, %v3843
  %v3845 = vpop.f32.mrb[0].mxu0
  %3846 = vmatprep.mubr.bf16.mxu0 0
  %3847 = vmatmul.mubr.bf16.gmra.mrb[0].mxu0 %v3324
  %v3848 = vpop.f32.mrb[0].mxu0
  %v3849 = vadd.f32 %v3640, %v3848
  %v3850 = vpop.f32.mrb[0].mxu0
  %v3851 = vpop.f32.mrb[0].mxu0
  %v3852 = vadd.f32 %v3643, %v3851
  %v3853 = vpop.f32.mrb[0].mxu0
  %3854 = vdwg.mxu0
  %v3855 = vlaneseq
  %v3856 = vshrl.u32 %v3855, 7
  %v3857 = vsub.s32 0, %v3856
  %v3858 = vrot.slane %v101, %v3857
  %v3859 = vadd.f32 %v3729, %v3858
  %v3860 = vadd.f32 %v3732, %v3858
  %v3861 = vadd.f32 %v3737, %v3858
  %v3862 = vadd.f32 %v3740, %v3858
  %v3863 = vadd.f32 %v3745, %v3858
  %v3864 = vadd.f32 %v3748, %v3858
  %v3865 = vadd.f32 %v3753, %v3858
  %v3866 = vadd.f32 %v3756, %v3858
  %v3867 = vadd.f32 %v3761, %v3858
  %v3868 = vadd.f32 %v3764, %v3858
  %v3869 = vadd.f32 %v3769, %v3858
  %v3870 = vadd.f32 %v3772, %v3858
  %v3871 = vadd.f32 %v3777, %v3858
  %v3872 = vadd.f32 %v3780, %v3858
  %v3873 = vadd.f32 %v3785, %v3858
  %v3874 = vadd.f32 %v3788, %v3858
  %v3875 = vadd.f32 %v3793, %v3858
  %v3876 = vadd.f32 %v3796, %v3858
  %v3877 = vadd.f32 %v3801, %v3858
  %v3878 = vadd.f32 %v3804, %v3858
  %v3879 = vadd.f32 %v3809, %v3858
  %v3880 = vadd.f32 %v3812, %v3858
  %v3881 = vadd.f32 %v3817, %v3858
  %v3882 = vadd.f32 %v3820, %v3858
  %v3883 = vadd.f32 %v3825, %v3858
  %v3884 = vadd.f32 %v3828, %v3858
  %v3885 = vadd.f32 %v3833, %v3858
  %v3886 = vadd.f32 %v3836, %v3858
  %v3887 = vadd.f32 %v3841, %v3858
  %v3888 = vadd.f32 %v3844, %v3858
  %v3889 = vadd.f32 %v3849, %v3858
  %v3890 = vadd.f32 %v3852, %v3858
  %v3891 = vmax.f32 %v3859, 0.0
  %v3892 = vmax.f32 %v3860, 0.0
  %v3893 = vmax.f32 %v3861, 0.0
  %v3894 = vmax.f32 %v3862, 0.0
  %v3895 = vmax.f32 %v3863, 0.0
  %v3896 = vmax.f32 %v3864, 0.0
  %v3897 = vmax.f32 %v3865, 0.0
  %v3898 = vmax.f32 %v3866, 0.0
  %v3899 = vmax.f32 %v3867, 0.0
  %v3900 = vmax.f32 %v3868, 0.0
  %v3901 = vmax.f32 %v3869, 0.0
  %v3902 = vmax.f32 %v3870, 0.0
  %v3903 = vmax.f32 %v3871, 0.0
  %v3904 = vmax.f32 %v3872, 0.0
  %v3905 = vmax.f32 %v3873, 0.0
  %v3906 = vmax.f32 %v3874, 0.0
  %v3907 = vmax.f32 %v3875, 0.0
  %v3908 = vmax.f32 %v3876, 0.0
  %v3909 = vmax.f32 %v3877, 0.0
  %v3910 = vmax.f32 %v3878, 0.0
  %v3911 = vmax.f32 %v3879, 0.0
  %v3912 = vmax.f32 %v3880, 0.0
  %v3913 = vmax.f32 %v3881, 0.0
  %v3914 = vmax.f32 %v3882, 0.0
  %v3915 = vmax.f32 %v3883, 0.0
  %v3916 = vmax.f32 %v3884, 0.0
  %v3917 = vmax.f32 %v3885, 0.0
  %v3918 = vmax.f32 %v3886, 0.0
  %v3919 = vmax.f32 %v3887, 0.0
  %v3920 = vmax.f32 %v3888, 0.0
  %v3921 = vmax.f32 %v3889, 0.0
  %v3922 = vmax.f32 %v3890, 0.0
  %v3923 = vpack.c.bf16 %v3892, %v3891
  %v3924 = vpack.c.bf16 %v3894, %v3893
  %v3925 = vpack.c.bf16 %v3896, %v3895
  %v3926 = vpack.c.bf16 %v3898, %v3897
  %v3927 = vpack.c.bf16 %v3900, %v3899
  %v3928 = vpack.c.bf16 %v3902, %v3901
  %v3929 = vpack.c.bf16 %v3904, %v3903
  %v3930 = vpack.c.bf16 %v3906, %v3905
  %v3931 = vpack.c.bf16 %v3908, %v3907
  %v3932 = vpack.c.bf16 %v3910, %v3909
  %v3933 = vpack.c.bf16 %v3912, %v3911
  %v3934 = vpack.c.bf16 %v3914, %v3913
  %v3935 = vpack.c.bf16 %v3916, %v3915
  %v3936 = vpack.c.bf16 %v3918, %v3917
  %v3937 = vpack.c.bf16 %v3920, %v3919
  %v3938 = vpack.c.bf16 %v3922, %v3921
  %v3939 = vld [vmem:[%s6] sm:$0xf]
  %v3940 = vld [vmem:[%s6 + $0x4] sm:$0xf]
  %v3941 = vld [vmem:[%s6 + $0x8] sm:$0xf]
  %v3942 = vld [vmem:[%s6 + $0xc] sm:$0xf]
  %v3943 = vld [vmem:[%s6 + $0x10] sm:$0xf]
  %v3944 = vld [vmem:[%s6 + $0x14] sm:$0xf]
  %v3945 = vld [vmem:[%s6 + $0x18] sm:$0xf]
  %v3946 = vld [vmem:[%s6 + $0x1c] sm:$0xf]
  %v3947 = vld [vmem:[%s6 + $0x20] sm:$0xf]
  %v3948 = vld [vmem:[%s6 + $0x24] sm:$0xf]
  %v3949 = vld [vmem:[%s6 + $0x28] sm:$0xf]
  %v3950 = vld [vmem:[%s6 + $0x2c] sm:$0xf]
  %v3951 = vld [vmem:[%s6 + $0x30] sm:$0xf]
  %v3952 = vld [vmem:[%s6 + $0x34] sm:$0xf]
  %v3953 = vld [vmem:[%s6 + $0x38] sm:$0xf]
  %v3954 = vld [vmem:[%s6 + $0x3c] sm:$0xf]
  %v3955 = vld [vmem:[%s9] sm:$0x1]
  %v3957 = vlaneseq
  %v3958 = vshrl.u32 %v3957, 7
  %v3959 = vsub.s32 0, %v3958
  %v3960 = vrot.slane %v3955, %v3959
  %v3978 = vunpack.c.l.b16 %v3939
  %v3979 = vunpack.c.l.b16 %v3940
  %v3980 = vunpack.c.l.b16 %v3941
  %v3981 = vunpack.c.l.b16 %v3942
  %v3982 = vunpack.c.l.b16 %v3943
  %v3983 = vunpack.c.l.b16 %v3944
  %v3984 = vunpack.c.l.b16 %v3945
  %v3985 = vunpack.c.l.b16 %v3946
  %v3986 = vunpack.c.l.b16 %v3947
  %v3987 = vunpack.c.l.b16 %v3948
  %v3988 = vunpack.c.l.b16 %v3949
  %v3989 = vunpack.c.l.b16 %v3950
  %v3990 = vunpack.c.l.b16 %v3951
  %v3991 = vunpack.c.l.b16 %v3952
  %v3992 = vunpack.c.l.b16 %v3953
  %v3993 = vunpack.c.l.b16 %v3954
  %v3994 = vpack.c.b16 %v3979, %v3978
  %v3995 = vpack.c.b16 %v3981, %v3980
  %v3996 = vpack.c.b16 %v3983, %v3982
  %v3997 = vpack.c.b16 %v3985, %v3984
  %v3998 = vpack.c.b16 %v3987, %v3986
  %v3999 = vpack.c.b16 %v3989, %v3988
  %v4000 = vpack.c.b16 %v3991, %v3990
  %v4001 = vpack.c.b16 %v3993, %v3992
  %4010 = vmatprep.subr.bf16.mxu0 0
  %4011 = vmatpush1.bf16.msra.mxu0 %v3994
  %4012 = vmatprep.subr.bf16.mxu0 0
  %4013 = vmatpush1.bf16.msra.mxu0 %v3995
  %4014 = vmatprep.subr.bf16.mxu0 0
  %4015 = vmatpush1.bf16.msra.mxu0 %v3996
  %4016 = vmatprep.subr.bf16.mxu0 0
  %4017 = vmatpush1.bf16.msra.mxu0 %v3997
  %4018 = vmatprep.subr.bf16.mxu0 0
  %4019 = vmatpush1.bf16.msra.mxu0 %v3998
  %4020 = vmatprep.subr.bf16.mxu0 0
  %4021 = vmatpush1.bf16.msra.mxu0 %v3999
  %4022 = vmatprep.subr.bf16.mxu0 0
  %4023 = vmatpush1.bf16.msra.mxu0 %v4000
  %4024 = vmatprep.subr.bf16.mxu0 0
  %4025 = vmatpush1.bf16.msra.mxu0 %v4001
  %4026 = vmatprep.subr.bf16.mxu0 0
  %4027 = vmatpush1.bf16.msra.mxu0 0
  %4028 = vmatprep.subr.bf16.mxu0 0
  %4029 = vmatpush1.bf16.msra.mxu0 0
  %4030 = vmatprep.subr.bf16.mxu0 0
  %4031 = vmatpush1.bf16.msra.mxu0 0
  %4032 = vmatprep.subr.bf16.mxu0 0
  %4033 = vmatpush1.bf16.msra.mxu0 0
  %4034 = vmatprep.subr.bf16.mxu0 0
  %4035 = vmatpush1.bf16.msra.mxu0 0
  %4036 = vmatprep.subr.bf16.mxu0 0
  %4037 = vmatpush1.bf16.msra.mxu0 0
  %4038 = vmatprep.subr.bf16.mxu0 0
  %4039 = vmatpush1.bf16.msra.mxu0 0
  %4040 = vmatprep.subr.bf16.mxu0 0
  %4041 = vmatpush1.bf16.msra.mxu0 0
  %4042 = vmatprep.mubr.bf16.mxu0 0
  %4043 = vmatmul.mubr.bf16.gmra.mrb[0].mxu0 %v3923
  %v4044 = vpop.f32.mrb[0].mxu0
  %v4045 = vadd.f32 %v3960, %v4044
  %v4046 = vpop.f32.mrb[0].mxu0
  %v4047 = vpop.f32.mrb[0].mxu0
  %v4048 = vadd.f32 %v3960, %v4047
  %v4049 = vpop.f32.mrb[0].mxu0
  %4050 = vmatprep.mubr.bf16.mxu0 0
  %4051 = vmatmul.mubr.bf16.gmra.mrb[0].mxu0 %v3924
  %v4052 = vpop.f32.mrb[0].mxu0
  %v4053 = vadd.f32 %v3960, %v4052
  %v4054 = vpop.f32.mrb[0].mxu0
  %v4055 = vpop.f32.mrb[0].mxu0
  %v4056 = vadd.f32 %v3960, %v4055
  %v4057 = vpop.f32.mrb[0].mxu0
  %4058 = vmatprep.mubr.bf16.mxu0 0
  %4059 = vmatmul.mubr.bf16.gmra.mrb[0].mxu0 %v3925
  %v4060 = vpop.f32.mrb[0].mxu0
  %v4061 = vadd.f32 %v3960, %v4060
  %v4062 = vpop.f32.mrb[0].mxu0
  %v4063 = vpop.f32.mrb[0].mxu0
  %v4064 = vadd.f32 %v3960, %v4063
  %v4065 = vpop.f32.mrb[0].mxu0
  %4066 = vmatprep.mubr.bf16.mxu0 0
  %4067 = vmatmul.mubr.bf16.gmra.mrb[0].mxu0 %v3926
  %v4068 = vpop.f32.mrb[0].mxu0
  %v4069 = vadd.f32 %v3960, %v4068
  %v4070 = vpop.f32.mrb[0].mxu0
  %v4071 = vpop.f32.mrb[0].mxu0
  %v4072 = vadd.f32 %v3960, %v4071
  %v4073 = vpop.f32.mrb[0].mxu0
  %4074 = vmatprep.mubr.bf16.mxu0 0
  %4075 = vmatmul.mubr.bf16.gmra.mrb[0].mxu0 %v3927
  %v4076 = vpop.f32.mrb[0].mxu0
  %v4077 = vadd.f32 %v3960, %v4076
  %v4078 = vpop.f32.mrb[0].mxu0
  %v4079 = vpop.f32.mrb[0].mxu0
  %v4080 = vadd.f32 %v3960, %v4079
  %v4081 = vpop.f32.mrb[0].mxu0
  %4082 = vmatprep.mubr.bf16.mxu0 0
  %4083 = vmatmul.mubr.bf16.gmra.mrb[0].mxu0 %v3928
  %v4084 = vpop.f32.mrb[0].mxu0
  %v4085 = vadd.f32 %v3960, %v4084
  %v4086 = vpop.f32.mrb[0].mxu0
  %v4087 = vpop.f32.mrb[0].mxu0
  %v4088 = vadd.f32 %v3960, %v4087
  %v4089 = vpop.f32.mrb[0].mxu0
  %4090 = vmatprep.mubr.bf16.mxu0 0
  %4091 = vmatmul.mubr.bf16.gmra.mrb[0].mxu0 %v3929
  %v4092 = vpop.f32.mrb[0].mxu0
  %v4093 = vadd.f32 %v3960, %v4092
  %v4094 = vpop.f32.mrb[0].mxu0
  %v4095 = vpop.f32.mrb[0].mxu0
  %v4096 = vadd.f32 %v3960, %v4095
  %v4097 = vpop.f32.mrb[0].mxu0
  %4098 = vmatprep.mubr.bf16.mxu0 0
  %4099 = vmatmul.mubr.bf16.gmra.mrb[0].mxu0 %v3930
  %v4100 = vpop.f32.mrb[0].mxu0
  %v4101 = vadd.f32 %v3960, %v4100
  %v4102 = vpop.f32.mrb[0].mxu0
  %v4103 = vpop.f32.mrb[0].mxu0
  %v4104 = vadd.f32 %v3960, %v4103
  %v4105 = vpop.f32.mrb[0].mxu0
  %4106 = vmatprep.mubr.bf16.mxu0 0
  %4107 = vmatmul.mubr.bf16.gmra.mrb[0].mxu0 %v3931
  %v4108 = vpop.f32.mrb[0].mxu0
  %v4109 = vadd.f32 %v3960, %v4108
  %v4110 = vpop.f32.mrb[0].mxu0
  %v4111 = vpop.f32.mrb[0].mxu0
  %v4112 = vadd.f32 %v3960, %v4111
  %v4113 = vpop.f32.mrb[0].mxu0
  %4114 = vmatprep.mubr.bf16.mxu0 0
  %4115 = vmatmul.mubr.bf16.gmra.mrb[0].mxu0 %v3932
  %v4116 = vpop.f32.mrb[0].mxu0
  %v4117 = vadd.f32 %v3960, %v4116
  %v4118 = vpop.f32.mrb[0].mxu0
  %v4119 = vpop.f32.mrb[0].mxu0
  %v4120 = vadd.f32 %v3960, %v4119
  %v4121 = vpop.f32.mrb[0].mxu0
  %4122 = vmatprep.mubr.bf16.mxu0 0
  %4123 = vmatmul.mubr.bf16.gmra.mrb[0].mxu0 %v3933
  %v4124 = vpop.f32.mrb[0].mxu0
  %v4125 = vadd.f32 %v3960, %v4124
  %v4126 = vpop.f32.mrb[0].mxu0
  %v4127 = vpop.f32.mrb[0].mxu0
  %v4128 = vadd.f32 %v3960, %v4127
  %v4129 = vpop.f32.mrb[0].mxu0
  %4130 = vmatprep.mubr.bf16.mxu0 0
  %4131 = vmatmul.mubr.bf16.gmra.mrb[0].mxu0 %v3934
  %v4132 = vpop.f32.mrb[0].mxu0
  %v4133 = vadd.f32 %v3960, %v4132
  %v4134 = vpop.f32.mrb[0].mxu0
  %v4135 = vpop.f32.mrb[0].mxu0
  %v4136 = vadd.f32 %v3960, %v4135
  %v4137 = vpop.f32.mrb[0].mxu0
  %4138 = vmatprep.mubr.bf16.mxu0 0
  %4139 = vmatmul.mubr.bf16.gmra.mrb[0].mxu0 %v3935
  %v4140 = vpop.f32.mrb[0].mxu0
  %v4141 = vadd.f32 %v3960, %v4140
  %v4142 = vpop.f32.mrb[0].mxu0
  %v4143 = vpop.f32.mrb[0].mxu0
  %v4144 = vadd.f32 %v3960, %v4143
  %v4145 = vpop.f32.mrb[0].mxu0
  %4146 = vmatprep.mubr.bf16.mxu0 0
  %4147 = vmatmul.mubr.bf16.gmra.mrb[0].mxu0 %v3936
  %v4148 = vpop.f32.mrb[0].mxu0
  %v4149 = vadd.f32 %v3960, %v4148
  %v4150 = vpop.f32.mrb[0].mxu0
  %v4151 = vpop.f32.mrb[0].mxu0
  %v4152 = vadd.f32 %v3960, %v4151
  %v4153 = vpop.f32.mrb[0].mxu0
  %4154 = vmatprep.mubr.bf16.mxu0 0
  %4155 = vmatmul.mubr.bf16.gmra.mrb[0].mxu0 %v3937
  %v4156 = vpop.f32.mrb[0].mxu0
  %v4157 = vadd.f32 %v3960, %v4156
  %v4158 = vpop.f32.mrb[0].mxu0
  %v4159 = vpop.f32.mrb[0].mxu0
  %v4160 = vadd.f32 %v3960, %v4159
  %v4161 = vpop.f32.mrb[0].mxu0
  %4162 = vmatprep.mubr.bf16.mxu0 0
  %4163 = vmatmul.mubr.bf16.gmra.mrb[0].mxu0 %v3938
  %v4164 = vpop.f32.mrb[0].mxu0
  %v4165 = vadd.f32 %v3960, %v4164
  %v4166 = vpop.f32.mrb[0].mxu0
  %v4167 = vpop.f32.mrb[0].mxu0
  %v4168 = vadd.f32 %v3960, %v4167
  %v4169 = vpop.f32.mrb[0].mxu0
  %4170 = vdwg.mxu0
  %v4171 = vmax.f32 %v2768, 0.0
  %v4172 = vmax.f32 %v2772, 0.0
  %v4173 = vmax.f32 %v2778, 0.0
  %v4174 = vmax.f32 %v2782, 0.0
  %v4175 = vmax.f32 %v2788, 0.0
  %v4176 = vmax.f32 %v2792, 0.0
  %v4177 = vmax.f32 %v2798, 0.0
  %v4178 = vmax.f32 %v2802, 0.0
  %v4179 = vmax.f32 %v2808, 0.0
  %v4180 = vmax.f32 %v2812, 0.0
  %v4181 = vmax.f32 %v2818, 0.0
  %v4182 = vmax.f32 %v2822, 0.0
  %v4183 = vmax.f32 %v2828, 0.0
  %v4184 = vmax.f32 %v2832, 0.0
  %v4185 = vmax.f32 %v2838, 0.0
  %v4186 = vmax.f32 %v2842, 0.0
  %v4187 = vmax.f32 %v2848, 0.0
  %v4188 = vmax.f32 %v2852, 0.0
  %v4189 = vmax.f32 %v2858, 0.0
  %v4190 = vmax.f32 %v2862, 0.0
  %v4191 = vmax.f32 %v2868, 0.0
  %v4192 = vmax.f32 %v2872, 0.0
  %v4193 = vmax.f32 %v2878, 0.0
  %v4194 = vmax.f32 %v2882, 0.0
  %v4195 = vmax.f32 %v2888, 0.0
  %v4196 = vmax.f32 %v2892, 0.0
  %v4197 = vmax.f32 %v2898, 0.0
  %v4198 = vmax.f32 %v2902, 0.0
  %v4199 = vmax.f32 %v2908, 0.0
  %v4200 = vmax.f32 %v2912, 0.0
  %v4201 = vmax.f32 %v2918, 0.0
  %v4202 = vmax.f32 %v2922, 0.0
  %v4203 = vxor.u32 %v4045, 2147483648
  %v4204 = vxor.u32 %v4048, 2147483648
  %v4205 = vxor.u32 %v4053, 2147483648
  %v4206 = vxor.u32 %v4056, 2147483648
  %v4207 = vxor.u32 %v4061, 2147483648
  %v4208 = vxor.u32 %v4064, 2147483648
  %v4209 = vxor.u32 %v4069, 2147483648
  %v4210 = vxor.u32 %v4072, 2147483648
  %v4211 = vxor.u32 %v4077, 2147483648
  %v4212 = vxor.u32 %v4080, 2147483648
  %v4213 = vxor.u32 %v4085, 2147483648
  %v4214 = vxor.u32 %v4088, 2147483648
  %v4215 = vxor.u32 %v4093, 2147483648
  %v4216 = vxor.u32 %v4096, 2147483648
  %v4217 = vxor.u32 %v4101, 2147483648
  %v4218 = vxor.u32 %v4104, 2147483648
  %v4219 = vxor.u32 %v4109, 2147483648
  %v4220 = vxor.u32 %v4112, 2147483648
  %v4221 = vxor.u32 %v4117, 2147483648
  %v4222 = vxor.u32 %v4120, 2147483648
  %v4223 = vxor.u32 %v4125, 2147483648
  %v4224 = vxor.u32 %v4128, 2147483648
  %v4225 = vxor.u32 %v4133, 2147483648
  %v4226 = vxor.u32 %v4136, 2147483648
  %v4227 = vxor.u32 %v4141, 2147483648
  %v4228 = vxor.u32 %v4144, 2147483648
  %v4229 = vxor.u32 %v4149, 2147483648
  %v4230 = vxor.u32 %v4152, 2147483648
  %v4231 = vxor.u32 %v4157, 2147483648
  %v4232 = vxor.u32 %v4160, 2147483648
  %v4233 = vxor.u32 %v4165, 2147483648
  %v4234 = vxor.u32 %v4168, 2147483648
  %v4235 = vmul.f32 %v4203, 1.442695
  %v4236 = vpow.pop %v4235
  %v4237 = vmul.f32 %v4204, 1.442695
  %v4238 = vpow.pop %v4237
  %v4239 = vmul.f32 %v4205, 1.442695
  %v4240 = vpow.pop %v4239
  %v4241 = vmul.f32 %v4206, 1.442695
  %v4242 = vpow.pop %v4241
  %v4243 = vmul.f32 %v4207, 1.442695
  %v4244 = vpow.pop %v4243
  %v4245 = vmul.f32 %v4208, 1.442695
  %v4246 = vpow.pop %v4245
  %v4247 = vmul.f32 %v4209, 1.442695
  %v4248 = vpow.pop %v4247
  %v4249 = vmul.f32 %v4210, 1.442695
  %v4250 = vpow.pop %v4249
  %v4251 = vmul.f32 %v4211, 1.442695
  %v4252 = vpow.pop %v4251
  %v4253 = vmul.f32 %v4212, 1.442695
  %v4254 = vpow.pop %v4253
  %v4255 = vmul.f32 %v4213, 1.442695
  %v4256 = vpow.pop %v4255
  %v4257 = vmul.f32 %v4214, 1.442695
  %v4258 = vpow.pop %v4257
  %v4259 = vmul.f32 %v4215, 1.442695
  %v4260 = vpow.pop %v4259
  %v4261 = vmul.f32 %v4216, 1.442695
  %v4262 = vpow.pop %v4261
  %v4263 = vmul.f32 %v4217, 1.442695
  %v4264 = vpow.pop %v4263
  %v4265 = vmul.f32 %v4218, 1.442695
  %v4266 = vpow.pop %v4265
  %v4267 = vmul.f32 %v4219, 1.442695
  %v4268 = vpow.pop %v4267
  %v4269 = vmul.f32 %v4220, 1.442695
  %v4270 = vpow.pop %v4269
  %v4271 = vmul.f32 %v4221, 1.442695
  %v4272 = vpow.pop %v4271
  %v4273 = vmul.f32 %v4222, 1.442695
  %v4274 = vpow.pop %v4273
  %v4275 = vmul.f32 %v4223, 1.442695
  %v4276 = vpow.pop %v4275
  %v4277 = vmul.f32 %v4224, 1.442695
  %v4278 = vpow.pop %v4277
  %v4279 = vmul.f32 %v4225, 1.442695
  %v4280 = vpow.pop %v4279
  %v4281 = vmul.f32 %v4226, 1.442695
  %v4282 = vpow.pop %v4281
  %v4283 = vmul.f32 %v4227, 1.442695
  %v4284 = vpow.pop %v4283
  %v4285 = vmul.f32 %v4228, 1.442695
  %v4286 = vpow.pop %v4285
  %v4287 = vmul.f32 %v4229, 1.442695
  %v4288 = vpow.pop %v4287
  %v4289 = vmul.f32 %v4230, 1.442695
  %v4290 = vpow.pop %v4289
  %v4291 = vmul.f32 %v4231, 1.442695
  %v4292 = vpow.pop %v4291
  %v4293 = vmul.f32 %v4232, 1.442695
  %v4294 = vpow.pop %v4293
  %v4295 = vmul.f32 %v4233, 1.442695
  %v4296 = vpow.pop %v4295
  %v4297 = vmul.f32 %v4234, 1.442695
  %v4298 = vpow.pop %v4297
  %v4299 = vadd.f32 %v4236, 1.0
  %v4300 = vadd.f32 %v4238, 1.0
  %v4301 = vadd.f32 %v4240, 1.0
  %v4302 = vadd.f32 %v4242, 1.0
  %v4303 = vadd.f32 %v4244, 1.0
  %v4304 = vadd.f32 %v4246, 1.0
  %v4305 = vadd.f32 %v4248, 1.0
  %v4306 = vadd.f32 %v4250, 1.0
  %v4307 = vadd.f32 %v4252, 1.0
  %v4308 = vadd.f32 %v4254, 1.0
  %v4309 = vadd.f32 %v4256, 1.0
  %v4310 = vadd.f32 %v4258, 1.0
  %v4311 = vadd.f32 %v4260, 1.0
  %v4312 = vadd.f32 %v4262, 1.0
  %v4313 = vadd.f32 %v4264, 1.0
  %v4314 = vadd.f32 %v4266, 1.0
  %v4315 = vadd.f32 %v4268, 1.0
  %v4316 = vadd.f32 %v4270, 1.0
  %v4317 = vadd.f32 %v4272, 1.0
  %v4318 = vadd.f32 %v4274, 1.0
  %v4319 = vadd.f32 %v4276, 1.0
  %v4320 = vadd.f32 %v4278, 1.0
  %v4321 = vadd.f32 %v4280, 1.0
  %v4322 = vadd.f32 %v4282, 1.0
  %v4323 = vadd.f32 %v4284, 1.0
  %v4324 = vadd.f32 %v4286, 1.0
  %v4325 = vadd.f32 %v4288, 1.0
  %v4326 = vadd.f32 %v4290, 1.0
  %v4327 = vadd.f32 %v4292, 1.0
  %v4328 = vadd.f32 %v4294, 1.0
  %v4329 = vadd.f32 %v4296, 1.0
  %v4330 = vadd.f32 %v4298, 1.0
  %v4331 = vrcp.pop %v4299
  %v4332 = vmul.f32 1.0, %v4331
  %v4333 = vrcp.pop %v4300
  %v4334 = vmul.f32 1.0, %v4333
  %v4335 = vrcp.pop %v4301
  %v4336 = vmul.f32 1.0, %v4335
  %v4337 = vrcp.pop %v4302
  %v4338 = vmul.f32 1.0, %v4337
  %v4339 = vrcp.pop %v4303
  %v4340 = vmul.f32 1.0, %v4339
  %v4341 = vrcp.pop %v4304
  %v4342 = vmul.f32 1.0, %v4341
  %v4343 = vrcp.pop %v4305
  %v4344 = vmul.f32 1.0, %v4343
  %v4345 = vrcp.pop %v4306
  %v4346 = vmul.f32 1.0, %v4345
  %v4347 = vrcp.pop %v4307
  %v4348 = vmul.f32 1.0, %v4347
  %v4349 = vrcp.pop %v4308
  %v4350 = vmul.f32 1.0, %v4349
  %v4351 = vrcp.pop %v4309
  %v4352 = vmul.f32 1.0, %v4351
  %v4353 = vrcp.pop %v4310
  %v4354 = vmul.f32 1.0, %v4353
  %v4355 = vrcp.pop %v4311
  %v4356 = vmul.f32 1.0, %v4355
  %v4357 = vrcp.pop %v4312
  %v4358 = vmul.f32 1.0, %v4357
  %v4359 = vrcp.pop %v4313
  %v4360 = vmul.f32 1.0, %v4359
  %v4361 = vrcp.pop %v4314
  %v4362 = vmul.f32 1.0, %v4361
  %v4363 = vrcp.pop %v4315
  %v4364 = vmul.f32 1.0, %v4363
  %v4365 = vrcp.pop %v4316
  %v4366 = vmul.f32 1.0, %v4365
  %v4367 = vrcp.pop %v4317
  %v4368 = vmul.f32 1.0, %v4367
  %v4369 = vrcp.pop %v4318
  %v4370 = vmul.f32 1.0, %v4369
  %v4371 = vrcp.pop %v4319
  %v4372 = vmul.f32 1.0, %v4371
  %v4373 = vrcp.pop %v4320
  %v4374 = vmul.f32 1.0, %v4373
  %v4375 = vrcp.pop %v4321
  %v4376 = vmul.f32 1.0, %v4375
  %v4377 = vrcp.pop %v4322
  %v4378 = vmul.f32 1.0, %v4377
  %v4379 = vrcp.pop %v4323
  %v4380 = vmul.f32 1.0, %v4379
  %v4381 = vrcp.pop %v4324
  %v4382 = vmul.f32 1.0, %v4381
  %v4383 = vrcp.pop %v4325
  %v4384 = vmul.f32 1.0, %v4383
  %v4385 = vrcp.pop %v4326
  %v4386 = vmul.f32 1.0, %v4385
  %v4387 = vrcp.pop %v4327
  %v4388 = vmul.f32 1.0, %v4387
  %v4389 = vrcp.pop %v4328
  %v4390 = vmul.f32 1.0, %v4389
  %v4391 = vrcp.pop %v4329
  %v4392 = vmul.f32 1.0, %v4391
  %v4393 = vrcp.pop %v4330
  %v4394 = vmul.f32 1.0, %v4393
  %4427 = vrot.lane.b32.xlu0 %v4332, 4
  %v4428 = vpop.permute.xlu0 %4427
  %4429 = vrot.lane.b32.xlu0 %v4334, 4
  %v4430 = vpop.permute.xlu0 %4429
  %4431 = vrot.lane.b32.xlu0 %v4336, 4
  %v4432 = vpop.permute.xlu0 %4431
  %4433 = vrot.lane.b32.xlu0 %v4338, 4
  %v4434 = vpop.permute.xlu0 %4433
  %4435 = vrot.lane.b32.xlu0 %v4340, 4
  %v4436 = vpop.permute.xlu0 %4435
  %4437 = vrot.lane.b32.xlu0 %v4342, 4
  %v4438 = vpop.permute.xlu0 %4437
  %4439 = vrot.lane.b32.xlu0 %v4344, 4
  %v4440 = vpop.permute.xlu0 %4439
  %4441 = vrot.lane.b32.xlu0 %v4346, 4
  %v4442 = vpop.permute.xlu0 %4441
  %4443 = vrot.lane.b32.xlu0 %v4348, 4
  %v4444 = vpop.permute.xlu0 %4443
  %4445 = vrot.lane.b32.xlu0 %v4350, 4
  %v4446 = vpop.permute.xlu0 %4445
  %4447 = vrot.lane.b32.xlu0 %v4352, 4
  %v4448 = vpop.permute.xlu0 %4447
  %4449 = vrot.lane.b32.xlu0 %v4354, 4
  %v4450 = vpop.permute.xlu0 %4449
  %4451 = vrot.lane.b32.xlu0 %v4356, 4
  %v4452 = vpop.permute.xlu0 %4451
  %4453 = vrot.lane.b32.xlu0 %v4358, 4
  %v4454 = vpop.permute.xlu0 %4453
  %4455 = vrot.lane.b32.xlu0 %v4360, 4
  %v4456 = vpop.permute.xlu0 %4455
  %4457 = vrot.lane.b32.xlu0 %v4362, 4
  %v4458 = vpop.permute.xlu0 %4457
  %4459 = vrot.lane.b32.xlu0 %v4364, 4
  %v4460 = vpop.permute.xlu0 %4459
  %4461 = vrot.lane.b32.xlu0 %v4366, 4
  %v4462 = vpop.permute.xlu0 %4461
  %4463 = vrot.lane.b32.xlu0 %v4368, 4
  %v4464 = vpop.permute.xlu0 %4463
  %4465 = vrot.lane.b32.xlu0 %v4370, 4
  %v4466 = vpop.permute.xlu0 %4465
  %4467 = vrot.lane.b32.xlu0 %v4372, 4
  %v4468 = vpop.permute.xlu0 %4467
  %4469 = vrot.lane.b32.xlu0 %v4374, 4
  %v4470 = vpop.permute.xlu0 %4469
  %4471 = vrot.lane.b32.xlu0 %v4376, 4
  %v4472 = vpop.permute.xlu0 %4471
  %4473 = vrot.lane.b32.xlu0 %v4378, 4
  %v4474 = vpop.permute.xlu0 %4473
  %4475 = vrot.lane.b32.xlu0 %v4380, 4
  %v4476 = vpop.permute.xlu0 %4475
  %4477 = vrot.lane.b32.xlu0 %v4382, 4
  %v4478 = vpop.permute.xlu0 %4477
  %4479 = vrot.lane.b32.xlu0 %v4384, 4
  %v4480 = vpop.permute.xlu0 %4479
  %4481 = vrot.lane.b32.xlu0 %v4386, 4
  %v4482 = vpop.permute.xlu0 %4481
  %4483 = vrot.lane.b32.xlu0 %v4388, 4
  %v4484 = vpop.permute.xlu0 %4483
  %4485 = vrot.lane.b32.xlu0 %v4390, 4
  %v4486 = vpop.permute.xlu0 %4485
  %4487 = vrot.lane.b32.xlu0 %v4392, 4
  %v4488 = vpop.permute.xlu0 %4487
  %4489 = vrot.lane.b32.xlu0 %v4394, 4
  %v4490 = vpop.permute.xlu0 %4489
  %vm4523 = vcmask 7168
  %v4524 = vsel %vm4523, %v4171, %v3277
  %v4525 = vsel %vm4523, %v4172, %v3278
  %v4526 = vsel %vm4523, %v4173, %v3279
  %v4527 = vsel %vm4523, %v4174, %v3280
  %v4528 = vsel %vm4523, %v4175, %v3281
  %v4529 = vsel %vm4523, %v4176, %v3282
  %v4530 = vsel %vm4523, %v4177, %v3283
  %v4531 = vsel %vm4523, %v4178, %v3284
  %v4532 = vsel %vm4523, %v4179, %v3285
  %v4533 = vsel %vm4523, %v4180, %v3286
  %v4534 = vsel %vm4523, %v4181, %v3287
  %v4535 = vsel %vm4523, %v4182, %v3288
  %v4536 = vsel %vm4523, %v4183, %v3289
  %v4537 = vsel %vm4523, %v4184, %v3290
  %v4538 = vsel %vm4523, %v4185, %v3291
  %v4539 = vsel %vm4523, %v4186, %v3292
  %v4540 = vsel %vm4523, %v4187, %v3293
  %v4541 = vsel %vm4523, %v4188, %v3294
  %v4542 = vsel %vm4523, %v4189, %v3295
  %v4543 = vsel %vm4523, %v4190, %v3296
  %v4544 = vsel %vm4523, %v4191, %v3297
  %v4545 = vsel %vm4523, %v4192, %v3298
  %v4546 = vsel %vm4523, %v4193, %v3299
  %v4547 = vsel %vm4523, %v4194, %v3300
  %v4548 = vsel %vm4523, %v4195, %v3301
  %v4549 = vsel %vm4523, %v4196, %v3302
  %v4550 = vsel %vm4523, %v4197, %v3303
  %v4551 = vsel %vm4523, %v4198, %v3304
  %v4552 = vsel %vm4523, %v4199, %v3305
  %v4553 = vsel %vm4523, %v4200, %v3306
  %v4554 = vsel %vm4523, %v4201, %v3307
  %v4555 = vsel %vm4523, %v4202, %v3308
  %vm4556 = vcmask 31744
  %v4557 = vsel %vm4556, %v4524, %v4428
  %v4558 = vsel %vm4556, %v4525, %v4430
  %v4559 = vsel %vm4556, %v4526, %v4432
  %v4560 = vsel %vm4556, %v4527, %v4434
  %v4561 = vsel %vm4556, %v4528, %v4436
  %v4562 = vsel %vm4556, %v4529, %v4438
  %v4563 = vsel %vm4556, %v4530, %v4440
  %v4564 = vsel %vm4556, %v4531, %v4442
  %v4565 = vsel %vm4556, %v4532, %v4444
  %v4566 = vsel %vm4556, %v4533, %v4446
  %v4567 = vsel %vm4556, %v4534, %v4448
  %v4568 = vsel %vm4556, %v4535, %v4450
  %v4569 = vsel %vm4556, %v4536, %v4452
  %v4570 = vsel %vm4556, %v4537, %v4454
  %v4571 = vsel %vm4556, %v4538, %v4456
  %v4572 = vsel %vm4556, %v4539, %v4458
  %v4573 = vsel %vm4556, %v4540, %v4460
  %v4574 = vsel %vm4556, %v4541, %v4462
  %v4575 = vsel %vm4556, %v4542, %v4464
  %v4576 = vsel %vm4556, %v4543, %v4466
  %v4577 = vsel %vm4556, %v4544, %v4468
  %v4578 = vsel %vm4556, %v4545, %v4470
  %v4579 = vsel %vm4556, %v4546, %v4472
  %v4580 = vsel %vm4556, %v4547, %v4474
  %v4581 = vsel %vm4556, %v4548, %v4476
  %v4582 = vsel %vm4556, %v4549, %v4478
  %v4583 = vsel %vm4556, %v4550, %v4480
  %v4584 = vsel %vm4556, %v4551, %v4482
  %v4585 = vsel %vm4556, %v4552, %v4484
  %v4586 = vsel %vm4556, %v4553, %v4486
  %v4587 = vsel %vm4556, %v4554, %v4488
  %v4588 = vsel %vm4556, %v4555, %v4490
  %vm4589 = vcmask 56320
  %v4590 = vsel %vm4589, %v4557, 0.0
  %v4591 = vsel %vm4589, %v4558, 0.0
  %v4592 = vsel %vm4589, %v4559, 0.0
  %v4593 = vsel %vm4589, %v4560, 0.0
  %v4594 = vsel %vm4589, %v4561, 0.0
  %v4595 = vsel %vm4589, %v4562, 0.0
  %v4596 = vsel %vm4589, %v4563, 0.0
  %v4597 = vsel %vm4589, %v4564, 0.0
  %v4598 = vsel %vm4589, %v4565, 0.0
  %v4599 = vsel %vm4589, %v4566, 0.0
  %v4600 = vsel %vm4589, %v4567, 0.0
  %v4601 = vsel %vm4589, %v4568, 0.0
  %v4602 = vsel %vm4589, %v4569, 0.0
  %v4603 = vsel %vm4589, %v4570, 0.0
  %v4604 = vsel %vm4589, %v4571, 0.0
  %v4605 = vsel %vm4589, %v4572, 0.0
  %v4606 = vsel %vm4589, %v4573, 0.0
  %v4607 = vsel %vm4589, %v4574, 0.0
  %v4608 = vsel %vm4589, %v4575, 0.0
  %v4609 = vsel %vm4589, %v4576, 0.0
  %v4610 = vsel %vm4589, %v4577, 0.0
  %v4611 = vsel %vm4589, %v4578, 0.0
  %v4612 = vsel %vm4589, %v4579, 0.0
  %v4613 = vsel %vm4589, %v4580, 0.0
  %v4614 = vsel %vm4589, %v4581, 0.0
  %v4615 = vsel %vm4589, %v4582, 0.0
  %v4616 = vsel %vm4589, %v4583, 0.0
  %v4617 = vsel %vm4589, %v4584, 0.0
  %v4618 = vsel %vm4589, %v4585, 0.0
  %v4619 = vsel %vm4589, %v4586, 0.0
  %v4620 = vsel %vm4589, %v4587, 0.0
  %v4621 = vsel %vm4589, %v4588, 0.0
  %vm4622 = vcmask 64512
  %4623 = vst.msk [vmem:[%s10] sm:$0xff] %vm4622, %v4590
  %4624 = vst.msk [vmem:[%s10 + $0x8] sm:$0xff] %vm4622, %v4591
  %4625 = vst.msk [vmem:[%s10 + $0x10] sm:$0xff] %vm4622, %v4592
  %4626 = vst.msk [vmem:[%s10 + $0x18] sm:$0xff] %vm4622, %v4593
  %4627 = vst.msk [vmem:[%s10 + $0x20] sm:$0xff] %vm4622, %v4594
  %4628 = vst.msk [vmem:[%s10 + $0x28] sm:$0xff] %vm4622, %v4595
  %4629 = vst.msk [vmem:[%s10 + $0x30] sm:$0xff] %vm4622, %v4596
  %4630 = vst.msk [vmem:[%s10 + $0x38] sm:$0xff] %vm4622, %v4597
  %4631 = vst.msk [vmem:[%s10 + $0x40] sm:$0xff] %vm4622, %v4598
  %4632 = vst.msk [vmem:[%s10 + $0x48] sm:$0xff] %vm4622, %v4599
  %4633 = vst.msk [vmem:[%s10 + $0x50] sm:$0xff] %vm4622, %v4600
  %4634 = vst.msk [vmem:[%s10 + $0x58] sm:$0xff] %vm4622, %v4601
  %4635 = vst.msk [vmem:[%s10 + $0x60] sm:$0xff] %vm4622, %v4602
  %4636 = vst.msk [vmem:[%s10 + $0x68] sm:$0xff] %vm4622, %v4603
  %4637 = vst.msk [vmem:[%s10 + $0x70] sm:$0xff] %vm4622, %v4604
  %4638 = vst.msk [vmem:[%s10 + $0x78] sm:$0xff] %vm4622, %v4605
  %4639 = vst.msk [vmem:[%s10 + $0x80] sm:$0xff] %vm4622, %v4606
  %4640 = vst.msk [vmem:[%s10 + $0x88] sm:$0xff] %vm4622, %v4607
  %4641 = vst.msk [vmem:[%s10 + $0x90] sm:$0xff] %vm4622, %v4608
  %4642 = vst.msk [vmem:[%s10 + $0x98] sm:$0xff] %vm4622, %v4609
  %4643 = vst.msk [vmem:[%s10 + $0xa0] sm:$0xff] %vm4622, %v4610
  %4644 = vst.msk [vmem:[%s10 + $0xa8] sm:$0xff] %vm4622, %v4611
  %4645 = vst.msk [vmem:[%s10 + $0xb0] sm:$0xff] %vm4622, %v4612
  %4646 = vst.msk [vmem:[%s10 + $0xb8] sm:$0xff] %vm4622, %v4613
  %4647 = vst.msk [vmem:[%s10 + $0xc0] sm:$0xff] %vm4622, %v4614
  %4648 = vst.msk [vmem:[%s10 + $0xc8] sm:$0xff] %vm4622, %v4615
  %4649 = vst.msk [vmem:[%s10 + $0xd0] sm:$0xff] %vm4622, %v4616
  %4650 = vst.msk [vmem:[%s10 + $0xd8] sm:$0xff] %vm4622, %v4617
  %4651 = vst.msk [vmem:[%s10 + $0xe0] sm:$0xff] %vm4622, %v4618
  %4652 = vst.msk [vmem:[%s10 + $0xe8] sm:$0xff] %vm4622, %v4619
  %4653 = vst.msk [vmem:[%s10 + $0xf0] sm:$0xff] %vm4622, %v4620
  %4654 = vst.msk [vmem:[%s10 + $0xf8] sm:$0xff] %vm4622, %v4621
  // Predicated region
  $region42: #{tpu_custom_call.1} parent=0 // pred_check
    _
  $region43: #{tpu_custom_call.1} parent=0 // pred_check_branch
    %4656 = sbr.rel (0) target = $region45
  $region44: #{tpu_custom_call.1} parent=0 // pred_region
    _
  $region45: #{tpu_custom_call.1} parent=0 // pred_fallthru
    _
  // Predicated region
  $region46: #{tpu_custom_call.1} parent=0 // pred_check
    _
  $region47: #{tpu_custom_call.1} parent=0 // pred_check_branch
    %4658 = sbr.rel (0) target = $region49
  $region48: #{tpu_custom_call.1} parent=0 // pred_region
    _
  $region49: #{tpu_custom_call.1} parent=0 // pred_fallthru
    _

</llo_original>
